<compile_context>
chip_gen: v5e
topology: v5e:2x2
jax: 0.10.0
libtpu: 0.0.40
codegen_flags: <defaults>
</compile_context>

<pallas_src>
import math

import jax
import jax.numpy as jnp
from jax import lax
from jax.experimental import pallas as pl
from jax.experimental.pallas import tpu as pltpu

CHUNK = 8   # timesteps per scan chunk == one f32 sublane tile
HALO = 8    # conv-history rows carried across T-tiles (8-row aligned)


def _silu(x):
    return x * jax.nn.sigmoid(x)


def _softplus(x):
    return jnp.maximum(x, 0.0) + jnp.log1p(jnp.exp(-jnp.abs(x)))


def _round_up(a, b):
    return ((a + b - 1) // b) * b


def _mamba_kernel(x_ref, inx_wT_ref, inz_wT_ref, conv_w_ref, conv_b_ref,
                  xdt_wT_ref, xbc_wT_ref, dtproj_wT_ref, dtproj_b_ref,
                  A_ref, D_ref, outproj_wT_ref,
                  o_ref,
                  xpad_sc, u_sc, dt_sc, g_sc, y_sc, bcT_sc, h_sc):
    ti = pl.program_id(1)
    t_tile, d_inner = u_sc.shape
    d_conv = conv_w_ref.shape[0]
    d_state = A_ref.shape[0]
    two_s = 2 * d_state
    n_chunks = t_tile // CHUNK

    # ---- per-sequence state reset (scan state h + conv halo) ----
    @pl.when(ti == 0)
    def _():
        h_sc[...] = jnp.zeros_like(h_sc)
        xpad_sc[pl.ds(0, HALO), :] = jnp.zeros((HALO, d_inner), jnp.float32)

    # ---- input projection (bf16 weights, f32 accumulation on the MXU) ----
    xb = x_ref[0].astype(jnp.bfloat16)                       # (t_tile, d_model)
    xd = jnp.dot(xb, inx_wT_ref[...], preferred_element_type=jnp.float32)
    z = jnp.dot(xb, inz_wT_ref[...], preferred_element_type=jnp.float32)
    g_sc[...] = _silu(z)                     # stage gate; frees z's live range

    # ---- depthwise causal conv with an 8-row-aligned halo across T-tiles ----
    xpad_sc[pl.ds(HALO, t_tile), :] = xd                        # aligned store
    acc = xd * conv_w_ref[d_conv - 1:d_conv, :]                 # k = d_conv-1
    for k in range(d_conv - 1):                      # d_conv is small & static
        acc = acc + (xpad_sc[pl.ds(HALO - (d_conv - 1) + k, t_tile), :]
                     * conv_w_ref[k:k + 1, :])
    u = _silu(acc + conv_b_ref[...])                          # (t_tile, d_inner)
    u_sc[...] = u
    # carry the last HALO raw-x rows to the front for the next T-tile
    xpad_sc[pl.ds(0, HALO), :] = xpad_sc[pl.ds(t_tile, HALO), :]

    # ---- input-dependent SSM params: fused [B;C] matmul + lane-padded dt ----
    ub = u.astype(jnp.bfloat16)
    bc = jnp.dot(ub, xbc_wT_ref[...], preferred_element_type=jnp.float32)
    dt_in = jnp.dot(ub, xdt_wT_ref[...], preferred_element_type=jnp.float32)
    dt_sc[...] = _softplus(
        jnp.dot(dt_in.astype(jnp.bfloat16), dtproj_wT_ref[...],
                preferred_element_type=jnp.float32) + dtproj_b_ref[...])

    # ---- [B;C] transposes hoisted out of the serial scan loop ----
    # One tiny eye-matmul per chunk (fused B&C halves the count), all issued at
    # tile level so the serial recurrence below contains no MXU launches.
    eye = (lax.broadcasted_iota(jnp.int32, (two_s, two_s), 0)
           == lax.broadcasted_iota(jnp.int32, (two_s, two_s), 1)
           ).astype(jnp.float32)
    for ci in range(n_chunks):                      # static, off the scan path
        bc_c = bc[ci * CHUNK:(ci + 1) * CHUNK, :]   # aligned sublane slice
        bcT_sc[ci] = lax.dot_general(
            eye, bc_c, dimension_numbers=(((1,), (1,)), ((), ())),
            preferred_element_type=jnp.float32)     # (2S, CHUNK)

    # ---- serial selective scan, chunked over time: VPU/EUP/XLU only ----
    def chunk_body(ci, carry):
        base = pl.multiple_of(ci * CHUNK, CHUNK)
        dt_c = dt_sc[pl.ds(base, CHUNK), :]                  # (CHUNK, d_inner)
        u_c = u_sc[pl.ds(base, CHUNK), :]
        g_c = g_sc[pl.ds(base, CHUNK), :]
        dtu_c = dt_c * u_c
        A = A_ref[...]                                       # (d_state, d_inner)
        # whole-chunk exp(A*dt): EUP work issued ahead of the recurrence and
        # kept in vregs (no VMEM round trip).
        # TODO(synk): tile d_inner at production sizes to bound vreg pressure.
        dAs = [jnp.exp(A * dt_c[l:l + 1, :]) for l in range(CHUNK)]
        bcT_c = bcT_sc[ci]                                   # (2S, CHUNK)

        h = h_sc[...]                                        # (d_state, d_inner)
        ys = []
        for l in range(CHUNK):
            b_col = bcT_c[0:d_state, l:l + 1]                # (S, 1)
            c_col = bcT_c[d_state:two_s, l:l + 1]            # (S, 1)
            # pure-VPU recurrence: broadcast outer product + multiply-add
            h = dAs[l] * h + b_col * dtu_c[l:l + 1, :]
            # y_t = C_t . h_t : VPU multiply + sublane reduce (XLU); no MXU
            ys.append(jnp.sum(c_col * h, axis=0, keepdims=True))
        h_sc[...] = h
        y_c = jnp.concatenate(ys, axis=0)                    # (CHUNK, d_inner)
        # fused epilogue: skip connection + gate applied while u/g are hot;
        # one full 8-sublane (unmasked) store per chunk.
        y_sc[pl.ds(base, CHUNK), :] = (y_c + D_ref[...] * u_c) * g_c
        return carry

    lax.fori_loop(0, n_chunks, chunk_body, 0)

    # ---- output projection (whole tile for good MXU shape) ----
    yb = y_sc[...].astype(jnp.bfloat16)
    o_ref[0] = jnp.dot(yb, outproj_wT_ref[...],
                       preferred_element_type=jnp.float32).astype(o_ref.dtype)


_WEIGHT_NAMES = ("in_x_wT", "in_z_wT", "conv_w", "conv_b", "x_dt_wT",
                 "x_BC_wT", "dt_proj_wT", "dt_proj_b", "A_neg", "D",
                 "out_proj_wT")


def _mamba_block_call(x, p, t_tile, single_buffer_weights):
    B, T, d_model = x.shape
    d_inner = p["D"].shape[1]
    d_state = p["A_neg"].shape[0]
    d_conv = p["conv_w"].shape[0]
    assert d_conv - 1 <= HALO

    t_tile = max(CHUNK, min(_round_up(t_tile, CHUNK), _round_up(T, CHUNK)))
    T_pad = _round_up(T, t_tile)
    n_t = T_pad // t_tile
    n_chunks = t_tile // CHUNK
    if T_pad != T:
        # causal model -> zero-padding the tail and slicing it off is exact
        x = jnp.pad(x, ((0, 0), (0, T_pad - T), (0, 0)))

    def w_spec(a):
        nd = a.ndim
        kwargs = ({"pipeline_mode": pl.Buffered(1)}     # resident: 1 buffer
                  if single_buffer_weights else {})
        return pl.BlockSpec(a.shape, lambda b, ti, _nd=nd: (0,) * _nd, **kwargs)

    in_specs = ([pl.BlockSpec((1, t_tile, d_model), lambda b, ti: (b, ti, 0))]
                + [w_spec(p[k]) for k in _WEIGHT_NAMES])

    # Rough VMEM budget (lane/sublane padded): scratch + double-buffered x/out
    # blocks + weight buffers.  Keeps us honest against v7x's 64 MiB physical.
    def padded_bytes(a):
        r, c = a.shape
        return _round_up(r, 8) * _round_up(c, 128) * a.dtype.itemsize

    scratch_bytes = 4 * (
        _round_up(t_tile + HALO, 8) * _round_up(d_inner, 128)     # xpad/halo
        + 4 * t_tile * _round_up(d_inner, 128)                    # u, dt, g, y
        + n_chunks * _round_up(2 * d_state, 8) * 128              # bcT chunks
        + _round_up(d_state, 8) * _round_up(d_inner, 128))        # h carry
    io_bytes = 2 * 2 * 4 * t_tile * _round_up(d_model, 128)
    wbuf = 1 if single_buffer_weights else 2
    weight_bytes = wbuf * sum(padded_bytes(p[k]) for k in _WEIGHT_NAMES)
    vmem_limit = int(min(48 * 2 ** 20,
                         max(32 * 2 ** 20,
                             2 * (scratch_bytes + io_bytes + weight_bytes))))

    out = pl.pallas_call(
        _mamba_kernel,
        out_shape=jax.ShapeDtypeStruct((B, T_pad, d_model), jnp.float32),
        grid_spec=pltpu.PrefetchScalarGridSpec(
            num_scalar_prefetch=0,
            grid=(B, n_t),
            in_specs=in_specs,
            out_specs=pl.BlockSpec((1, t_tile, d_model),
                                   lambda b, ti: (b, ti, 0)),
            scratch_shapes=[
                pltpu.VMEM((t_tile + HALO, d_inner), jnp.float32),  # x + halo
                pltpu.VMEM((t_tile, d_inner), jnp.float32),         # u
                pltpu.VMEM((t_tile, d_inner), jnp.float32),         # dt
                pltpu.VMEM((t_tile, d_inner), jnp.float32),         # silu(z)
                pltpu.VMEM((t_tile, d_inner), jnp.float32),         # gated y
                pltpu.VMEM((n_chunks, 2 * d_state, CHUNK), jnp.float32),  # [B;C]^T
                pltpu.VMEM((d_state, d_inner), jnp.float32),         # h carry
            ]),
        compiler_params=pltpu.CompilerParams(
            # batch elements independent -> shard b across TCs; time tiles
            # carry state in scratch -> "arbitrary".
            dimension_semantics=("parallel", "arbitrary"),
            vmem_limit_bytes=vmem_limit),
    )(x, *[p[k] for k in _WEIGHT_NAMES])

    return out[:, :T, :] if T_pad != T else out


def mamba_block_pallas(x, p, t_tile=64):
    try:
        return _mamba_block_call(x, p, t_tile, True)
    except Exception:
        # TODO(synk): pl.Buffered(1) rejected by this JAX build; fall back to
        # default double-buffered weights (costs extra VMEM at prod sizes).
        return _mamba_block_call(x, p, t_tile, False)


def init_mamba_params(key, d_model, d_state, d_conv, expand):
    """Deterministic synthetic init matching the shapes of mamba_ssm.Mamba."""
    d_inner = expand * d_model
    dt_rank = math.ceil(d_model / 16)
    dt_rank_pad = _round_up(dt_rank, 128)       # lane-pad with zeros (exact)
    ks = jax.random.split(key, 7)

    def unif(k, shape, scale):
        return jax.random.uniform(k, shape, jnp.float32, -scale, scale)

    in_proj_w = unif(ks[0], (2 * d_inner, d_model), 1.0 / math.sqrt(d_model))
    conv_w = unif(ks[1], (d_inner, d_conv), 1.0 / math.sqrt(d_conv))
    conv_b = unif(ks[2], (d_inner,), 1.0 / math.sqrt(d_conv))
    x_proj_w = unif(ks[3], (dt_rank + 2 * d_state, d_inner),
                    1.0 / math.sqrt(d_inner))
    dt_proj_w = (jax.random.normal(ks[4], (d_inner, dt_rank), jnp.float32)
                 * (dt_rank ** -0.5))
    dt_min, dt_max = 1e-3, 1e-1
    dtv = jnp.exp(jax.random.uniform(ks[5], (d_inner,), jnp.float32)
                  * (math.log(dt_max) - math.log(dt_min)) + math.log(dt_min))
    dt_proj_b = dtv + jnp.log(-jnp.expm1(-dtv))             # inverse softplus
    A_log = jnp.log(jnp.broadcast_to(
        jnp.arange(1, d_state + 1, dtype=jnp.float32), (d_inner, d_state)))
    D = jnp.ones((d_inner,), jnp.float32)
    out_proj_w = unif(ks[6], (d_model, d_inner), 1.0 / math.sqrt(d_inner))

    bf16 = jnp.bfloat16
    x_dt_wT = jnp.zeros((d_inner, dt_rank_pad), jnp.float32)
    x_dt_wT = x_dt_wT.at[:, :dt_rank].set(x_proj_w[:dt_rank].T)
    dt_proj_wT = jnp.zeros((dt_rank_pad, d_inner), jnp.float32)
    dt_proj_wT = dt_proj_wT.at[:dt_rank, :].set(dt_proj_w.T)

    # matmul weights are pre-transposed, B/C fused, dt lane-padded, and cast to
    # bf16 (MXU-native); elementwise params (conv, biases, A, D) stay f32.
    return dict(
        in_x_wT=in_proj_w[:d_inner].T.astype(bf16),         # (d_model, d_inner)
        in_z_wT=in_proj_w[d_inner:].T.astype(bf16),          # (d_model, d_inner)
        conv_w=jnp.asarray(conv_w.T),                        # (d_conv, d_inner)
        conv_b=conv_b.reshape(1, d_inner),
        x_dt_wT=x_dt_wT.astype(bf16),                        # (d_inner, R_pad)
        x_BC_wT=x_proj_w[dt_rank:].T.astype(bf16),           # (d_inner, 2*d_state)
        dt_proj_wT=dt_proj_wT.astype(bf16),                  # (R_pad, d_inner)
        dt_proj_b=dt_proj_b.reshape(1, d_inner),
        A_neg=jnp.asarray((-jnp.exp(A_log)).T),              # (d_state, d_inner)
        D=D.reshape(1, d_inner),
        out_proj_wT=out_proj_w.T.astype(bf16),               # (d_inner, d_model)
    )


def mamba_block_ref(x, p):
    """Pure-JAX reference (same math, same bf16 matmul casts) for checking."""
    d_conv = p["conv_w"].shape[0]
    d_state = p["A_neg"].shape[0]
    B, T, _ = x.shape

    def mm(a, w):
        return jnp.dot(a.astype(jnp.bfloat16), w,
                       preferred_element_type=jnp.float32)

    xd = mm(x, p["in_x_wT"])
    z = mm(x, p["in_z_wT"])
    xpad = jnp.pad(xd, ((0, 0), (d_conv - 1, 0), (0, 0)))
    acc = jnp.zeros_like(xd)
    for k in range(d_conv):
        acc = acc + xpad[:, k:k + T, :] * p["conv_w"][k][None, None, :]
    u = jax.nn.silu(acc + p["conv_b"][0])
    dt = jax.nn.softplus(mm(mm(u, p["x_dt_wT"]), p["dt_proj_wT"])
                         + p["dt_proj_b"][0])
    bc = mm(u, p["x_BC_wT"])
    Bm, Cm = bc[..., :d_state], bc[..., d_state:]
    A = p["A_neg"].T                                        # (d_inner, d_state)

    dA = jnp.exp(dt[..., None] * A)                         # (B,T,d_inner,d_state)
    dBu = (dt * u)[..., None] * Bm[..., None, :]

    def step(h, inp):
        dA_t, dBu_t, C_t, u_t = inp
        h = dA_t * h + dBu_t
        y = jnp.einsum("bis,bs->bi", h, C_t) + p["D"][0] * u_t
        return h, y

    h0 = jnp.zeros((B, u.shape[-1], A.shape[-1]), jnp.float32)
    xs = (jnp.swapaxes(dA, 0, 1), jnp.swapaxes(dBu, 0, 1),
          jnp.swapaxes(Cm, 0, 1), jnp.swapaxes(u, 0, 1))
    _, ys = lax.scan(step, h0, xs)
    y = jnp.swapaxes(ys, 0, 1) * jax.nn.silu(z)
    return mm(y, p["out_proj_wT"])


if __name__ == "__main__":
    num, d_model, d_state, d_conv, expand = 2, 32, 16, 4, 2
    B, T = 2, 20   # T not a multiple of the tile -> exercises padding + carry

    root = jax.random.PRNGKey(0)
    kx, kp = jax.random.split(root)
    x = jax.random.normal(kx, (B, T, d_model), dtype=jnp.float32)
    params = [init_mamba_params(k, d_model, d_state, d_conv, expand)
              for k in jax.random.split(kp, num)]

    # MambaBlocks.forward == stacked Mamba blocks (nn.Sequential, no residual).
    # Small t_tile so the h / conv-halo carry across T-tiles is exercised.
    y = x
    for p in params:
        y = mamba_block_pallas(y, p, t_tile=8)
    y = jax.block_until_ready(y)

    y_ref = x
    for p in params:
        y_ref = mamba_block_ref(y_ref, p)

    assert y.shape == (B, T, d_model)
    assert bool(jnp.allclose(y, y_ref, atol=1e-2, rtol=1e-2)), \
        "mismatch vs reference"
    print("KERNEL_OK")
</pallas_src>

<mosaic_0001>
module attributes {stable_mosaic.version = 11 : i64} {
  func.func @_mamba_kernel(%arg0: i32, %arg1: i32, %arg2: memref<1x8x32xf32, #tpu.memory_space<vmem>>, %arg3: memref<32x64xbf16, #tpu.memory_space<vmem>>, %arg4: memref<32x64xbf16, #tpu.memory_space<vmem>>, %arg5: memref<4x64xf32, #tpu.memory_space<vmem>>, %arg6: memref<1x64xf32, #tpu.memory_space<vmem>>, %arg7: memref<64x128xbf16, #tpu.memory_space<vmem>>, %arg8: memref<64x32xbf16, #tpu.memory_space<vmem>>, %arg9: memref<128x64xbf16, #tpu.memory_space<vmem>>, %arg10: memref<1x64xf32, #tpu.memory_space<vmem>>, %arg11: memref<16x64xf32, #tpu.memory_space<vmem>>, %arg12: memref<1x64xf32, #tpu.memory_space<vmem>>, %arg13: memref<64x32xbf16, #tpu.memory_space<vmem>>, %arg14: memref<1x8x32xf32, #tpu.memory_space<vmem>>, %arg15: memref<16x64xf32, #tpu.memory_space<vmem>>, %arg16: memref<8x64xf32, #tpu.memory_space<vmem>>, %arg17: memref<8x64xf32, #tpu.memory_space<vmem>>, %arg18: memref<8x64xf32, #tpu.memory_space<vmem>>, %arg19: memref<8x64xf32, #tpu.memory_space<vmem>>, %arg20: memref<1x32x8xf32, #tpu.memory_space<vmem>>, %arg21: memref<16x64xf32, #tpu.memory_space<vmem>>) attributes {dimension_semantics = [#tpu.dimension_semantics<parallel>, #tpu.dimension_semantics<arbitrary>], iteration_bounds = array<i64: 2, 3>, scalar_prefetch = 0 : i64, scratch_operands = 7 : i64, tpu.core_type = #tpu.core_type<tc>, window_params = [{transform_indices = @transform_0, window_bounds = array<i64: 1, 8, 32>}, {pipeline_mode = #tpu.pipeline_mode<synchronous>, transform_indices = @transform_1, window_bounds = array<i64: 32, 64>}, {pipeline_mode = #tpu.pipeline_mode<synchronous>, transform_indices = @transform_2, window_bounds = array<i64: 32, 64>}, {pipeline_mode = #tpu.pipeline_mode<synchronous>, transform_indices = @transform_3, window_bounds = array<i64: 4, 64>}, {pipeline_mode = #tpu.pipeline_mode<synchronous>, transform_indices = @transform_4, window_bounds = array<i64: 1, 64>}, {pipeline_mode = #tpu.pipeline_mode<synchronous>, transform_indices = @transform_5, window_bounds = array<i64: 64, 128>}, {pipeline_mode = #tpu.pipeline_mode<synchronous>, transform_indices = @transform_6, window_bounds = array<i64: 64, 32>}, {pipeline_mode = #tpu.pipeline_mode<synchronous>, transform_indices = @transform_7, window_bounds = array<i64: 128, 64>}, {pipeline_mode = #tpu.pipeline_mode<synchronous>, transform_indices = @transform_8, window_bounds = array<i64: 1, 64>}, {pipeline_mode = #tpu.pipeline_mode<synchronous>, transform_indices = @transform_9, window_bounds = array<i64: 16, 64>}, {pipeline_mode = #tpu.pipeline_mode<synchronous>, transform_indices = @transform_10, window_bounds = array<i64: 1, 64>}, {pipeline_mode = #tpu.pipeline_mode<synchronous>, transform_indices = @transform_11, window_bounds = array<i64: 64, 32>}, {transform_indices = @transform_12, window_bounds = array<i64: 1, 8, 32>}]} {
    %c0_i32 = arith.constant 0 : i32
    %0 = arith.cmpi eq, %arg1, %c0_i32 : i32
    %1 = arith.extui %0 : i1 to i32
    %c0_i32_0 = arith.constant 0 : i32
    %2 = arith.cmpi ne, %1, %c0_i32_0 : i32
    scf.if %2 {
      %cst_79 = arith.constant 0.000000e+00 : f32
      %235 = vector.broadcast %cst_79 : f32 to vector<16x64xf32>
      %c0_80 = arith.constant 0 : index
      %c0_81 = arith.constant 0 : index
      %236 = vector.load %arg21[%c0_80, %c0_81] : memref<16x64xf32, #tpu.memory_space<vmem>>, vector<16x64xf32>
      tpu.vector_store %arg21[%c0_80, %c0_81], %235 {strides = array<i32>} : memref<16x64xf32, #tpu.memory_space<vmem>>, vector<16x64xf32>,
      %cst_82 = arith.constant 0.000000e+00 : f32
      %237 = vector.broadcast %cst_82 : f32 to vector<8x64xf32>
      %c0_83 = arith.constant 0 : index
      %c0_84 = arith.constant 0 : index
      %238 = vector.load %arg15[%c0_83, %c0_84] : memref<16x64xf32, #tpu.memory_space<vmem>>, vector<8x64xf32>
      tpu.vector_store %arg15[%c0_83, %c0_84], %237 {strides = array<i32>} : memref<16x64xf32, #tpu.memory_space<vmem>>, vector<8x64xf32>,
    } else {
    }
    %c0 = arith.constant 0 : index
    %c0_1 = arith.constant 0 : index
    %c0_2 = arith.constant 0 : index
    %3 = vector.load %arg2[%c0, %c0_1, %c0_2] : memref<1x8x32xf32, #tpu.memory_space<vmem>>, vector<1x8x32xf32>
    %4 = vector.shape_cast %3 : vector<1x8x32xf32> to vector<8x32xf32>
    %5 = arith.truncf %4 : vector<8x32xf32> to vector<8x32xbf16>
    %c0_3 = arith.constant 0 : index
    %c0_4 = arith.constant 0 : index
    %6 = vector.load %arg3[%c0_3, %c0_4] : memref<32x64xbf16, #tpu.memory_space<vmem>>, vector<32x64xbf16>
    %cst = arith.constant dense<0.000000e+00> : vector<8x64xf32>
    %7 = tpu.matmul %5, %6, %cst {dimension_numbers = #tpu.dot_dimension_numbers<[1], [0], [0], [1], [0, 0, 1, 1], [], []>} : vector<8x32xbf16>, vector<32x64xbf16>, vector<8x64xf32> -> vector<8x64xf32>
    %c0_5 = arith.constant 0 : index
    %c0_6 = arith.constant 0 : index
    %8 = vector.load %arg4[%c0_5, %c0_6] : memref<32x64xbf16, #tpu.memory_space<vmem>>, vector<32x64xbf16>
    %cst_7 = arith.constant dense<0.000000e+00> : vector<8x64xf32>
    %9 = tpu.matmul %5, %8, %cst_7 {dimension_numbers = #tpu.dot_dimension_numbers<[1], [0], [0], [1], [0, 0, 1, 1], [], []>} : vector<8x32xbf16>, vector<32x64xbf16>, vector<8x64xf32> -> vector<8x64xf32>
    %10 = arith.negf %9 : vector<8x64xf32>
    %11 = math.exp %10 : vector<8x64xf32>
    %cst_8 = arith.constant 1.000000e+00 : f32
    %12 = vector.broadcast %cst_8 : f32 to vector<8x64xf32>
    %13 = arith.addf %12, %11 : vector<8x64xf32>
    %14 = arith.divf %12, %13 : vector<8x64xf32>
    %15 = arith.mulf %9, %14 : vector<8x64xf32>
    %c0_9 = arith.constant 0 : index
    %c0_10 = arith.constant 0 : index
    %16 = vector.load %arg18[%c0_9, %c0_10] : memref<8x64xf32, #tpu.memory_space<vmem>>, vector<8x64xf32>
    tpu.vector_store %arg18[%c0_9, %c0_10], %15 {strides = array<i32>} : memref<8x64xf32, #tpu.memory_space<vmem>>, vector<8x64xf32>,
    %c8 = arith.constant 8 : index
    %c0_11 = arith.constant 0 : index
    %17 = vector.load %arg15[%c8, %c0_11] : memref<16x64xf32, #tpu.memory_space<vmem>>, vector<8x64xf32>
    tpu.vector_store %arg15[%c8, %c0_11], %7 {strides = array<i32>} : memref<16x64xf32, #tpu.memory_space<vmem>>, vector<8x64xf32>,
    %c3 = arith.constant 3 : index
    %c0_12 = arith.constant 0 : index
    %18 = vector.load %arg5[%c3, %c0_12] : memref<4x64xf32, #tpu.memory_space<vmem>>, vector<1x64xf32>
    %19 = vector.broadcast %18 : vector<1x64xf32> to vector<8x64xf32>
    %20 = arith.mulf %7, %19 : vector<8x64xf32>
    %c5 = arith.constant 5 : index
    %c0_13 = arith.constant 0 : index
    %21 = vector.load %arg15[%c5, %c0_13] : memref<16x64xf32, #tpu.memory_space<vmem>>, vector<8x64xf32>
    %c0_14 = arith.constant 0 : index
    %c0_15 = arith.constant 0 : index
    %22 = vector.load %arg5[%c0_14, %c0_15] : memref<4x64xf32, #tpu.memory_space<vmem>>, vector<1x64xf32>
    %23 = vector.broadcast %22 : vector<1x64xf32> to vector<8x64xf32>
    %24 = arith.mulf %21, %23 : vector<8x64xf32>
    %25 = arith.addf %20, %24 : vector<8x64xf32>
    %c6 = arith.constant 6 : index
    %c0_16 = arith.constant 0 : index
    %26 = vector.load %arg15[%c6, %c0_16] : memref<16x64xf32, #tpu.memory_space<vmem>>, vector<8x64xf32>
    %c1 = arith.constant 1 : index
    %c0_17 = arith.constant 0 : index
    %27 = vector.load %arg5[%c1, %c0_17] : memref<4x64xf32, #tpu.memory_space<vmem>>, vector<1x64xf32>
    %28 = vector.broadcast %27 : vector<1x64xf32> to vector<8x64xf32>
    %29 = arith.mulf %26, %28 : vector<8x64xf32>
    %30 = arith.addf %25, %29 : vector<8x64xf32>
    %c7 = arith.constant 7 : index
    %c0_18 = arith.constant 0 : index
    %31 = vector.load %arg15[%c7, %c0_18] : memref<16x64xf32, #tpu.memory_space<vmem>>, vector<8x64xf32>
    %c2 = arith.constant 2 : index
    %c0_19 = arith.constant 0 : index
    %32 = vector.load %arg5[%c2, %c0_19] : memref<4x64xf32, #tpu.memory_space<vmem>>, vector<1x64xf32>
    %33 = vector.broadcast %32 : vector<1x64xf32> to vector<8x64xf32>
    %34 = arith.mulf %31, %33 : vector<8x64xf32>
    %35 = arith.addf %30, %34 : vector<8x64xf32>
    %c0_20 = arith.constant 0 : index
    %c0_21 = arith.constant 0 : index
    %36 = vector.load %arg6[%c0_20, %c0_21] : memref<1x64xf32, #tpu.memory_space<vmem>>, vector<1x64xf32>
    %37 = vector.broadcast %36 : vector<1x64xf32> to vector<8x64xf32>
    %38 = arith.addf %35, %37 : vector<8x64xf32>
    %39 = arith.negf %38 : vector<8x64xf32>
    %40 = math.exp %39 : vector<8x64xf32>
    %cst_22 = arith.constant 1.000000e+00 : f32
    %41 = vector.broadcast %cst_22 : f32 to vector<8x64xf32>
    %42 = arith.addf %41, %40 : vector<8x64xf32>
    %43 = arith.divf %41, %42 : vector<8x64xf32>
    %44 = arith.mulf %38, %43 : vector<8x64xf32>
    %c0_23 = arith.constant 0 : index
    %c0_24 = arith.constant 0 : index
    %45 = vector.load %arg16[%c0_23, %c0_24] : memref<8x64xf32, #tpu.memory_space<vmem>>, vector<8x64xf32>
    tpu.vector_store %arg16[%c0_23, %c0_24], %44 {strides = array<i32>} : memref<8x64xf32, #tpu.memory_space<vmem>>, vector<8x64xf32>,
    %c8_25 = arith.constant 8 : index
    %c0_26 = arith.constant 0 : index
    %46 = vector.load %arg15[%c8_25, %c0_26] : memref<16x64xf32, #tpu.memory_space<vmem>>, vector<8x64xf32>
    %c0_27 = arith.constant 0 : index
    %c0_28 = arith.constant 0 : index
    %47 = vector.load %arg15[%c0_27, %c0_28] : memref<16x64xf32, #tpu.memory_space<vmem>>, vector<8x64xf32>
    tpu.vector_store %arg15[%c0_27, %c0_28], %46 {strides = array<i32>} : memref<16x64xf32, #tpu.memory_space<vmem>>, vector<8x64xf32>,
    %48 = arith.truncf %44 : vector<8x64xf32> to vector<8x64xbf16>
    %c0_29 = arith.constant 0 : index
    %c0_30 = arith.constant 0 : index
    %49 = vector.load %arg8[%c0_29, %c0_30] : memref<64x32xbf16, #tpu.memory_space<vmem>>, vector<64x32xbf16>
    %cst_31 = arith.constant dense<0.000000e+00> : vector<8x32xf32>
    %50 = tpu.matmul %48, %49, %cst_31 {dimension_numbers = #tpu.dot_dimension_numbers<[1], [0], [0], [1], [0, 0, 1, 1], [], []>} : vector<8x64xbf16>, vector<64x32xbf16>, vector<8x32xf32> -> vector<8x32xf32>
    %c0_32 = arith.constant 0 : index
    %c0_33 = arith.constant 0 : index
    %51 = vector.load %arg7[%c0_32, %c0_33] : memref<64x128xbf16, #tpu.memory_space<vmem>>, vector<64x128xbf16>
    %cst_34 = arith.constant dense<0.000000e+00> : vector<8x128xf32>
    %52 = tpu.matmul %48, %51, %cst_34 {dimension_numbers = #tpu.dot_dimension_numbers<[1], [0], [0], [1], [0, 0, 1, 1], [], []>} : vector<8x64xbf16>, vector<64x128xbf16>, vector<8x128xf32> -> vector<8x128xf32>
    %53 = arith.truncf %52 : vector<8x128xf32> to vector<8x128xbf16>
    %c0_35 = arith.constant 0 : index
    %c0_36 = arith.constant 0 : index
    %54 = vector.load %arg9[%c0_35, %c0_36] : memref<128x64xbf16, #tpu.memory_space<vmem>>, vector<128x64xbf16>
    %cst_37 = arith.constant dense<0.000000e+00> : vector<8x64xf32>
    %55 = tpu.matmul %53, %54, %cst_37 {dimension_numbers = #tpu.dot_dimension_numbers<[1], [0], [0], [1], [0, 0, 1, 1], [], []>} : vector<8x128xbf16>, vector<128x64xbf16>, vector<8x64xf32> -> vector<8x64xf32>
    %c0_38 = arith.constant 0 : index
    %c0_39 = arith.constant 0 : index
    %56 = vector.load %arg10[%c0_38, %c0_39] : memref<1x64xf32, #tpu.memory_space<vmem>>, vector<1x64xf32>
    %57 = vector.broadcast %56 : vector<1x64xf32> to vector<8x64xf32>
    %58 = arith.addf %55, %57 : vector<8x64xf32>
    %cst_40 = arith.constant 0.000000e+00 : f32
    %59 = vector.broadcast %cst_40 : f32 to vector<8x64xf32>
    %60 = arith.maximumf %58, %59 : vector<8x64xf32>
    %61 = math.absf %58 : vector<8x64xf32>
    %cst_41 = arith.constant 0.000000e+00 : f32
    %62 = vector.broadcast %cst_41 : f32 to vector<8x64xf32>
    %63 = arith.subf %62, %61 : vector<8x64xf32>
    %64 = math.exp %63 : vector<8x64xf32>
    %65 = math.log1p %64 : vector<8x64xf32>
    %66 = arith.addf %60, %65 : vector<8x64xf32>
    %c0_42 = arith.constant 0 : index
    %c0_43 = arith.constant 0 : index
    %67 = vector.load %arg17[%c0_42, %c0_43] : memref<8x64xf32, #tpu.memory_space<vmem>>, vector<8x64xf32>
    tpu.vector_store %arg17[%c0_42, %c0_43], %66 {strides = array<i32>} : memref<8x64xf32, #tpu.memory_space<vmem>>, vector<8x64xf32>,
    %68 = tpu.iota {dimensions = array<i32: 0>} : vector<32x32xi32>
    %69 = tpu.iota {dimensions = array<i32: 1>} : vector<32x32xi32>
    %70 = arith.cmpi eq, %68, %69 : vector<32x32xi32>
    %71 = arith.extui %70 : vector<32x32xi1> to vector<32x32xi32>
    %72 = arith.sitofp %71 : vector<32x32xi32> to vector<32x32xf32>
    %cst_44 = arith.constant dense<0.000000e+00> : vector<32x8xf32>
    %73 = tpu.matmul %72, %50, %cst_44 {dimension_numbers = #tpu.dot_dimension_numbers<[1], [1], [0], [0], [0, 0, 1, 0], [], []>} : vector<32x32xf32>, vector<8x32xf32>, vector<32x8xf32> -> vector<32x8xf32>
    %c0_45 = arith.constant 0 : index
    %c0_46 = arith.constant 0 : index
    %c0_47 = arith.constant 0 : index
    %74 = vector.load %arg20[%c0_45, %c0_46, %c0_47] : memref<1x32x8xf32, #tpu.memory_space<vmem>>, vector<1x32x8xf32>
    %75 = vector.shape_cast %74 : vector<1x32x8xf32> to vector<32x8xf32>
    %76 = vector.shape_cast %73 : vector<32x8xf32> to vector<1x32x8xf32>
    tpu.vector_store %arg20[%c0_45, %c0_46, %c0_47], %76 {strides = array<i32>} : memref<1x32x8xf32, #tpu.memory_space<vmem>>, vector<1x32x8xf32>,
    %c0_i32_48 = arith.constant 0 : i32
    %c8_i32 = arith.constant 8 : i32
    %77 = arith.muli %c0_i32_48, %c8_i32 : i32
    %78 = tpu.assume_multiple %77, 8 : i32
    %79 = arith.index_cast %78 : i32 to index
    %c0_49 = arith.constant 0 : index
    %80 = vector.load %arg17[%79, %c0_49] : memref<8x64xf32, #tpu.memory_space<vmem>>, vector<8x64xf32>
    %81 = arith.index_cast %78 : i32 to index
    %c0_50 = arith.constant 0 : index
    %82 = vector.load %arg16[%81, %c0_50] : memref<8x64xf32, #tpu.memory_space<vmem>>, vector<8x64xf32>
    %83 = arith.index_cast %78 : i32 to index
    %c0_51 = arith.constant 0 : index
    %84 = vector.load %arg18[%83, %c0_51] : memref<8x64xf32, #tpu.memory_space<vmem>>, vector<8x64xf32>
    %85 = arith.mulf %80, %82 : vector<8x64xf32>
    %c0_52 = arith.constant 0 : index
    %c0_53 = arith.constant 0 : index
    %86 = vector.load %arg11[%c0_52, %c0_53] : memref<16x64xf32, #tpu.memory_space<vmem>>, vector<16x64xf32>
    %87 = vector.extract_strided_slice %80 {offsets = [0, 0], sizes = [1, 64], strides = [1, 1]} : vector<8x64xf32> to vector<1x64xf32>
    %88 = vector.broadcast %87 : vector<1x64xf32> to vector<16x64xf32>
    %89 = arith.mulf %86, %88 : vector<16x64xf32>
    %90 = math.exp %89 : vector<16x64xf32>
    %91 = vector.extract_strided_slice %80 {offsets = [1, 0], sizes = [1, 64], strides = [1, 1]} : vector<8x64xf32> to vector<1x64xf32>
    %92 = vector.broadcast %91 : vector<1x64xf32> to vector<16x64xf32>
    %93 = arith.mulf %86, %92 : vector<16x64xf32>
    %94 = math.exp %93 : vector<16x64xf32>
    %95 = vector.extract_strided_slice %80 {offsets = [2, 0], sizes = [1, 64], strides = [1, 1]} : vector<8x64xf32> to vector<1x64xf32>
    %96 = vector.broadcast %95 : vector<1x64xf32> to vector<16x64xf32>
    %97 = arith.mulf %86, %96 : vector<16x64xf32>
    %98 = math.exp %97 : vector<16x64xf32>
    %99 = vector.extract_strided_slice %80 {offsets = [3, 0], sizes = [1, 64], strides = [1, 1]} : vector<8x64xf32> to vector<1x64xf32>
    %100 = vector.broadcast %99 : vector<1x64xf32> to vector<16x64xf32>
    %101 = arith.mulf %86, %100 : vector<16x64xf32>
    %102 = math.exp %101 : vector<16x64xf32>
    %103 = vector.extract_strided_slice %80 {offsets = [4, 0], sizes = [1, 64], strides = [1, 1]} : vector<8x64xf32> to vector<1x64xf32>
    %104 = vector.broadcast %103 : vector<1x64xf32> to vector<16x64xf32>
    %105 = arith.mulf %86, %104 : vector<16x64xf32>
    %106 = math.exp %105 : vector<16x64xf32>
    %107 = vector.extract_strided_slice %80 {offsets = [5, 0], sizes = [1, 64], strides = [1, 1]} : vector<8x64xf32> to vector<1x64xf32>
    %108 = vector.broadcast %107 : vector<1x64xf32> to vector<16x64xf32>
    %109 = arith.mulf %86, %108 : vector<16x64xf32>
    %110 = math.exp %109 : vector<16x64xf32>
    %111 = vector.extract_strided_slice %80 {offsets = [6, 0], sizes = [1, 64], strides = [1, 1]} : vector<8x64xf32> to vector<1x64xf32>
    %112 = vector.broadcast %111 : vector<1x64xf32> to vector<16x64xf32>
    %113 = arith.mulf %86, %112 : vector<16x64xf32>
    %114 = math.exp %113 : vector<16x64xf32>
    %115 = vector.extract_strided_slice %80 {offsets = [7, 0], sizes = [1, 64], strides = [1, 1]} : vector<8x64xf32> to vector<1x64xf32>
    %116 = vector.broadcast %115 : vector<1x64xf32> to vector<16x64xf32>
    %117 = arith.mulf %86, %116 : vector<16x64xf32>
    %118 = math.exp %117 : vector<16x64xf32>
    %119 = arith.index_cast %c0_i32_48 : i32 to index
    %c0_54 = arith.constant 0 : index
    %c0_55 = arith.constant 0 : index
    %120 = vector.load %arg20[%119, %c0_54, %c0_55] : memref<1x32x8xf32, #tpu.memory_space<vmem>>, vector<1x32x8xf32>
    %121 = vector.shape_cast %120 : vector<1x32x8xf32> to vector<32x8xf32>
    %c0_56 = arith.constant 0 : index
    %c0_57 = arith.constant 0 : index
    %122 = vector.load %arg21[%c0_56, %c0_57] : memref<16x64xf32, #tpu.memory_space<vmem>>, vector<16x64xf32>
    %123 = vector.extract_strided_slice %121 {offsets = [0, 0], sizes = [16, 1], strides = [1, 1]} : vector<32x8xf32> to vector<16x1xf32>
    %124 = vector.extract_strided_slice %121 {offsets = [16, 0], sizes = [16, 1], strides = [1, 1]} : vector<32x8xf32> to vector<16x1xf32>
    %125 = arith.mulf %90, %122 : vector<16x64xf32>
    %126 = vector.extract_strided_slice %85 {offsets = [0, 0], sizes = [1, 64], strides = [1, 1]} : vector<8x64xf32> to vector<1x64xf32>
    %127 = vector.broadcast %123 : vector<16x1xf32> to vector<16x64xf32>
    %128 = vector.broadcast %126 : vector<1x64xf32> to vector<16x64xf32>
    %129 = arith.mulf %127, %128 : vector<16x64xf32>
    %130 = arith.addf %125, %129 : vector<16x64xf32>
    %131 = vector.broadcast %124 : vector<16x1xf32> to vector<16x64xf32>
    %132 = arith.mulf %131, %130 : vector<16x64xf32>
    %cst_58 = arith.constant dense<0.000000e+00> : vector<64xf32>
    %133 = vector.multi_reduction <add>, %132, %cst_58 [0] : vector<16x64xf32> to vector<64xf32>
    %134 = vector.shape_cast %133 : vector<64xf32> to vector<1x64xf32>
    %135 = vector.extract_strided_slice %121 {offsets = [0, 1], sizes = [16, 1], strides = [1, 1]} : vector<32x8xf32> to vector<16x1xf32>
    %136 = vector.extract_strided_slice %121 {offsets = [16, 1], sizes = [16, 1], strides = [1, 1]} : vector<32x8xf32> to vector<16x1xf32>
    %137 = arith.mulf %94, %130 : vector<16x64xf32>
    %138 = vector.extract_strided_slice %85 {offsets = [1, 0], sizes = [1, 64], strides = [1, 1]} : vector<8x64xf32> to vector<1x64xf32>
    %139 = vector.broadcast %135 : vector<16x1xf32> to vector<16x64xf32>
    %140 = vector.broadcast %138 : vector<1x64xf32> to vector<16x64xf32>
    %141 = arith.mulf %139, %140 : vector<16x64xf32>
    %142 = arith.addf %137, %141 : vector<16x64xf32>
    %143 = vector.broadcast %136 : vector<16x1xf32> to vector<16x64xf32>
    %144 = arith.mulf %143, %142 : vector<16x64xf32>
    %cst_59 = arith.constant dense<0.000000e+00> : vector<64xf32>
    %145 = vector.multi_reduction <add>, %144, %cst_59 [0] : vector<16x64xf32> to vector<64xf32>
    %146 = vector.shape_cast %145 : vector<64xf32> to vector<1x64xf32>
    %147 = vector.extract_strided_slice %121 {offsets = [0, 2], sizes = [16, 1], strides = [1, 1]} : vector<32x8xf32> to vector<16x1xf32>
    %148 = vector.extract_strided_slice %121 {offsets = [16, 2], sizes = [16, 1], strides = [1, 1]} : vector<32x8xf32> to vector<16x1xf32>
    %149 = arith.mulf %98, %142 : vector<16x64xf32>
    %150 = vector.extract_strided_slice %85 {offsets = [2, 0], sizes = [1, 64], strides = [1, 1]} : vector<8x64xf32> to vector<1x64xf32>
    %151 = vector.broadcast %147 : vector<16x1xf32> to vector<16x64xf32>
    %152 = vector.broadcast %150 : vector<1x64xf32> to vector<16x64xf32>
    %153 = arith.mulf %151, %152 : vector<16x64xf32>
    %154 = arith.addf %149, %153 : vector<16x64xf32>
    %155 = vector.broadcast %148 : vector<16x1xf32> to vector<16x64xf32>
    %156 = arith.mulf %155, %154 : vector<16x64xf32>
    %cst_60 = arith.constant dense<0.000000e+00> : vector<64xf32>
    %157 = vector.multi_reduction <add>, %156, %cst_60 [0] : vector<16x64xf32> to vector<64xf32>
    %158 = vector.shape_cast %157 : vector<64xf32> to vector<1x64xf32>
    %159 = vector.extract_strided_slice %121 {offsets = [0, 3], sizes = [16, 1], strides = [1, 1]} : vector<32x8xf32> to vector<16x1xf32>
    %160 = vector.extract_strided_slice %121 {offsets = [16, 3], sizes = [16, 1], strides = [1, 1]} : vector<32x8xf32> to vector<16x1xf32>
    %161 = arith.mulf %102, %154 : vector<16x64xf32>
    %162 = vector.extract_strided_slice %85 {offsets = [3, 0], sizes = [1, 64], strides = [1, 1]} : vector<8x64xf32> to vector<1x64xf32>
    %163 = vector.broadcast %159 : vector<16x1xf32> to vector<16x64xf32>
    %164 = vector.broadcast %162 : vector<1x64xf32> to vector<16x64xf32>
    %165 = arith.mulf %163, %164 : vector<16x64xf32>
    %166 = arith.addf %161, %165 : vector<16x64xf32>
    %167 = vector.broadcast %160 : vector<16x1xf32> to vector<16x64xf32>
    %168 = arith.mulf %167, %166 : vector<16x64xf32>
    %cst_61 = arith.constant dense<0.000000e+00> : vector<64xf32>
    %169 = vector.multi_reduction <add>, %168, %cst_61 [0] : vector<16x64xf32> to vector<64xf32>
    %170 = vector.shape_cast %169 : vector<64xf32> to vector<1x64xf32>
    %171 = vector.extract_strided_slice %121 {offsets = [0, 4], sizes = [16, 1], strides = [1, 1]} : vector<32x8xf32> to vector<16x1xf32>
    %172 = vector.extract_strided_slice %121 {offsets = [16, 4], sizes = [16, 1], strides = [1, 1]} : vector<32x8xf32> to vector<16x1xf32>
    %173 = arith.mulf %106, %166 : vector<16x64xf32>
    %174 = vector.extract_strided_slice %85 {offsets = [4, 0], sizes = [1, 64], strides = [1, 1]} : vector<8x64xf32> to vector<1x64xf32>
    %175 = vector.broadcast %171 : vector<16x1xf32> to vector<16x64xf32>
    %176 = vector.broadcast %174 : vector<1x64xf32> to vector<16x64xf32>
    %177 = arith.mulf %175, %176 : vector<16x64xf32>
    %178 = arith.addf %173, %177 : vector<16x64xf32>
    %179 = vector.broadcast %172 : vector<16x1xf32> to vector<16x64xf32>
    %180 = arith.mulf %179, %178 : vector<16x64xf32>
    %cst_62 = arith.constant dense<0.000000e+00> : vector<64xf32>
    %181 = vector.multi_reduction <add>, %180, %cst_62 [0] : vector<16x64xf32> to vector<64xf32>
    %182 = vector.shape_cast %181 : vector<64xf32> to vector<1x64xf32>
    %183 = vector.extract_strided_slice %121 {offsets = [0, 5], sizes = [16, 1], strides = [1, 1]} : vector<32x8xf32> to vector<16x1xf32>
    %184 = vector.extract_strided_slice %121 {offsets = [16, 5], sizes = [16, 1], strides = [1, 1]} : vector<32x8xf32> to vector<16x1xf32>
    %185 = arith.mulf %110, %178 : vector<16x64xf32>
    %186 = vector.extract_strided_slice %85 {offsets = [5, 0], sizes = [1, 64], strides = [1, 1]} : vector<8x64xf32> to vector<1x64xf32>
    %187 = vector.broadcast %183 : vector<16x1xf32> to vector<16x64xf32>
    %188 = vector.broadcast %186 : vector<1x64xf32> to vector<16x64xf32>
    %189 = arith.mulf %187, %188 : vector<16x64xf32>
    %190 = arith.addf %185, %189 : vector<16x64xf32>
    %191 = vector.broadcast %184 : vector<16x1xf32> to vector<16x64xf32>
    %192 = arith.mulf %191, %190 : vector<16x64xf32>
    %cst_63 = arith.constant dense<0.000000e+00> : vector<64xf32>
    %193 = vector.multi_reduction <add>, %192, %cst_63 [0] : vector<16x64xf32> to vector<64xf32>
    %194 = vector.shape_cast %193 : vector<64xf32> to vector<1x64xf32>
    %195 = vector.extract_strided_slice %121 {offsets = [0, 6], sizes = [16, 1], strides = [1, 1]} : vector<32x8xf32> to vector<16x1xf32>
    %196 = vector.extract_strided_slice %121 {offsets = [16, 6], sizes = [16, 1], strides = [1, 1]} : vector<32x8xf32> to vector<16x1xf32>
    %197 = arith.mulf %114, %190 : vector<16x64xf32>
    %198 = vector.extract_strided_slice %85 {offsets = [6, 0], sizes = [1, 64], strides = [1, 1]} : vector<8x64xf32> to vector<1x64xf32>
    %199 = vector.broadcast %195 : vector<16x1xf32> to vector<16x64xf32>
    %200 = vector.broadcast %198 : vector<1x64xf32> to vector<16x64xf32>
    %201 = arith.mulf %199, %200 : vector<16x64xf32>
    %202 = arith.addf %197, %201 : vector<16x64xf32>
    %203 = vector.broadcast %196 : vector<16x1xf32> to vector<16x64xf32>
    %204 = arith.mulf %203, %202 : vector<16x64xf32>
    %cst_64 = arith.constant dense<0.000000e+00> : vector<64xf32>
    %205 = vector.multi_reduction <add>, %204, %cst_64 [0] : vector<16x64xf32> to vector<64xf32>
    %206 = vector.shape_cast %205 : vector<64xf32> to vector<1x64xf32>
    %207 = vector.extract_strided_slice %121 {offsets = [0, 7], sizes = [16, 1], strides = [1, 1]} : vector<32x8xf32> to vector<16x1xf32>
    %208 = vector.extract_strided_slice %121 {offsets = [16, 7], sizes = [16, 1], strides = [1, 1]} : vector<32x8xf32> to vector<16x1xf32>
    %209 = arith.mulf %118, %202 : vector<16x64xf32>
    %210 = vector.extract_strided_slice %85 {offsets = [7, 0], sizes = [1, 64], strides = [1, 1]} : vector<8x64xf32> to vector<1x64xf32>
    %211 = vector.broadcast %207 : vector<16x1xf32> to vector<16x64xf32>
    %212 = vector.broadcast %210 : vector<1x64xf32> to vector<16x64xf32>
    %213 = arith.mulf %211, %212 : vector<16x64xf32>
    %214 = arith.addf %209, %213 : vector<16x64xf32>
    %215 = vector.broadcast %208 : vector<16x1xf32> to vector<16x64xf32>
    %216 = arith.mulf %215, %214 : vector<16x64xf32>
    %cst_65 = arith.constant dense<0.000000e+00> : vector<64xf32>
    %217 = vector.multi_reduction <add>, %216, %cst_65 [0] : vector<16x64xf32> to vector<64xf32>
    %218 = vector.shape_cast %217 : vector<64xf32> to vector<1x64xf32>
    %c0_66 = arith.constant 0 : index
    %c0_67 = arith.constant 0 : index
    %219 = vector.load %arg21[%c0_66, %c0_67] : memref<16x64xf32, #tpu.memory_space<vmem>>, vector<16x64xf32>
    tpu.vector_store %arg21[%c0_66, %c0_67], %214 {strides = array<i32>} : memref<16x64xf32, #tpu.memory_space<vmem>>, vector<16x64xf32>,
    %220 = tpu.concatenate %134, %146, %158, %170, %182, %194, %206, %218 in 0 : vector<1x64xf32>, vector<1x64xf32>, vector<1x64xf32>, vector<1x64xf32>, vector<1x64xf32>, vector<1x64xf32>, vector<1x64xf32>, vector<1x64xf32> -> vector<8x64xf32>
    %c0_68 = arith.constant 0 : index
    %c0_69 = arith.constant 0 : index
    %221 = vector.load %arg12[%c0_68, %c0_69] : memref<1x64xf32, #tpu.memory_space<vmem>>, vector<1x64xf32>
    %222 = vector.broadcast %221 : vector<1x64xf32> to vector<8x64xf32>
    %223 = arith.mulf %222, %82 : vector<8x64xf32>
    %224 = arith.addf %220, %223 : vector<8x64xf32>
    %225 = arith.mulf %224, %84 : vector<8x64xf32>
    %226 = arith.index_cast %78 : i32 to index
    %c0_70 = arith.constant 0 : index
    %227 = vector.load %arg19[%226, %c0_70] : memref<8x64xf32, #tpu.memory_space<vmem>>, vector<8x64xf32>
    tpu.vector_store %arg19[%226, %c0_70], %225 {strides = array<i32>} : memref<8x64xf32, #tpu.memory_space<vmem>>, vector<8x64xf32>,
    %c1_i32 = arith.constant 1 : i32
    %c0_71 = arith.constant 0 : index
    %c0_72 = arith.constant 0 : index
    %228 = vector.load %arg19[%c0_71, %c0_72] : memref<8x64xf32, #tpu.memory_space<vmem>>, vector<8x64xf32>
    %229 = arith.truncf %228 : vector<8x64xf32> to vector<8x64xbf16>
    %c0_73 = arith.constant 0 : index
    %c0_74 = arith.constant 0 : index
    %230 = vector.load %arg13[%c0_73, %c0_74] : memref<64x32xbf16, #tpu.memory_space<vmem>>, vector<64x32xbf16>
    %cst_75 = arith.constant dense<0.000000e+00> : vector<8x32xf32>
    %231 = tpu.matmul %229, %230, %cst_75 {dimension_numbers = #tpu.dot_dimension_numbers<[1], [0], [0], [1], [0, 0, 1, 1], [], []>} : vector<8x64xbf16>, vector<64x32xbf16>, vector<8x32xf32> -> vector<8x32xf32>
    %c0_76 = arith.constant 0 : index
    %c0_77 = arith.constant 0 : index
    %c0_78 = arith.constant 0 : index
    %232 = vector.load %arg14[%c0_76, %c0_77, %c0_78] : memref<1x8x32xf32, #tpu.memory_space<vmem>>, vector<1x8x32xf32>
    %233 = vector.shape_cast %232 : vector<1x8x32xf32> to vector<8x32xf32>
    %234 = vector.shape_cast %231 : vector<8x32xf32> to vector<1x8x32xf32>
    tpu.vector_store %arg14[%c0_76, %c0_77, %c0_78], %234 {strides = array<i32>} : memref<1x8x32xf32, #tpu.memory_space<vmem>>, vector<1x8x32xf32>,
    return
  }
  func.func @transform_0(%arg0: i32, %arg1: i32) -> (i32, i32, i32) {
    %c0_i32 = arith.constant 0 : i32
    %c0_i32_0 = arith.constant 0 : i32
    return %arg0, %arg1, %c0_i32 : i32, i32, i32
  }
  func.func @transform_1(%arg0: i32, %arg1: i32) -> (i32, i32) {
    %c0_i32 = arith.constant 0 : i32
    %c0_i32_0 = arith.constant 0 : i32
    %c0_i32_1 = arith.constant 0 : i32
    return %c0_i32, %c0_i32_0 : i32, i32
  }
  func.func @transform_2(%arg0: i32, %arg1: i32) -> (i32, i32) {
    %c0_i32 = arith.constant 0 : i32
    %c0_i32_0 = arith.constant 0 : i32
    %c0_i32_1 = arith.constant 0 : i32
    return %c0_i32, %c0_i32_0 : i32, i32
  }
  func.func @transform_3(%arg0: i32, %arg1: i32) -> (i32, i32) {
    %c0_i32 = arith.constant 0 : i32
    %c0_i32_0 = arith.constant 0 : i32
    %c0_i32_1 = arith.constant 0 : i32
    return %c0_i32, %c0_i32_0 : i32, i32
  }
  func.func @transform_4(%arg0: i32, %arg1: i32) -> (i32, i32) {
    %c0_i32 = arith.constant 0 : i32
    %c0_i32_0 = arith.constant 0 : i32
    %c0_i32_1 = arith.constant 0 : i32
    return %c0_i32, %c0_i32_0 : i32, i32
  }
  func.func @transform_5(%arg0: i32, %arg1: i32) -> (i32, i32) {
    %c0_i32 = arith.constant 0 : i32
    %c0_i32_0 = arith.constant 0 : i32
    %c0_i32_1 = arith.constant 0 : i32
    return %c0_i32, %c0_i32_0 : i32, i32
  }
  func.func @transform_6(%arg0: i32, %arg1: i32) -> (i32, i32) {
    %c0_i32 = arith.constant 0 : i32
    %c0_i32_0 = arith.constant 0 : i32
    %c0_i32_1 = arith.constant 0 : i32
    return %c0_i32, %c0_i32_0 : i32, i32
  }
  func.func @transform_7(%arg0: i32, %arg1: i32) -> (i32, i32) {
    %c0_i32 = arith.constant 0 : i32
    %c0_i32_0 = arith.constant 0 : i32
    %c0_i32_1 = arith.constant 0 : i32
    return %c0_i32, %c0_i32_0 : i32, i32
  }
  func.func @transform_8(%arg0: i32, %arg1: i32) -> (i32, i32) {
    %c0_i32 = arith.constant 0 : i32
    %c0_i32_0 = arith.constant 0 : i32
    %c0_i32_1 = arith.constant 0 : i32
    return %c0_i32, %c0_i32_0 : i32, i32
  }
  func.func @transform_9(%arg0: i32, %arg1: i32) -> (i32, i32) {
    %c0_i32 = arith.constant 0 : i32
    %c0_i32_0 = arith.constant 0 : i32
    %c0_i32_1 = arith.constant 0 : i32
    return %c0_i32, %c0_i32_0 : i32, i32
  }
  func.func @transform_10(%arg0: i32, %arg1: i32) -> (i32, i32) {
    %c0_i32 = arith.constant 0 : i32
    %c0_i32_0 = arith.constant 0 : i32
    %c0_i32_1 = arith.constant 0 : i32
    return %c0_i32, %c0_i32_0 : i32, i32
  }
  func.func @transform_11(%arg0: i32, %arg1: i32) -> (i32, i32) {
    %c0_i32 = arith.constant 0 : i32
    %c0_i32_0 = arith.constant 0 : i32
    %c0_i32_1 = arith.constant 0 : i32
    return %c0_i32, %c0_i32_0 : i32, i32
  }
  func.func @transform_12(%arg0: i32, %arg1: i32) -> (i32, i32, i32) {
    %c0_i32 = arith.constant 0 : i32
    %c0_i32_0 = arith.constant 0 : i32
    return %arg0, %arg1, %c0_i32 : i32, i32, i32
  }
}

module attributes {stable_mosaic.version = 11 : i64} {
  func.func @_mamba_kernel(%arg0: i32, %arg1: i32, %arg2: memref<1x8x32xf32, #tpu.memory_space<vmem>>, %arg3: memref<32x64xbf16, #tpu.memory_space<vmem>>, %arg4: memref<32x64xbf16, #tpu.memory_space<vmem>>, %arg5: memref<4x64xf32, #tpu.memory_space<vmem>>, %arg6: memref<1x64xf32, #tpu.memory_space<vmem>>, %arg7: memref<64x128xbf16, #tpu.memory_space<vmem>>, %arg8: memref<64x32xbf16, #tpu.memory_space<vmem>>, %arg9: memref<128x64xbf16, #tpu.memory_space<vmem>>, %arg10: memref<1x64xf32, #tpu.memory_space<vmem>>, %arg11: memref<16x64xf32, #tpu.memory_space<vmem>>, %arg12: memref<1x64xf32, #tpu.memory_space<vmem>>, %arg13: memref<64x32xbf16, #tpu.memory_space<vmem>>, %arg14: memref<1x8x32xf32, #tpu.memory_space<vmem>>, %arg15: memref<16x64xf32, #tpu.memory_space<vmem>>, %arg16: memref<8x64xf32, #tpu.memory_space<vmem>>, %arg17: memref<8x64xf32, #tpu.memory_space<vmem>>, %arg18: memref<8x64xf32, #tpu.memory_space<vmem>>, %arg19: memref<8x64xf32, #tpu.memory_space<vmem>>, %arg20: memref<1x32x8xf32, #tpu.memory_space<vmem>>, %arg21: memref<16x64xf32, #tpu.memory_space<vmem>>) attributes {dimension_semantics = [#tpu.dimension_semantics<parallel>, #tpu.dimension_semantics<arbitrary>], iteration_bounds = array<i64: 2, 3>, scalar_prefetch = 0 : i64, scratch_operands = 7 : i64, tpu.core_type = #tpu.core_type<tc>, window_params = [{transform_indices = @transform_0, window_bounds = array<i64: 1, 8, 32>}, {pipeline_mode = #tpu.pipeline_mode<synchronous>, transform_indices = @transform_1, window_bounds = array<i64: 32, 64>}, {pipeline_mode = #tpu.pipeline_mode<synchronous>, transform_indices = @transform_2, window_bounds = array<i64: 32, 64>}, {pipeline_mode = #tpu.pipeline_mode<synchronous>, transform_indices = @transform_3, window_bounds = array<i64: 4, 64>}, {pipeline_mode = #tpu.pipeline_mode<synchronous>, transform_indices = @transform_4, window_bounds = array<i64: 1, 64>}, {pipeline_mode = #tpu.pipeline_mode<synchronous>, transform_indices = @transform_5, window_bounds = array<i64: 64, 128>}, {pipeline_mode = #tpu.pipeline_mode<synchronous>, transform_indices = @transform_6, window_bounds = array<i64: 64, 32>}, {pipeline_mode = #tpu.pipeline_mode<synchronous>, transform_indices = @transform_7, window_bounds = array<i64: 128, 64>}, {pipeline_mode = #tpu.pipeline_mode<synchronous>, transform_indices = @transform_8, window_bounds = array<i64: 1, 64>}, {pipeline_mode = #tpu.pipeline_mode<synchronous>, transform_indices = @transform_9, window_bounds = array<i64: 16, 64>}, {pipeline_mode = #tpu.pipeline_mode<synchronous>, transform_indices = @transform_10, window_bounds = array<i64: 1, 64>}, {pipeline_mode = #tpu.pipeline_mode<synchronous>, transform_indices = @transform_11, window_bounds = array<i64: 64, 32>}, {transform_indices = @transform_12, window_bounds = array<i64: 1, 8, 32>}]} {
    %c0_i32 = arith.constant 0 : i32
    %0 = arith.cmpi eq, %arg1, %c0_i32 : i32
    %1 = arith.extui %0 : i1 to i32
    %c0_i32_0 = arith.constant 0 : i32
    %2 = arith.cmpi ne, %1, %c0_i32_0 : i32
    scf.if %2 {
      %cst_79 = arith.constant 0.000000e+00 : f32
      %235 = vector.broadcast %cst_79 : f32 to vector<16x64xf32>
      %c0_80 = arith.constant 0 : index
      %c0_81 = arith.constant 0 : index
      %236 = vector.load %arg21[%c0_80, %c0_81] : memref<16x64xf32, #tpu.memory_space<vmem>>, vector<16x64xf32>
      tpu.vector_store %arg21[%c0_80, %c0_81], %235 {strides = array<i32>} : memref<16x64xf32, #tpu.memory_space<vmem>>, vector<16x64xf32>,
      %cst_82 = arith.constant 0.000000e+00 : f32
      %237 = vector.broadcast %cst_82 : f32 to vector<8x64xf32>
      %c0_83 = arith.constant 0 : index
      %c0_84 = arith.constant 0 : index
      %238 = vector.load %arg15[%c0_83, %c0_84] : memref<16x64xf32, #tpu.memory_space<vmem>>, vector<8x64xf32>
      tpu.vector_store %arg15[%c0_83, %c0_84], %237 {strides = array<i32>} : memref<16x64xf32, #tpu.memory_space<vmem>>, vector<8x64xf32>,
    } else {
    }
    %c0 = arith.constant 0 : index
    %c0_1 = arith.constant 0 : index
    %c0_2 = arith.constant 0 : index
    %3 = vector.load %arg2[%c0, %c0_1, %c0_2] : memref<1x8x32xf32, #tpu.memory_space<vmem>>, vector<1x8x32xf32>
    %4 = vector.shape_cast %3 : vector<1x8x32xf32> to vector<8x32xf32>
    %5 = arith.truncf %4 : vector<8x32xf32> to vector<8x32xbf16>
    %c0_3 = arith.constant 0 : index
    %c0_4 = arith.constant 0 : index
    %6 = vector.load %arg3[%c0_3, %c0_4] : memref<32x64xbf16, #tpu.memory_space<vmem>>, vector<32x64xbf16>
    %cst = arith.constant dense<0.000000e+00> : vector<8x64xf32>
    %7 = tpu.matmul %5, %6, %cst {dimension_numbers = #tpu.dot_dimension_numbers<[1], [0], [0], [1], [0, 0, 1, 1], [], []>} : vector<8x32xbf16>, vector<32x64xbf16>, vector<8x64xf32> -> vector<8x64xf32>
    %c0_5 = arith.constant 0 : index
    %c0_6 = arith.constant 0 : index
    %8 = vector.load %arg4[%c0_5, %c0_6] : memref<32x64xbf16, #tpu.memory_space<vmem>>, vector<32x64xbf16>
    %cst_7 = arith.constant dense<0.000000e+00> : vector<8x64xf32>
    %9 = tpu.matmul %5, %8, %cst_7 {dimension_numbers = #tpu.dot_dimension_numbers<[1], [0], [0], [1], [0, 0, 1, 1], [], []>} : vector<8x32xbf16>, vector<32x64xbf16>, vector<8x64xf32> -> vector<8x64xf32>
    %10 = arith.negf %9 : vector<8x64xf32>
    %11 = math.exp %10 : vector<8x64xf32>
    %cst_8 = arith.constant 1.000000e+00 : f32
    %12 = vector.broadcast %cst_8 : f32 to vector<8x64xf32>
    %13 = arith.addf %12, %11 : vector<8x64xf32>
    %14 = arith.divf %12, %13 : vector<8x64xf32>
    %15 = arith.mulf %9, %14 : vector<8x64xf32>
    %c0_9 = arith.constant 0 : index
    %c0_10 = arith.constant 0 : index
    %16 = vector.load %arg18[%c0_9, %c0_10] : memref<8x64xf32, #tpu.memory_space<vmem>>, vector<8x64xf32>
    tpu.vector_store %arg18[%c0_9, %c0_10], %15 {strides = array<i32>} : memref<8x64xf32, #tpu.memory_space<vmem>>, vector<8x64xf32>,
    %c8 = arith.constant 8 : index
    %c0_11 = arith.constant 0 : index
    %17 = vector.load %arg15[%c8, %c0_11] : memref<16x64xf32, #tpu.memory_space<vmem>>, vector<8x64xf32>
    tpu.vector_store %arg15[%c8, %c0_11], %7 {strides = array<i32>} : memref<16x64xf32, #tpu.memory_space<vmem>>, vector<8x64xf32>,
    %c3 = arith.constant 3 : index
    %c0_12 = arith.constant 0 : index
    %18 = vector.load %arg5[%c3, %c0_12] : memref<4x64xf32, #tpu.memory_space<vmem>>, vector<1x64xf32>
    %19 = vector.broadcast %18 : vector<1x64xf32> to vector<8x64xf32>
    %20 = arith.mulf %7, %19 : vector<8x64xf32>
    %c5 = arith.constant 5 : index
    %c0_13 = arith.constant 0 : index
    %21 = vector.load %arg15[%c5, %c0_13] : memref<16x64xf32, #tpu.memory_space<vmem>>, vector<8x64xf32>
    %c0_14 = arith.constant 0 : index
    %c0_15 = arith.constant 0 : index
    %22 = vector.load %arg5[%c0_14, %c0_15] : memref<4x64xf32, #tpu.memory_space<vmem>>, vector<1x64xf32>
    %23 = vector.broadcast %22 : vector<1x64xf32> to vector<8x64xf32>
    %24 = arith.mulf %21, %23 : vector<8x64xf32>
    %25 = arith.addf %20, %24 : vector<8x64xf32>
    %c6 = arith.constant 6 : index
    %c0_16 = arith.constant 0 : index
    %26 = vector.load %arg15[%c6, %c0_16] : memref<16x64xf32, #tpu.memory_space<vmem>>, vector<8x64xf32>
    %c1 = arith.constant 1 : index
    %c0_17 = arith.constant 0 : index
    %27 = vector.load %arg5[%c1, %c0_17] : memref<4x64xf32, #tpu.memory_space<vmem>>, vector<1x64xf32>
    %28 = vector.broadcast %27 : vector<1x64xf32> to vector<8x64xf32>
    %29 = arith.mulf %26, %28 : vector<8x64xf32>
    %30 = arith.addf %25, %29 : vector<8x64xf32>
    %c7 = arith.constant 7 : index
    %c0_18 = arith.constant 0 : index
    %31 = vector.load %arg15[%c7, %c0_18] : memref<16x64xf32, #tpu.memory_space<vmem>>, vector<8x64xf32>
    %c2 = arith.constant 2 : index
    %c0_19 = arith.constant 0 : index
    %32 = vector.load %arg5[%c2, %c0_19] : memref<4x64xf32, #tpu.memory_space<vmem>>, vector<1x64xf32>
    %33 = vector.broadcast %32 : vector<1x64xf32> to vector<8x64xf32>
    %34 = arith.mulf %31, %33 : vector<8x64xf32>
    %35 = arith.addf %30, %34 : vector<8x64xf32>
    %c0_20 = arith.constant 0 : index
    %c0_21 = arith.constant 0 : index
    %36 = vector.load %arg6[%c0_20, %c0_21] : memref<1x64xf32, #tpu.memory_space<vmem>>, vector<1x64xf32>
    %37 = vector.broadcast %36 : vector<1x64xf32> to vector<8x64xf32>
    %38 = arith.addf %35, %37 : vector<8x64xf32>
    %39 = arith.negf %38 : vector<8x64xf32>
    %40 = math.exp %39 : vector<8x64xf32>
    %cst_22 = arith.constant 1.000000e+00 : f32
    %41 = vector.broadcast %cst_22 : f32 to vector<8x64xf32>
    %42 = arith.addf %41, %40 : vector<8x64xf32>
    %43 = arith.divf %41, %42 : vector<8x64xf32>
    %44 = arith.mulf %38, %43 : vector<8x64xf32>
    %c0_23 = arith.constant 0 : index
    %c0_24 = arith.constant 0 : index
    %45 = vector.load %arg16[%c0_23, %c0_24] : memref<8x64xf32, #tpu.memory_space<vmem>>, vector<8x64xf32>
    tpu.vector_store %arg16[%c0_23, %c0_24], %44 {strides = array<i32>} : memref<8x64xf32, #tpu.memory_space<vmem>>, vector<8x64xf32>,
    %c8_25 = arith.constant 8 : index
    %c0_26 = arith.constant 0 : index
    %46 = vector.load %arg15[%c8_25, %c0_26] : memref<16x64xf32, #tpu.memory_space<vmem>>, vector<8x64xf32>
    %c0_27 = arith.constant 0 : index
    %c0_28 = arith.constant 0 : index
    %47 = vector.load %arg15[%c0_27, %c0_28] : memref<16x64xf32, #tpu.memory_space<vmem>>, vector<8x64xf32>
    tpu.vector_store %arg15[%c0_27, %c0_28], %46 {strides = array<i32>} : memref<16x64xf32, #tpu.memory_space<vmem>>, vector<8x64xf32>,
    %48 = arith.truncf %44 : vector<8x64xf32> to vector<8x64xbf16>
    %c0_29 = arith.constant 0 : index
    %c0_30 = arith.constant 0 : index
    %49 = vector.load %arg8[%c0_29, %c0_30] : memref<64x32xbf16, #tpu.memory_space<vmem>>, vector<64x32xbf16>
    %cst_31 = arith.constant dense<0.000000e+00> : vector<8x32xf32>
    %50 = tpu.matmul %48, %49, %cst_31 {dimension_numbers = #tpu.dot_dimension_numbers<[1], [0], [0], [1], [0, 0, 1, 1], [], []>} : vector<8x64xbf16>, vector<64x32xbf16>, vector<8x32xf32> -> vector<8x32xf32>
    %c0_32 = arith.constant 0 : index
    %c0_33 = arith.constant 0 : index
    %51 = vector.load %arg7[%c0_32, %c0_33] : memref<64x128xbf16, #tpu.memory_space<vmem>>, vector<64x128xbf16>
    %cst_34 = arith.constant dense<0.000000e+00> : vector<8x128xf32>
    %52 = tpu.matmul %48, %51, %cst_34 {dimension_numbers = #tpu.dot_dimension_numbers<[1], [0], [0], [1], [0, 0, 1, 1], [], []>} : vector<8x64xbf16>, vector<64x128xbf16>, vector<8x128xf32> -> vector<8x128xf32>
    %53 = arith.truncf %52 : vector<8x128xf32> to vector<8x128xbf16>
    %c0_35 = arith.constant 0 : index
    %c0_36 = arith.constant 0 : index
    %54 = vector.load %arg9[%c0_35, %c0_36] : memref<128x64xbf16, #tpu.memory_space<vmem>>, vector<128x64xbf16>
    %cst_37 = arith.constant dense<0.000000e+00> : vector<8x64xf32>
    %55 = tpu.matmul %53, %54, %cst_37 {dimension_numbers = #tpu.dot_dimension_numbers<[1], [0], [0], [1], [0, 0, 1, 1], [], []>} : vector<8x128xbf16>, vector<128x64xbf16>, vector<8x64xf32> -> vector<8x64xf32>
    %c0_38 = arith.constant 0 : index
    %c0_39 = arith.constant 0 : index
    %56 = vector.load %arg10[%c0_38, %c0_39] : memref<1x64xf32, #tpu.memory_space<vmem>>, vector<1x64xf32>
    %57 = vector.broadcast %56 : vector<1x64xf32> to vector<8x64xf32>
    %58 = arith.addf %55, %57 : vector<8x64xf32>
    %cst_40 = arith.constant 0.000000e+00 : f32
    %59 = vector.broadcast %cst_40 : f32 to vector<8x64xf32>
    %60 = arith.maximumf %58, %59 : vector<8x64xf32>
    %61 = math.absf %58 : vector<8x64xf32>
    %cst_41 = arith.constant 0.000000e+00 : f32
    %62 = vector.broadcast %cst_41 : f32 to vector<8x64xf32>
    %63 = arith.subf %62, %61 : vector<8x64xf32>
    %64 = math.exp %63 : vector<8x64xf32>
    %65 = math.log1p %64 : vector<8x64xf32>
    %66 = arith.addf %60, %65 : vector<8x64xf32>
    %c0_42 = arith.constant 0 : index
    %c0_43 = arith.constant 0 : index
    %67 = vector.load %arg17[%c0_42, %c0_43] : memref<8x64xf32, #tpu.memory_space<vmem>>, vector<8x64xf32>
    tpu.vector_store %arg17[%c0_42, %c0_43], %66 {strides = array<i32>} : memref<8x64xf32, #tpu.memory_space<vmem>>, vector<8x64xf32>,
    %68 = tpu.iota {dimensions = array<i32: 0>} : vector<32x32xi32>
    %69 = tpu.iota {dimensions = array<i32: 1>} : vector<32x32xi32>
    %70 = arith.cmpi eq, %68, %69 : vector<32x32xi32>
    %71 = arith.extui %70 : vector<32x32xi1> to vector<32x32xi32>
    %72 = arith.sitofp %71 : vector<32x32xi32> to vector<32x32xf32>
    %cst_44 = arith.constant dense<0.000000e+00> : vector<32x8xf32>
    %73 = tpu.matmul %72, %50, %cst_44 {dimension_numbers = #tpu.dot_dimension_numbers<[1], [1], [0], [0], [0, 0, 1, 0], [], []>} : vector<32x32xf32>, vector<8x32xf32>, vector<32x8xf32> -> vector<32x8xf32>
    %c0_45 = arith.constant 0 : index
    %c0_46 = arith.constant 0 : index
    %c0_47 = arith.constant 0 : index
    %74 = vector.load %arg20[%c0_45, %c0_46, %c0_47] : memref<1x32x8xf32, #tpu.memory_space<vmem>>, vector<1x32x8xf32>
    %75 = vector.shape_cast %74 : vector<1x32x8xf32> to vector<32x8xf32>
    %76 = vector.shape_cast %73 : vector<32x8xf32> to vector<1x32x8xf32>
    tpu.vector_store %arg20[%c0_45, %c0_46, %c0_47], %76 {strides = array<i32>} : memref<1x32x8xf32, #tpu.memory_space<vmem>>, vector<1x32x8xf32>,
    %c0_i32_48 = arith.constant 0 : i32
    %c8_i32 = arith.constant 8 : i32
    %77 = arith.muli %c0_i32_48, %c8_i32 : i32
    %78 = tpu.assume_multiple %77, 8 : i32
    %79 = arith.index_cast %78 : i32 to index
    %c0_49 = arith.constant 0 : index
    %80 = vector.load %arg17[%79, %c0_49] : memref<8x64xf32, #tpu.memory_space<vmem>>, vector<8x64xf32>
    %81 = arith.index_cast %78 : i32 to index
    %c0_50 = arith.constant 0 : index
    %82 = vector.load %arg16[%81, %c0_50] : memref<8x64xf32, #tpu.memory_space<vmem>>, vector<8x64xf32>
    %83 = arith.index_cast %78 : i32 to index
    %c0_51 = arith.constant 0 : index
    %84 = vector.load %arg18[%83, %c0_51] : memref<8x64xf32, #tpu.memory_space<vmem>>, vector<8x64xf32>
    %85 = arith.mulf %80, %82 : vector<8x64xf32>
    %c0_52 = arith.constant 0 : index
    %c0_53 = arith.constant 0 : index
    %86 = vector.load %arg11[%c0_52, %c0_53] : memref<16x64xf32, #tpu.memory_space<vmem>>, vector<16x64xf32>
    %87 = vector.extract_strided_slice %80 {offsets = [0, 0], sizes = [1, 64], strides = [1, 1]} : vector<8x64xf32> to vector<1x64xf32>
    %88 = vector.broadcast %87 : vector<1x64xf32> to vector<16x64xf32>
    %89 = arith.mulf %86, %88 : vector<16x64xf32>
    %90 = math.exp %89 : vector<16x64xf32>
    %91 = vector.extract_strided_slice %80 {offsets = [1, 0], sizes = [1, 64], strides = [1, 1]} : vector<8x64xf32> to vector<1x64xf32>
    %92 = vector.broadcast %91 : vector<1x64xf32> to vector<16x64xf32>
    %93 = arith.mulf %86, %92 : vector<16x64xf32>
    %94 = math.exp %93 : vector<16x64xf32>
    %95 = vector.extract_strided_slice %80 {offsets = [2, 0], sizes = [1, 64], strides = [1, 1]} : vector<8x64xf32> to vector<1x64xf32>
    %96 = vector.broadcast %95 : vector<1x64xf32> to vector<16x64xf32>
    %97 = arith.mulf %86, %96 : vector<16x64xf32>
    %98 = math.exp %97 : vector<16x64xf32>
    %99 = vector.extract_strided_slice %80 {offsets = [3, 0], sizes = [1, 64], strides = [1, 1]} : vector<8x64xf32> to vector<1x64xf32>
    %100 = vector.broadcast %99 : vector<1x64xf32> to vector<16x64xf32>
    %101 = arith.mulf %86, %100 : vector<16x64xf32>
    %102 = math.exp %101 : vector<16x64xf32>
    %103 = vector.extract_strided_slice %80 {offsets = [4, 0], sizes = [1, 64], strides = [1, 1]} : vector<8x64xf32> to vector<1x64xf32>
    %104 = vector.broadcast %103 : vector<1x64xf32> to vector<16x64xf32>
    %105 = arith.mulf %86, %104 : vector<16x64xf32>
    %106 = math.exp %105 : vector<16x64xf32>
    %107 = vector.extract_strided_slice %80 {offsets = [5, 0], sizes = [1, 64], strides = [1, 1]} : vector<8x64xf32> to vector<1x64xf32>
    %108 = vector.broadcast %107 : vector<1x64xf32> to vector<16x64xf32>
    %109 = arith.mulf %86, %108 : vector<16x64xf32>
    %110 = math.exp %109 : vector<16x64xf32>
    %111 = vector.extract_strided_slice %80 {offsets = [6, 0], sizes = [1, 64], strides = [1, 1]} : vector<8x64xf32> to vector<1x64xf32>
    %112 = vector.broadcast %111 : vector<1x64xf32> to vector<16x64xf32>
    %113 = arith.mulf %86, %112 : vector<16x64xf32>
    %114 = math.exp %113 : vector<16x64xf32>
    %115 = vector.extract_strided_slice %80 {offsets = [7, 0], sizes = [1, 64], strides = [1, 1]} : vector<8x64xf32> to vector<1x64xf32>
    %116 = vector.broadcast %115 : vector<1x64xf32> to vector<16x64xf32>
    %117 = arith.mulf %86, %116 : vector<16x64xf32>
    %118 = math.exp %117 : vector<16x64xf32>
    %119 = arith.index_cast %c0_i32_48 : i32 to index
    %c0_54 = arith.constant 0 : index
    %c0_55 = arith.constant 0 : index
    %120 = vector.load %arg20[%119, %c0_54, %c0_55] : memref<1x32x8xf32, #tpu.memory_space<vmem>>, vector<1x32x8xf32>
    %121 = vector.shape_cast %120 : vector<1x32x8xf32> to vector<32x8xf32>
    %c0_56 = arith.constant 0 : index
    %c0_57 = arith.constant 0 : index
    %122 = vector.load %arg21[%c0_56, %c0_57] : memref<16x64xf32, #tpu.memory_space<vmem>>, vector<16x64xf32>
    %123 = vector.extract_strided_slice %121 {offsets = [0, 0], sizes = [16, 1], strides = [1, 1]} : vector<32x8xf32> to vector<16x1xf32>
    %124 = vector.extract_strided_slice %121 {offsets = [16, 0], sizes = [16, 1], strides = [1, 1]} : vector<32x8xf32> to vector<16x1xf32>
    %125 = arith.mulf %90, %122 : vector<16x64xf32>
    %126 = vector.extract_strided_slice %85 {offsets = [0, 0], sizes = [1, 64], strides = [1, 1]} : vector<8x64xf32> to vector<1x64xf32>
    %127 = vector.broadcast %123 : vector<16x1xf32> to vector<16x64xf32>
    %128 = vector.broadcast %126 : vector<1x64xf32> to vector<16x64xf32>
    %129 = arith.mulf %127, %128 : vector<16x64xf32>
    %130 = arith.addf %125, %129 : vector<16x64xf32>
    %131 = vector.broadcast %124 : vector<16x1xf32> to vector<16x64xf32>
    %132 = arith.mulf %131, %130 : vector<16x64xf32>
    %cst_58 = arith.constant dense<0.000000e+00> : vector<64xf32>
    %133 = vector.multi_reduction <add>, %132, %cst_58 [0] : vector<16x64xf32> to vector<64xf32>
    %134 = vector.shape_cast %133 : vector<64xf32> to vector<1x64xf32>
    %135 = vector.extract_strided_slice %121 {offsets = [0, 1], sizes = [16, 1], strides = [1, 1]} : vector<32x8xf32> to vector<16x1xf32>
    %136 = vector.extract_strided_slice %121 {offsets = [16, 1], sizes = [16, 1], strides = [1, 1]} : vector<32x8xf32> to vector<16x1xf32>
    %137 = arith.mulf %94, %130 : vector<16x64xf32>
    %138 = vector.extract_strided_slice %85 {offsets = [1, 0], sizes = [1, 64], strides = [1, 1]} : vector<8x64xf32> to vector<1x64xf32>
    %139 = vector.broadcast %135 : vector<16x1xf32> to vector<16x64xf32>
    %140 = vector.broadcast %138 : vector<1x64xf32> to vector<16x64xf32>
    %141 = arith.mulf %139, %140 : vector<16x64xf32>
    %142 = arith.addf %137, %141 : vector<16x64xf32>
    %143 = vector.broadcast %136 : vector<16x1xf32> to vector<16x64xf32>
    %144 = arith.mulf %143, %142 : vector<16x64xf32>
    %cst_59 = arith.constant dense<0.000000e+00> : vector<64xf32>
    %145 = vector.multi_reduction <add>, %144, %cst_59 [0] : vector<16x64xf32> to vector<64xf32>
    %146 = vector.shape_cast %145 : vector<64xf32> to vector<1x64xf32>
    %147 = vector.extract_strided_slice %121 {offsets = [0, 2], sizes = [16, 1], strides = [1, 1]} : vector<32x8xf32> to vector<16x1xf32>
    %148 = vector.extract_strided_slice %121 {offsets = [16, 2], sizes = [16, 1], strides = [1, 1]} : vector<32x8xf32> to vector<16x1xf32>
    %149 = arith.mulf %98, %142 : vector<16x64xf32>
    %150 = vector.extract_strided_slice %85 {offsets = [2, 0], sizes = [1, 64], strides = [1, 1]} : vector<8x64xf32> to vector<1x64xf32>
    %151 = vector.broadcast %147 : vector<16x1xf32> to vector<16x64xf32>
    %152 = vector.broadcast %150 : vector<1x64xf32> to vector<16x64xf32>
    %153 = arith.mulf %151, %152 : vector<16x64xf32>
    %154 = arith.addf %149, %153 : vector<16x64xf32>
    %155 = vector.broadcast %148 : vector<16x1xf32> to vector<16x64xf32>
    %156 = arith.mulf %155, %154 : vector<16x64xf32>
    %cst_60 = arith.constant dense<0.000000e+00> : vector<64xf32>
    %157 = vector.multi_reduction <add>, %156, %cst_60 [0] : vector<16x64xf32> to vector<64xf32>
    %158 = vector.shape_cast %157 : vector<64xf32> to vector<1x64xf32>
    %159 = vector.extract_strided_slice %121 {offsets = [0, 3], sizes = [16, 1], strides = [1, 1]} : vector<32x8xf32> to vector<16x1xf32>
    %160 = vector.extract_strided_slice %121 {offsets = [16, 3], sizes = [16, 1], strides = [1, 1]} : vector<32x8xf32> to vector<16x1xf32>
    %161 = arith.mulf %102, %154 : vector<16x64xf32>
    %162 = vector.extract_strided_slice %85 {offsets = [3, 0], sizes = [1, 64], strides = [1, 1]} : vector<8x64xf32> to vector<1x64xf32>
    %163 = vector.broadcast %159 : vector<16x1xf32> to vector<16x64xf32>
    %164 = vector.broadcast %162 : vector<1x64xf32> to vector<16x64xf32>
    %165 = arith.mulf %163, %164 : vector<16x64xf32>
    %166 = arith.addf %161, %165 : vector<16x64xf32>
    %167 = vector.broadcast %160 : vector<16x1xf32> to vector<16x64xf32>
    %168 = arith.mulf %167, %166 : vector<16x64xf32>
    %cst_61 = arith.constant dense<0.000000e+00> : vector<64xf32>
    %169 = vector.multi_reduction <add>, %168, %cst_61 [0] : vector<16x64xf32> to vector<64xf32>
    %170 = vector.shape_cast %169 : vector<64xf32> to vector<1x64xf32>
    %171 = vector.extract_strided_slice %121 {offsets = [0, 4], sizes = [16, 1], strides = [1, 1]} : vector<32x8xf32> to vector<16x1xf32>
    %172 = vector.extract_strided_slice %121 {offsets = [16, 4], sizes = [16, 1], strides = [1, 1]} : vector<32x8xf32> to vector<16x1xf32>
    %173 = arith.mulf %106, %166 : vector<16x64xf32>
    %174 = vector.extract_strided_slice %85 {offsets = [4, 0], sizes = [1, 64], strides = [1, 1]} : vector<8x64xf32> to vector<1x64xf32>
    %175 = vector.broadcast %171 : vector<16x1xf32> to vector<16x64xf32>
    %176 = vector.broadcast %174 : vector<1x64xf32> to vector<16x64xf32>
    %177 = arith.mulf %175, %176 : vector<16x64xf32>
    %178 = arith.addf %173, %177 : vector<16x64xf32>
    %179 = vector.broadcast %172 : vector<16x1xf32> to vector<16x64xf32>
    %180 = arith.mulf %179, %178 : vector<16x64xf32>
    %cst_62 = arith.constant dense<0.000000e+00> : vector<64xf32>
    %181 = vector.multi_reduction <add>, %180, %cst_62 [0] : vector<16x64xf32> to vector<64xf32>
    %182 = vector.shape_cast %181 : vector<64xf32> to vector<1x64xf32>
    %183 = vector.extract_strided_slice %121 {offsets = [0, 5], sizes = [16, 1], strides = [1, 1]} : vector<32x8xf32> to vector<16x1xf32>
    %184 = vector.extract_strided_slice %121 {offsets = [16, 5], sizes = [16, 1], strides = [1, 1]} : vector<32x8xf32> to vector<16x1xf32>
    %185 = arith.mulf %110, %178 : vector<16x64xf32>
    %186 = vector.extract_strided_slice %85 {offsets = [5, 0], sizes = [1, 64], strides = [1, 1]} : vector<8x64xf32> to vector<1x64xf32>
    %187 = vector.broadcast %183 : vector<16x1xf32> to vector<16x64xf32>
    %188 = vector.broadcast %186 : vector<1x64xf32> to vector<16x64xf32>
    %189 = arith.mulf %187, %188 : vector<16x64xf32>
    %190 = arith.addf %185, %189 : vector<16x64xf32>
    %191 = vector.broadcast %184 : vector<16x1xf32> to vector<16x64xf32>
    %192 = arith.mulf %191, %190 : vector<16x64xf32>
    %cst_63 = arith.constant dense<0.000000e+00> : vector<64xf32>
    %193 = vector.multi_reduction <add>, %192, %cst_63 [0] : vector<16x64xf32> to vector<64xf32>
    %194 = vector.shape_cast %193 : vector<64xf32> to vector<1x64xf32>
    %195 = vector.extract_strided_slice %121 {offsets = [0, 6], sizes = [16, 1], strides = [1, 1]} : vector<32x8xf32> to vector<16x1xf32>
    %196 = vector.extract_strided_slice %121 {offsets = [16, 6], sizes = [16, 1], strides = [1, 1]} : vector<32x8xf32> to vector<16x1xf32>
    %197 = arith.mulf %114, %190 : vector<16x64xf32>
    %198 = vector.extract_strided_slice %85 {offsets = [6, 0], sizes = [1, 64], strides = [1, 1]} : vector<8x64xf32> to vector<1x64xf32>
    %199 = vector.broadcast %195 : vector<16x1xf32> to vector<16x64xf32>
    %200 = vector.broadcast %198 : vector<1x64xf32> to vector<16x64xf32>
    %201 = arith.mulf %199, %200 : vector<16x64xf32>
    %202 = arith.addf %197, %201 : vector<16x64xf32>
    %203 = vector.broadcast %196 : vector<16x1xf32> to vector<16x64xf32>
    %204 = arith.mulf %203, %202 : vector<16x64xf32>
    %cst_64 = arith.constant dense<0.000000e+00> : vector<64xf32>
    %205 = vector.multi_reduction <add>, %204, %cst_64 [0] : vector<16x64xf32> to vector<64xf32>
    %206 = vector.shape_cast %205 : vector<64xf32> to vector<1x64xf32>
    %207 = vector.extract_strided_slice %121 {offsets = [0, 7], sizes = [16, 1], strides = [1, 1]} : vector<32x8xf32> to vector<16x1xf32>
    %208 = vector.extract_strided_slice %121 {offsets = [16, 7], sizes = [16, 1], strides = [1, 1]} : vector<32x8xf32> to vector<16x1xf32>
    %209 = arith.mulf %118, %202 : vector<16x64xf32>
    %210 = vector.extract_strided_slice %85 {offsets = [7, 0], sizes = [1, 64], strides = [1, 1]} : vector<8x64xf32> to vector<1x64xf32>
    %211 = vector.broadcast %207 : vector<16x1xf32> to vector<16x64xf32>
    %212 = vector.broadcast %210 : vector<1x64xf32> to vector<16x64xf32>
    %213 = arith.mulf %211, %212 : vector<16x64xf32>
    %214 = arith.addf %209, %213 : vector<16x64xf32>
    %215 = vector.broadcast %208 : vector<16x1xf32> to vector<16x64xf32>
    %216 = arith.mulf %215, %214 : vector<16x64xf32>
    %cst_65 = arith.constant dense<0.000000e+00> : vector<64xf32>
    %217 = vector.multi_reduction <add>, %216, %cst_65 [0] : vector<16x64xf32> to vector<64xf32>
    %218 = vector.shape_cast %217 : vector<64xf32> to vector<1x64xf32>
    %c0_66 = arith.constant 0 : index
    %c0_67 = arith.constant 0 : index
    %219 = vector.load %arg21[%c0_66, %c0_67] : memref<16x64xf32, #tpu.memory_space<vmem>>, vector<16x64xf32>
    tpu.vector_store %arg21[%c0_66, %c0_67], %214 {strides = array<i32>} : memref<16x64xf32, #tpu.memory_space<vmem>>, vector<16x64xf32>,
    %220 = tpu.concatenate %134, %146, %158, %170, %182, %194, %206, %218 in 0 : vector<1x64xf32>, vector<1x64xf32>, vector<1x64xf32>, vector<1x64xf32>, vector<1x64xf32>, vector<1x64xf32>, vector<1x64xf32>, vector<1x64xf32> -> vector<8x64xf32>
    %c0_68 = arith.constant 0 : index
    %c0_69 = arith.constant 0 : index
    %221 = vector.load %arg12[%c0_68, %c0_69] : memref<1x64xf32, #tpu.memory_space<vmem>>, vector<1x64xf32>
    %222 = vector.broadcast %221 : vector<1x64xf32> to vector<8x64xf32>
    %223 = arith.mulf %222, %82 : vector<8x64xf32>
    %224 = arith.addf %220, %223 : vector<8x64xf32>
    %225 = arith.mulf %224, %84 : vector<8x64xf32>
    %226 = arith.index_cast %78 : i32 to index
    %c0_70 = arith.constant 0 : index
    %227 = vector.load %arg19[%226, %c0_70] : memref<8x64xf32, #tpu.memory_space<vmem>>, vector<8x64xf32>
    tpu.vector_store %arg19[%226, %c0_70], %225 {strides = array<i32>} : memref<8x64xf32, #tpu.memory_space<vmem>>, vector<8x64xf32>,
    %c1_i32 = arith.constant 1 : i32
    %c0_71 = arith.constant 0 : index
    %c0_72 = arith.constant 0 : index
    %228 = vector.load %arg19[%c0_71, %c0_72] : memref<8x64xf32, #tpu.memory_space<vmem>>, vector<8x64xf32>
    %229 = arith.truncf %228 : vector<8x64xf32> to vector<8x64xbf16>
    %c0_73 = arith.constant 0 : index
    %c0_74 = arith.constant 0 : index
    %230 = vector.load %arg13[%c0_73, %c0_74] : memref<64x32xbf16, #tpu.memory_space<vmem>>, vector<64x32xbf16>
    %cst_75 = arith.constant dense<0.000000e+00> : vector<8x32xf32>
    %231 = tpu.matmul %229, %230, %cst_75 {dimension_numbers = #tpu.dot_dimension_numbers<[1], [0], [0], [1], [0, 0, 1, 1], [], []>} : vector<8x64xbf16>, vector<64x32xbf16>, vector<8x32xf32> -> vector<8x32xf32>
    %c0_76 = arith.constant 0 : index
    %c0_77 = arith.constant 0 : index
    %c0_78 = arith.constant 0 : index
    %232 = vector.load %arg14[%c0_76, %c0_77, %c0_78] : memref<1x8x32xf32, #tpu.memory_space<vmem>>, vector<1x8x32xf32>
    %233 = vector.shape_cast %232 : vector<1x8x32xf32> to vector<8x32xf32>
    %234 = vector.shape_cast %231 : vector<8x32xf32> to vector<1x8x32xf32>
    tpu.vector_store %arg14[%c0_76, %c0_77, %c0_78], %234 {strides = array<i32>} : memref<1x8x32xf32, #tpu.memory_space<vmem>>, vector<1x8x32xf32>,
    return
  }
  func.func @transform_0(%arg0: i32, %arg1: i32) -> (i32, i32, i32) {
    %c0_i32 = arith.constant 0 : i32
    %c0_i32_0 = arith.constant 0 : i32
    return %arg0, %arg1, %c0_i32 : i32, i32, i32
  }
  func.func @transform_1(%arg0: i32, %arg1: i32) -> (i32, i32) {
    %c0_i32 = arith.constant 0 : i32
    %c0_i32_0 = arith.constant 0 : i32
    %c0_i32_1 = arith.constant 0 : i32
    return %c0_i32, %c0_i32_0 : i32, i32
  }
  func.func @transform_2(%arg0: i32, %arg1: i32) -> (i32, i32) {
    %c0_i32 = arith.constant 0 : i32
    %c0_i32_0 = arith.constant 0 : i32
    %c0_i32_1 = arith.constant 0 : i32
    return %c0_i32, %c0_i32_0 : i32, i32
  }
  func.func @transform_3(%arg0: i32, %arg1: i32) -> (i32, i32) {
    %c0_i32 = arith.constant 0 : i32
    %c0_i32_0 = arith.constant 0 : i32
    %c0_i32_1 = arith.constant 0 : i32
    return %c0_i32, %c0_i32_0 : i32, i32
  }
  func.func @transform_4(%arg0: i32, %arg1: i32) -> (i32, i32) {
    %c0_i32 = arith.constant 0 : i32
    %c0_i32_0 = arith.constant 0 : i32
    %c0_i32_1 = arith.constant 0 : i32
    return %c0_i32, %c0_i32_0 : i32, i32
  }
  func.func @transform_5(%arg0: i32, %arg1: i32) -> (i32, i32) {
    %c0_i32 = arith.constant 0 : i32
    %c0_i32_0 = arith.constant 0 : i32
    %c0_i32_1 = arith.constant 0 : i32
    return %c0_i32, %c0_i32_0 : i32, i32
  }
  func.func @transform_6(%arg0: i32, %arg1: i32) -> (i32, i32) {
    %c0_i32 = arith.constant 0 : i32
    %c0_i32_0 = arith.constant 0 : i32
    %c0_i32_1 = arith.constant 0 : i32
    return %c0_i32, %c0_i32_0 : i32, i32
  }
  func.func @transform_7(%arg0: i32, %arg1: i32) -> (i32, i32) {
    %c0_i32 = arith.constant 0 : i32
    %c0_i32_0 = arith.constant 0 : i32
    %c0_i32_1 = arith.constant 0 : i32
    return %c0_i32, %c0_i32_0 : i32, i32
  }
  func.func @transform_8(%arg0: i32, %arg1: i32) -> (i32, i32) {
    %c0_i32 = arith.constant 0 : i32
    %c0_i32_0 = arith.constant 0 : i32
    %c0_i32_1 = arith.constant 0 : i32
    return %c0_i32, %c0_i32_0 : i32, i32
  }
  func.func @transform_9(%arg0: i32, %arg1: i32) -> (i32, i32) {
    %c0_i32 = arith.constant 0 : i32
    %c0_i32_0 = arith.constant 0 : i32
    %c0_i32_1 = arith.constant 0 : i32
    return %c0_i32, %c0_i32_0 : i32, i32
  }
  func.func @transform_10(%arg0: i32, %arg1: i32) -> (i32, i32) {
    %c0_i32 = arith.constant 0 : i32
    %c0_i32_0 = arith.constant 0 : i32
    %c0_i32_1 = arith.constant 0 : i32
    return %c0_i32, %c0_i32_0 : i32, i32
  }
  func.func @transform_11(%arg0: i32, %arg1: i32) -> (i32, i32) {
    %c0_i32 = arith.constant 0 : i32
    %c0_i32_0 = arith.constant 0 : i32
    %c0_i32_1 = arith.constant 0 : i32
    return %c0_i32, %c0_i32_0 : i32, i32
  }
  func.func @transform_12(%arg0: i32, %arg1: i32) -> (i32, i32, i32) {
    %c0_i32 = arith.constant 0 : i32
    %c0_i32_0 = arith.constant 0 : i32
    return %arg0, %arg1, %c0_i32 : i32, i32, i32
  }
}

</mosaic_0001>

<llo_original>
// kernel: tpu_custom_call.1
$region0: #{tpu_custom_call.1}
  #allocation0 [shape = 'u32[]', space=smem, size = 0x4, offset = 0x4, fixed_abs, tag = 'smem constant byte address 0x4 - core index']
  #allocation1 [shape = 'u32[72,128]{1,0:T(1,128)}', space=vmem, size = 0x9000, scoped, tag = 'internal scratch']
  #allocation2 [shape = 'f32[16,64]{1,0:T(8,128)}', space=vmem, size = 0x2000, scoped, tag = 'scratch operand']
  #allocation3 [shape = 'f32[8,64]{1,0:T(8,128)}', space=vmem, size = 0x1000, scoped, tag = 'scratch operand']
  #allocation4 [shape = 'f32[8,64]{1,0:T(8,128)}', space=vmem, size = 0x1000, scoped, tag = 'scratch operand']
  #allocation5 [shape = 'f32[8,64]{1,0:T(8,128)}', space=vmem, size = 0x1000, scoped, tag = 'scratch operand']
  #allocation6 [shape = 'f32[8,64]{1,0:T(8,128)}', space=vmem, size = 0x1000, scoped, tag = 'scratch operand']
  #allocation7 [shape = 'f32[1,32,8]{2,1,0:T(8,128)}', space=vmem, size = 0x4000, scoped, tag = 'scratch operand']
  #allocation8 [shape = 'f32[16,64]{1,0:T(8,128)}', space=vmem, size = 0x2000, scoped, tag = 'scratch operand']
  %s0 = inlined_call_operand.vmem [shape: f32[2,24,32], index: 0, kind: input, shape index: {}]
  %s1 = inlined_call_operand.vmem [shape: bf16[32,64], index: 1, kind: input, shape index: {}]
  %s2 = inlined_call_operand.vmem [shape: bf16[32,64], index: 2, kind: input, shape index: {}]
  %s3 = inlined_call_operand.vmem [shape: f32[4,64], index: 3, kind: input, shape index: {}]
  %s4 = inlined_call_operand.vmem [shape: f32[1,64], index: 4, kind: input, shape index: {}]
  %s5 = inlined_call_operand.vmem [shape: bf16[64,128], index: 5, kind: input, shape index: {}]
  %s6 = inlined_call_operand.vmem [shape: bf16[64,32], index: 6, kind: input, shape index: {}]
  %s7 = inlined_call_operand.vmem [shape: bf16[128,64], index: 7, kind: input, shape index: {}]
  %s8 = inlined_call_operand.vmem [shape: f32[1,64], index: 8, kind: input, shape index: {}]
  %s9 = inlined_call_operand.vmem [shape: f32[16,64], index: 9, kind: input, shape index: {}]
  %s10 = inlined_call_operand.vmem [shape: f32[1,64], index: 10, kind: input, shape index: {}]
  %s11 = inlined_call_operand.vmem [shape: bf16[64,32], index: 11, kind: input, shape index: {}]
  %s12 = inlined_call_operand.hbm [shape: f32[2,24,32], index: 12, kind: output, shape index: {}]
  %s13 = sld [smem:[#allocation0]]
  $region85: #{tpu_custom_call.1} parent=0
    _
  %s15 = ssub.s32 1, %s13
  %s16 = scalar_select 0, %s15, %s13
  $region1: #{tpu_custom_call.1} parent=0
    #allocation9 [shape = 'u8[8192]{0}', space=vmem, size = 0x2000, scoped, tag = 'output window, operand 0']
    #allocation10 [shape = 's32[2]{0}', space=sflag, size = 0x8, scoped, tag = 'scoped memory for tpu_custom_call.1']
    %17 = vsyncpa [#allocation10], 0
    %s18 = scalar_lea.sflag [#allocation10], 1
    %19 = vsyncpa %s18, 0
    loop: start=0, step=1, limit=8
    $region2: #{tpu_custom_call.1} parent=1 // loop_pre_header
      _
    $region3: #{tpu_custom_call.1} parent=1 // loop_header
      %s21 = sphi 0, %s25
      %p22 = scmp.ge.s32.totalorder %s21, 8
      %s28 = sphi 0, %s40
      %s29 = sphi 0, %s36
      %s30 = sphi 0, %s28
      %s31 = sphi 0, %s29
      %s32 = sphi 0, %s30
      %s33 = sphi 0, %s31
      %s45 = sphi 0, %s47
      %s48 = sphi 0, %s45
      %s49 = sphi 0, %s48
      %s65 = sphi 0, %s49
      %s69 = sphi 0, %s69
      %s71 = sphi 0, %s69
      %s72 = sphi 0, %s71
      %s86 = sphi 0, %s72
      %s90 = sphi 0, %s90
      %s92 = sphi 0, %s90
      %s93 = sphi 0, %s92
      %s107 = sphi 0, %s93
      %s111 = sphi 0, %s111
      %s113 = sphi 0, %s111
      %s114 = sphi 0, %s113
      %s128 = sphi 0, %s114
      %s132 = sphi 0, %s132
      %s134 = sphi 0, %s132
      %s135 = sphi 0, %s134
      %s149 = sphi 0, %s135
      %s153 = sphi 0, %s153
      %s155 = sphi 0, %s153
      %s156 = sphi 0, %s155
      %s170 = sphi 0, %s156
      %s174 = sphi 0, %s174
      %s176 = sphi 0, %s174
      %s177 = sphi 0, %s176
      %s191 = sphi 0, %s177
      %s195 = sphi 0, %s195
      %s197 = sphi 0, %s195
      %s198 = sphi 0, %s197
      %s212 = sphi 0, %s198
      %s216 = sphi 0, %s216
      %s218 = sphi 0, %s216
      %s219 = sphi 0, %s218
      %s233 = sphi 0, %s219
      %s237 = sphi 0, %s237
      %s239 = sphi 0, %s237
      %s240 = sphi 0, %s239
      %s254 = sphi 0, %s240
      %s258 = sphi 0, %s258
      %s260 = sphi 0, %s258
      %s261 = sphi 0, %s260
      %s275 = sphi 0, %s261
      %s279 = sphi 0, %s279
      %s281 = sphi 0, %s279
      %s282 = sphi 0, %s281
      %s296 = sphi 0, %s282
      %s304 = sphi 0, %s306
      %s307 = sphi 0, %s304
      %s308 = sphi 0, %s307
      %s324 = sphi 0, %s308
    $region4: #{tpu_custom_call.1} parent=1 // loop_header_branch
      %24 = sbr.rel (%p22) target = $region8
    $region5: #{tpu_custom_call.1} parent=1 // loop_body
      %s26 = ssub.s32 %s21, 1
      %s27 = ssub.s32 %s21, 2
      %s34 = sadd.s32 1, %s29
      %p35 = scmp.ge.s32.totalorder %s34, 3
      %s36 = scalar_select %p35, 0, %s34
      %s37 = sadd.s32 1, %s28
      %s38 = scalar_select %p35, %s37, %s28
      %p39 = scmp.ge.s32.totalorder %s38, 2
      %s40 = scalar_select %p39, 0, %s38
      %s41 = ssub.s32 %s28, %s40
      %s42 = ssub.s32 %s29, %s36
      %s43 = sor.u32 %s41, %s42
      %p44 = scmp.eq.s32.totalorder %s43, 0
      %s46 = sadd.s32 %s45, 1
      %s47 = scalar_select %p44, %s45, %s46
      %p50 = pneg %p44
      %p51 = scmp.eq.s32.totalorder %s21, 5
      %p52 = por %p50, %p51
      %p53 = scmp.ne.s32.totalorder %s45, %s48
      %p54 = scmp.eq.s32.totalorder %s21, 0
      %p55 = por %p53, %p54
      %p56 = scmp.ne.s32.totalorder %s45, %s48
      %p57 = scmp.eq.s32.totalorder %s26, 5
      %p58 = por %p56, %p57
      %p59 = scmp.ne.s32.totalorder %s48, %s49
      %p60 = scmp.eq.s32.totalorder %s26, 0
      %p61 = por %p59, %p60
      %p62 = scmp.ne.s32.totalorder %s48, %s49
      %p63 = scmp.eq.s32.totalorder %s27, 5
      %p64 = por %p62, %p63
      %p66 = scmp.ne.s32.totalorder %s49, %s65
      %p67 = scmp.eq.s32.totalorder %s27, 0
      %p68 = por %p66, %p67
      %s70 = sadd.s32 %s69, 1
      %p73 = scmp.eq.s32.totalorder %s21, 5
      %p74 = scmp.ne.s32.totalorder %s69, %s71
      %p75 = scmp.eq.s32.totalorder %s21, 0
      %p76 = por %p74, %p75
      %p77 = scmp.ne.s32.totalorder %s69, %s71
      %p78 = scmp.eq.s32.totalorder %s26, 5
      %p79 = por %p77, %p78
      %p80 = scmp.ne.s32.totalorder %s71, %s72
      %p81 = scmp.eq.s32.totalorder %s26, 0
      %p82 = por %p80, %p81
      %p83 = scmp.ne.s32.totalorder %s71, %s72
      %p84 = scmp.eq.s32.totalorder %s27, 5
      %p85 = por %p83, %p84
      %p87 = scmp.ne.s32.totalorder %s72, %s86
      %p88 = scmp.eq.s32.totalorder %s27, 0
      %p89 = por %p87, %p88
      %s91 = sadd.s32 %s90, 1
      %p94 = scmp.eq.s32.totalorder %s21, 5
      %p95 = scmp.ne.s32.totalorder %s90, %s92
      %p96 = scmp.eq.s32.totalorder %s21, 0
      %p97 = por %p95, %p96
      %p98 = scmp.ne.s32.totalorder %s90, %s92
      %p99 = scmp.eq.s32.totalorder %s26, 5
      %p100 = por %p98, %p99
      %p101 = scmp.ne.s32.totalorder %s92, %s93
      %p102 = scmp.eq.s32.totalorder %s26, 0
      %p103 = por %p101, %p102
      %p104 = scmp.ne.s32.totalorder %s92, %s93
      %p105 = scmp.eq.s32.totalorder %s27, 5
      %p106 = por %p104, %p105
      %p108 = scmp.ne.s32.totalorder %s93, %s107
      %p109 = scmp.eq.s32.totalorder %s27, 0
      %p110 = por %p108, %p109
      %s112 = sadd.s32 %s111, 1
      %p115 = scmp.eq.s32.totalorder %s21, 5
      %p116 = scmp.ne.s32.totalorder %s111, %s113
      %p117 = scmp.eq.s32.totalorder %s21, 0
      %p118 = por %p116, %p117
      %p119 = scmp.ne.s32.totalorder %s111, %s113
      %p120 = scmp.eq.s32.totalorder %s26, 5
      %p121 = por %p119, %p120
      %p122 = scmp.ne.s32.totalorder %s113, %s114
      %p123 = scmp.eq.s32.totalorder %s26, 0
      %p124 = por %p122, %p123
      %p125 = scmp.ne.s32.totalorder %s113, %s114
      %p126 = scmp.eq.s32.totalorder %s27, 5
      %p127 = por %p125, %p126
      %p129 = scmp.ne.s32.totalorder %s114, %s128
      %p130 = scmp.eq.s32.totalorder %s27, 0
      %p131 = por %p129, %p130
      %s133 = sadd.s32 %s132, 1
      %p136 = scmp.eq.s32.totalorder %s21, 5
      %p137 = scmp.ne.s32.totalorder %s132, %s134
      %p138 = scmp.eq.s32.totalorder %s21, 0
      %p139 = por %p137, %p138
      %p140 = scmp.ne.s32.totalorder %s132, %s134
      %p141 = scmp.eq.s32.totalorder %s26, 5
      %p142 = por %p140, %p141
      %p143 = scmp.ne.s32.totalorder %s134, %s135
      %p144 = scmp.eq.s32.totalorder %s26, 0
      %p145 = por %p143, %p144
      %p146 = scmp.ne.s32.totalorder %s134, %s135
      %p147 = scmp.eq.s32.totalorder %s27, 5
      %p148 = por %p146, %p147
      %p150 = scmp.ne.s32.totalorder %s135, %s149
      %p151 = scmp.eq.s32.totalorder %s27, 0
      %p152 = por %p150, %p151
      %s154 = sadd.s32 %s153, 1
      %p157 = scmp.eq.s32.totalorder %s21, 5
      %p158 = scmp.ne.s32.totalorder %s153, %s155
      %p159 = scmp.eq.s32.totalorder %s21, 0
      %p160 = por %p158, %p159
      %p161 = scmp.ne.s32.totalorder %s153, %s155
      %p162 = scmp.eq.s32.totalorder %s26, 5
      %p163 = por %p161, %p162
      %p164 = scmp.ne.s32.totalorder %s155, %s156
      %p165 = scmp.eq.s32.totalorder %s26, 0
      %p166 = por %p164, %p165
      %p167 = scmp.ne.s32.totalorder %s155, %s156
      %p168 = scmp.eq.s32.totalorder %s27, 5
      %p169 = por %p167, %p168
      %p171 = scmp.ne.s32.totalorder %s156, %s170
      %p172 = scmp.eq.s32.totalorder %s27, 0
      %p173 = por %p171, %p172
      %s175 = sadd.s32 %s174, 1
      %p178 = scmp.eq.s32.totalorder %s21, 5
      %p179 = scmp.ne.s32.totalorder %s174, %s176
      %p180 = scmp.eq.s32.totalorder %s21, 0
      %p181 = por %p179, %p180
      %p182 = scmp.ne.s32.totalorder %s174, %s176
      %p183 = scmp.eq.s32.totalorder %s26, 5
      %p184 = por %p182, %p183
      %p185 = scmp.ne.s32.totalorder %s176, %s177
      %p186 = scmp.eq.s32.totalorder %s26, 0
      %p187 = por %p185, %p186
      %p188 = scmp.ne.s32.totalorder %s176, %s177
      %p189 = scmp.eq.s32.totalorder %s27, 5
      %p190 = por %p188, %p189
      %p192 = scmp.ne.s32.totalorder %s177, %s191
      %p193 = scmp.eq.s32.totalorder %s27, 0
      %p194 = por %p192, %p193
      %s196 = sadd.s32 %s195, 1
      %p199 = scmp.eq.s32.totalorder %s21, 5
      %p200 = scmp.ne.s32.totalorder %s195, %s197
      %p201 = scmp.eq.s32.totalorder %s21, 0
      %p202 = por %p200, %p201
      %p203 = scmp.ne.s32.totalorder %s195, %s197
      %p204 = scmp.eq.s32.totalorder %s26, 5
      %p205 = por %p203, %p204
      %p206 = scmp.ne.s32.totalorder %s197, %s198
      %p207 = scmp.eq.s32.totalorder %s26, 0
      %p208 = por %p206, %p207
      %p209 = scmp.ne.s32.totalorder %s197, %s198
      %p210 = scmp.eq.s32.totalorder %s27, 5
      %p211 = por %p209, %p210
      %p213 = scmp.ne.s32.totalorder %s198, %s212
      %p214 = scmp.eq.s32.totalorder %s27, 0
      %p215 = por %p213, %p214
      %s217 = sadd.s32 %s216, 1
      %p220 = scmp.eq.s32.totalorder %s21, 5
      %p221 = scmp.ne.s32.totalorder %s216, %s218
      %p222 = scmp.eq.s32.totalorder %s21, 0
      %p223 = por %p221, %p222
      %p224 = scmp.ne.s32.totalorder %s216, %s218
      %p225 = scmp.eq.s32.totalorder %s26, 5
      %p226 = por %p224, %p225
      %p227 = scmp.ne.s32.totalorder %s218, %s219
      %p228 = scmp.eq.s32.totalorder %s26, 0
      %p229 = por %p227, %p228
      %p230 = scmp.ne.s32.totalorder %s218, %s219
      %p231 = scmp.eq.s32.totalorder %s27, 5
      %p232 = por %p230, %p231
      %p234 = scmp.ne.s32.totalorder %s219, %s233
      %p235 = scmp.eq.s32.totalorder %s27, 0
      %p236 = por %p234, %p235
      %s238 = sadd.s32 %s237, 1
      %p241 = scmp.eq.s32.totalorder %s21, 5
      %p242 = scmp.ne.s32.totalorder %s237, %s239
      %p243 = scmp.eq.s32.totalorder %s21, 0
      %p244 = por %p242, %p243
      %p245 = scmp.ne.s32.totalorder %s237, %s239
      %p246 = scmp.eq.s32.totalorder %s26, 5
      %p247 = por %p245, %p246
      %p248 = scmp.ne.s32.totalorder %s239, %s240
      %p249 = scmp.eq.s32.totalorder %s26, 0
      %p250 = por %p248, %p249
      %p251 = scmp.ne.s32.totalorder %s239, %s240
      %p252 = scmp.eq.s32.totalorder %s27, 5
      %p253 = por %p251, %p252
      %p255 = scmp.ne.s32.totalorder %s240, %s254
      %p256 = scmp.eq.s32.totalorder %s27, 0
      %p257 = por %p255, %p256
      %s259 = sadd.s32 %s258, 1
      %p262 = scmp.eq.s32.totalorder %s21, 5
      %p263 = scmp.ne.s32.totalorder %s258, %s260
      %p264 = scmp.eq.s32.totalorder %s21, 0
      %p265 = por %p263, %p264
      %p266 = scmp.ne.s32.totalorder %s258, %s260
      %p267 = scmp.eq.s32.totalorder %s26, 5
      %p268 = por %p266, %p267
      %p269 = scmp.ne.s32.totalorder %s260, %s261
      %p270 = scmp.eq.s32.totalorder %s26, 0
      %p271 = por %p269, %p270
      %p272 = scmp.ne.s32.totalorder %s260, %s261
      %p273 = scmp.eq.s32.totalorder %s27, 5
      %p274 = por %p272, %p273
      %p276 = scmp.ne.s32.totalorder %s261, %s275
      %p277 = scmp.eq.s32.totalorder %s27, 0
      %p278 = por %p276, %p277
      %s280 = sadd.s32 %s279, 1
      %p283 = scmp.eq.s32.totalorder %s21, 5
      %p284 = scmp.ne.s32.totalorder %s279, %s281
      %p285 = scmp.eq.s32.totalorder %s21, 0
      %p286 = por %p284, %p285
      %p287 = scmp.ne.s32.totalorder %s279, %s281
      %p288 = scmp.eq.s32.totalorder %s26, 5
      %p289 = por %p287, %p288
      %p290 = scmp.ne.s32.totalorder %s281, %s282
      %p291 = scmp.eq.s32.totalorder %s26, 0
      %p292 = por %p290, %p291
      %p293 = scmp.ne.s32.totalorder %s281, %s282
      %p294 = scmp.eq.s32.totalorder %s27, 5
      %p295 = por %p293, %p294
      %p297 = scmp.ne.s32.totalorder %s282, %s296
      %p298 = scmp.eq.s32.totalorder %s27, 0
      %p299 = por %p297, %p298
      %s300 = ssub.s32 %s28, %s40
      %s301 = ssub.s32 %s29, %s36
      %s302 = sor.u32 %s300, %s301
      %p303 = scmp.eq.s32.totalorder %s302, 0
      %s305 = sadd.s32 %s304, 1
      %s306 = scalar_select %p303, %s304, %s305
      %p309 = pneg %p303
      %p310 = scmp.eq.s32.totalorder %s21, 5
      %p311 = por %p309, %p310
      %p312 = scmp.ne.s32.totalorder %s304, %s307
      %p313 = scmp.eq.s32.totalorder %s21, 0
      %p314 = por %p312, %p313
      %p315 = scmp.ne.s32.totalorder %s304, %s307
      %p316 = scmp.eq.s32.totalorder %s26, 5
      %p317 = por %p315, %p316
      %p318 = scmp.ne.s32.totalorder %s307, %s308
      %p319 = scmp.eq.s32.totalorder %s26, 0
      %p320 = por %p318, %p319
      %p321 = scmp.ne.s32.totalorder %s307, %s308
      %p322 = scmp.eq.s32.totalorder %s27, 5
      %p323 = por %p321, %p322
      %p325 = scmp.ne.s32.totalorder %s308, %s324
      %p326 = scmp.eq.s32.totalorder %s27, 0
      %p327 = por %p325, %p326
      %p328 = scmp.le.s32.totalorder 1, %s21
      %p329 = scmp.lt.s32.totalorder %s21, 7
      %p330 = pnand %p328, %p329
      %p331 = pneg %p330
      // Predicated region
      $region9: #{tpu_custom_call.1} parent=5 // pred_check
        _
      $region10: #{tpu_custom_call.1} parent=5 // pred_check_branch
        %333 = sbr.rel (%p330) target = $region12
      $region11: #{tpu_custom_call.1} parent=5 // pred_region
        %s334 = ssub.s32 %s21, 1
        // Predicated region
        $region13: #{tpu_custom_call.1} parent=11 // pred_check
          %p335 = pneg %p82
        $region14: #{tpu_custom_call.1} parent=11 // pred_check_branch
          %337 = sbr.rel (%p335) target = $region16
        $region15: #{tpu_custom_call.1} parent=11 // pred_region
          _
        $region16: #{tpu_custom_call.1} parent=11 // pred_fallthru
          _
        // Predicated region
        $region17: #{tpu_custom_call.1} parent=11 // pred_check
          %p338 = pneg %p103
        $region18: #{tpu_custom_call.1} parent=11 // pred_check_branch
          %340 = sbr.rel (%p338) target = $region20
        $region19: #{tpu_custom_call.1} parent=11 // pred_region
          _
        $region20: #{tpu_custom_call.1} parent=11 // pred_fallthru
          _
        // Predicated region
        $region21: #{tpu_custom_call.1} parent=11 // pred_check
          %p341 = pneg %p124
        $region22: #{tpu_custom_call.1} parent=11 // pred_check_branch
          %343 = sbr.rel (%p341) target = $region24
        $region23: #{tpu_custom_call.1} parent=11 // pred_region
          _
        $region24: #{tpu_custom_call.1} parent=11 // pred_fallthru
          _
        // Predicated region
        $region25: #{tpu_custom_call.1} parent=11 // pred_check
          %p344 = pneg %p145
        $region26: #{tpu_custom_call.1} parent=11 // pred_check_branch
          %346 = sbr.rel (%p344) target = $region28
        $region27: #{tpu_custom_call.1} parent=11 // pred_region
          _
        $region28: #{tpu_custom_call.1} parent=11 // pred_fallthru
          _
        // Predicated region
        $region29: #{tpu_custom_call.1} parent=11 // pred_check
          %p347 = pneg %p166
        $region30: #{tpu_custom_call.1} parent=11 // pred_check_branch
          %349 = sbr.rel (%p347) target = $region32
        $region31: #{tpu_custom_call.1} parent=11 // pred_region
          _
        $region32: #{tpu_custom_call.1} parent=11 // pred_fallthru
          _
        // Predicated region
        $region33: #{tpu_custom_call.1} parent=11 // pred_check
          %p350 = pneg %p187
        $region34: #{tpu_custom_call.1} parent=11 // pred_check_branch
          %352 = sbr.rel (%p350) target = $region36
        $region35: #{tpu_custom_call.1} parent=11 // pred_region
          _
        $region36: #{tpu_custom_call.1} parent=11 // pred_fallthru
          _
        // Predicated region
        $region37: #{tpu_custom_call.1} parent=11 // pred_check
          %p353 = pneg %p208
        $region38: #{tpu_custom_call.1} parent=11 // pred_check_branch
          %355 = sbr.rel (%p353) target = $region40
        $region39: #{tpu_custom_call.1} parent=11 // pred_region
          _
        $region40: #{tpu_custom_call.1} parent=11 // pred_fallthru
          _
        // Predicated region
        $region41: #{tpu_custom_call.1} parent=11 // pred_check
          %p356 = pneg %p229
        $region42: #{tpu_custom_call.1} parent=11 // pred_check_branch
          %358 = sbr.rel (%p356) target = $region44
        $region43: #{tpu_custom_call.1} parent=11 // pred_region
          _
        $region44: #{tpu_custom_call.1} parent=11 // pred_fallthru
          _
        // Predicated region
        $region45: #{tpu_custom_call.1} parent=11 // pred_check
          %p359 = pneg %p250
        $region46: #{tpu_custom_call.1} parent=11 // pred_check_branch
          %361 = sbr.rel (%p359) target = $region48
        $region47: #{tpu_custom_call.1} parent=11 // pred_region
          _
        $region48: #{tpu_custom_call.1} parent=11 // pred_fallthru
          _
        // Predicated region
        $region49: #{tpu_custom_call.1} parent=11 // pred_check
          %p362 = pneg %p271
        $region50: #{tpu_custom_call.1} parent=11 // pred_check_branch
          %364 = sbr.rel (%p362) target = $region52
        $region51: #{tpu_custom_call.1} parent=11 // pred_region
          _
        $region52: #{tpu_custom_call.1} parent=11 // pred_fallthru
          _
        // Predicated region
        $region53: #{tpu_custom_call.1} parent=11 // pred_check
          %p365 = pneg %p292
        $region54: #{tpu_custom_call.1} parent=11 // pred_check_branch
          %367 = sbr.rel (%p365) target = $region56
        $region55: #{tpu_custom_call.1} parent=11 // pred_region
          _
        $region56: #{tpu_custom_call.1} parent=11 // pred_fallthru
          _
      $region12: #{tpu_custom_call.1} parent=5 // pred_fallthru
        _
      %p368 = scmp.lt.s32.totalorder %s21, 6
      // Predicated region
      $region57: #{tpu_custom_call.1} parent=5 // pred_check
        %p369 = pneg %p368
      $region58: #{tpu_custom_call.1} parent=5 // pred_check_branch
        %371 = sbr.rel (%p369) target = $region60
      $region59: #{tpu_custom_call.1} parent=5 // pred_region
        // Predicated region
        $region61: #{tpu_custom_call.1} parent=59 // pred_check
          %p372 = pneg %p55
        $region62: #{tpu_custom_call.1} parent=59 // pred_check_branch
          %374 = sbr.rel (%p372) target = $region64
        $region63: #{tpu_custom_call.1} parent=59 // pred_region
          %p375 = scmp.lt.s32.totalorder %s28, 1
          %s376 = scalar_select %p375, %s28, 1
          %p377 = scmp.lt.s32.totalorder %s29, 2
          %s378 = scalar_select %p377, %s29, 2
          %s379 = smul.addr %s376, 3
          %s380 = sadd.s32 %s378, %s379
          %s381 = smul.addr %s380, 8
          %s382 = scalar_lea.vmem %s0, %s381
        $region64: #{tpu_custom_call.1} parent=59 // pred_fallthru
          _
      $region60: #{tpu_custom_call.1} parent=5 // pred_fallthru
        _
      %p383 = scmp.le.s32.totalorder 1, %s21
      %p384 = scmp.lt.s32.totalorder %s21, 7
      %p385 = pnand %p383, %p384
      %p386 = pneg %p385
      // Predicated region
      $region65: #{tpu_custom_call.1} parent=5 // pred_check
        _
      $region66: #{tpu_custom_call.1} parent=5 // pred_check_branch
        %388 = sbr.rel (%p385) target = $region68
      $region67: #{tpu_custom_call.1} parent=5 // pred_region
        %s389 = ssub.s32 %s21, 1
        %p390 = scmp.lt.s32.totalorder %s30, 1
        %s391 = scalar_select %p390, %s30, 1
        %p392 = scmp.lt.s32.totalorder %s31, 2
        %s393 = scalar_select %p392, %s31, 2
        %s394 = smul.addr %s391, 3
        %s395 = sadd.s32 %s393, %s394
        %s396 = smul.addr %s395, 8
        %s397 = scalar_lea.vmem %s0, %s396
        %p398 = pneg %p61
        %p399 = pneg %p58
        %p400 = pneg %p82
        %p401 = pneg %p79
        %p402 = pneg %p103
        %p403 = pneg %p100
        %p404 = pneg %p124
        %p405 = pneg %p121
        %p406 = pneg %p145
        %p407 = pneg %p142
        %p408 = pneg %p166
        %p409 = pneg %p163
        %p410 = pneg %p187
        %p411 = pneg %p184
        %p412 = pneg %p208
        %p413 = pneg %p205
        %p414 = pneg %p229
        %p415 = pneg %p226
        %p416 = pneg %p250
        %p417 = pneg %p247
        %p418 = pneg %p271
        %p419 = pneg %p268
        %p420 = pneg %p292
        %p421 = pneg %p289
        %p422 = pneg %p320
        %p423 = pneg %p317
        %s424 = sand.u32 %s307, 1
        %s425 = scalar_lea.sflag [#allocation10], %s424
        %s426 = sand.u32 %s307, 1
        %s427 = smul.addr %s426, 8
        %s428 = scalar_lea.vmem [#allocation9], %s427
        %p429 = scmp.lt.s32.totalorder %s30, 1
        %s430 = scalar_select %p429, %s30, 1
        %p431 = scmp.lt.s32.totalorder %s31, 2
        %s432 = scalar_select %p431, %s31, 2
        %s433 = smul.addr %s430, 3
        %s434 = sadd.s32 %s432, %s433
        %s435 = smul.addr %s434, 8
        %s436 = scalar_lea.vmem %s0, %s435
        %p438 = scmp.eq.s32.totalorder %s31, 0
        // Predicated region
        $region69: #{tpu_custom_call.1} parent=67 // pred_check
          %p439 = pneg %p438
        $region70: #{tpu_custom_call.1} parent=67 // pred_check_branch
          %441 = sbr.rel (%p439) target = $region72
        $region71: #{tpu_custom_call.1} parent=67 // pred_region
          %vm442 = vcmask 523264
          %443 = vst.msk [vmem:[#allocation8] sm:$0xff] %vm442, 0.0
          %444 = vst.msk [vmem:[#allocation8 + $0x8] sm:$0xff] %vm442, 0.0
          %445 = vst.msk [vmem:[#allocation2] sm:$0xff] %vm442, 0.0
        $region72: #{tpu_custom_call.1} parent=67 // pred_fallthru
          _
        %v446 = vld [vmem:[%s436] sm:$0xff]
        %v447 = vpack.c.bf16 %v446, %v446
        %v448 = vld [vmem:[%s1] sm:$0xf]
        %v449 = vld [vmem:[%s1 + $0x4] sm:$0xf]
        %v450 = vld [vmem:[%s1 + $0x8] sm:$0xf]
        %v451 = vld [vmem:[%s1 + $0xc] sm:$0xf]
        %v456 = vunpack.c.l.b16 %v448
        %v457 = vunpack.c.l.b16 %v449
        %v458 = vunpack.c.l.b16 %v450
        %v459 = vunpack.c.l.b16 %v451
        %v460 = vpack.c.b16 %v457, %v456
        %v461 = vpack.c.b16 %v459, %v458
        %vm464 = vcmask 261120
        %v466 = vsel %vm464, %v447, 0
        %468 = vmatpush.bf16.msra.mxu0 0
        %469 = vmatpush.bf16.msra.mxu0 0
        %470 = vmatpush.bf16.msra.mxu0 0
        %471 = vmatpush.bf16.msra.mxu0 0
        %472 = vmatpush.bf16.msra.mxu0 0
        %473 = vmatpush.bf16.msra.mxu0 0
        %474 = vmatpush.bf16.msra.mxu0 %v461
        %475 = vmatpush.bf16.msra.mxu0 %v460
        %476 = vmatmul.bf16.gmra.mxu0 %v466
        %v477 = vpop.f32.mrf.mxu0
        %v478 = vadd.f32 0.0, %v477
        %v479 = vpop.f32.mrf.mxu0
        %480 = vdwg.mxu0
        %v481 = vld [vmem:[%s2] sm:$0xf]
        %v482 = vld [vmem:[%s2 + $0x4] sm:$0xf]
        %v483 = vld [vmem:[%s2 + $0x8] sm:$0xf]
        %v484 = vld [vmem:[%s2 + $0xc] sm:$0xf]
        %v489 = vunpack.c.l.b16 %v481
        %v490 = vunpack.c.l.b16 %v482
        %v491 = vunpack.c.l.b16 %v483
        %v492 = vunpack.c.l.b16 %v484
        %v493 = vpack.c.b16 %v490, %v489
        %v494 = vpack.c.b16 %v492, %v491
        %497 = vmatpush.bf16.msra.mxu0 0
        %498 = vmatpush.bf16.msra.mxu0 0
        %499 = vmatpush.bf16.msra.mxu0 0
        %500 = vmatpush.bf16.msra.mxu0 0
        %501 = vmatpush.bf16.msra.mxu0 0
        %502 = vmatpush.bf16.msra.mxu0 0
        %503 = vmatpush.bf16.msra.mxu0 %v494
        %504 = vmatpush.bf16.msra.mxu0 %v493
        %505 = vmatmul.bf16.gmra.mxu0 %v466
        %v506 = vpop.f32.mrf.mxu0
        %v507 = vadd.f32 0.0, %v506
        %v508 = vpop.f32.mrf.mxu0
        %509 = vdwg.mxu0
        %v510 = vxor.u32 %v507, 2147483648
        %v511 = vmul.f32 %v510, 1.442695
        %v512 = vpow.pop %v511
        %v513 = vadd.f32 %v512, 1.0
        %v514 = vrcp.pop %v513
        %v515 = vmul.f32 %v513, %v514
        %v516 = vsub.f32 1.0, %v515
        %v517 = vmul.f32 %v514, %v516
        %v518 = vadd.f32 %v514, %v517
        %vm519 = vweird.f32 %v513
        %vm520 = vweird.f32 %v514
        %vm521 = vmor %vm519, %vm520
        %v522 = vsel %vm521, %v514, %v518
        %v523 = vand.u32 2147483647, %v513
        %vm524 = vcmp.eq.f32.partialorder %v523, 8.507059e+37
        %v525 = vand.u32 %v513, 2147483648
        %v526 = vor.u32 1.1754944e-38, %v525
        %v527 = vsel %vm524, %v526, %v522
        %v528 = vmul.f32 1.0, %v527
        %v529 = vmul.f32 %v507, %v528
        %vm530 = vcmask 523264
        %531 = vst.msk [vmem:[#allocation5] sm:$0xff] %vm530, %v529
        %532 = vst.msk [vmem:[#allocation2 + $0x8] sm:$0xff] %vm530, %v478
        %v533 = vld [vmem:[%s3 + $0x3] sm:$0x1]
        %v534 = vperm.slane %v533, 0
        %v535 = vmul.f32 %v478, %v534
        %v536 = vld [vmem:[#allocation2 + $0x5] sm:$0xff]
        %v537 = vld [vmem:[%s3] sm:$0x1]
        %v538 = vperm.slane %v537, 0
        %v539 = vmul.f32 %v536, %v538
        %v540 = vadd.f32 %v535, %v539
        %v541 = vld [vmem:[#allocation2 + $0x6] sm:$0xff]
        %v542 = vld [vmem:[%s3 + $0x1] sm:$0x1]
        %v543 = vperm.slane %v542, 0
        %v544 = vmul.f32 %v541, %v543
        %v545 = vadd.f32 %v540, %v544
        %v546 = vld [vmem:[#allocation2 + $0x7] sm:$0xff]
        %v547 = vld [vmem:[%s3 + $0x2] sm:$0x1]
        %v548 = vperm.slane %v547, 0
        %v549 = vmul.f32 %v546, %v548
        %v550 = vadd.f32 %v545, %v549
        %v551 = vld [vmem:[%s4] sm:$0x1]
        %v553 = vperm.slane %v551, 0
        %v555 = vadd.f32 %v550, %v553
        %v556 = vxor.u32 %v555, 2147483648
        %v557 = vmul.f32 %v556, 1.442695
        %v558 = vpow.pop %v557
        %v559 = vadd.f32 %v558, 1.0
        %v560 = vrcp.pop %v559
        %v561 = vmul.f32 %v559, %v560
        %v562 = vsub.f32 1.0, %v561
        %v563 = vmul.f32 %v560, %v562
        %v564 = vadd.f32 %v560, %v563
        %vm565 = vweird.f32 %v559
        %vm566 = vweird.f32 %v560
        %vm567 = vmor %vm565, %vm566
        %v568 = vsel %vm567, %v560, %v564
        %v569 = vand.u32 2147483647, %v559
        %vm570 = vcmp.eq.f32.partialorder %v569, 8.507059e+37
        %v571 = vand.u32 %v559, 2147483648
        %v572 = vor.u32 1.1754944e-38, %v571
        %v573 = vsel %vm570, %v572, %v568
        %v574 = vmul.f32 1.0, %v573
        %v575 = vmul.f32 %v555, %v574
        %576 = vst.msk [vmem:[#allocation3] sm:$0xff] %vm530, %v575
        %v577 = vld [vmem:[#allocation2 + $0x8] sm:$0xff]
        %578 = vst.msk [vmem:[#allocation2] sm:$0xff] %vm530, %v577
        %v579 = vpack.c.bf16 %v575, %v575
        %v580 = vld [vmem:[%s6] sm:$0xf]
        %v581 = vld [vmem:[%s6 + $0x4] sm:$0xf]
        %v582 = vld [vmem:[%s6 + $0x8] sm:$0xf]
        %v583 = vld [vmem:[%s6 + $0xc] sm:$0xf]
        %v584 = vld [vmem:[%s6 + $0x10] sm:$0xf]
        %v585 = vld [vmem:[%s6 + $0x14] sm:$0xf]
        %v586 = vld [vmem:[%s6 + $0x18] sm:$0xf]
        %v587 = vld [vmem:[%s6 + $0x1c] sm:$0xf]
        %v596 = vunpack.c.l.b16 %v580
        %v597 = vunpack.c.l.b16 %v581
        %v598 = vunpack.c.l.b16 %v582
        %v599 = vunpack.c.l.b16 %v583
        %v600 = vunpack.c.l.b16 %v584
        %v601 = vunpack.c.l.b16 %v585
        %v602 = vunpack.c.l.b16 %v586
        %v603 = vunpack.c.l.b16 %v587
        %v604 = vpack.c.b16 %v597, %v596
        %v605 = vpack.c.b16 %v599, %v598
        %v606 = vpack.c.b16 %v601, %v600
        %v607 = vpack.c.b16 %v603, %v602
        %v613 = vsel %vm530, %v579, 0
        %615 = vmatpush.bf16.msra.mxu0 0
        %616 = vmatpush.bf16.msra.mxu0 0
        %617 = vmatpush.bf16.msra.mxu0 0
        %618 = vmatpush.bf16.msra.mxu0 0
        %619 = vmatpush.bf16.msra.mxu0 %v607
        %620 = vmatpush.bf16.msra.mxu0 %v606
        %621 = vmatpush.bf16.msra.mxu0 %v605
        %622 = vmatpush.bf16.msra.mxu0 %v604
        %623 = vmatmul.bf16.gmra.mxu0 %v613
        %v624 = vpop.f32.mrf.mxu0
        %v625 = vadd.f32 0.0, %v624
        %v626 = vpop.f32.mrf.mxu0
        %627 = vdwg.mxu0
        %v628 = vld [vmem:[%s5] sm:$0xf]
        %v629 = vld [vmem:[%s5 + $0x4] sm:$0xf]
        %v630 = vld [vmem:[%s5 + $0x8] sm:$0xf]
        %v631 = vld [vmem:[%s5 + $0xc] sm:$0xf]
        %v632 = vld [vmem:[%s5 + $0x10] sm:$0xf]
        %v633 = vld [vmem:[%s5 + $0x14] sm:$0xf]
        %v634 = vld [vmem:[%s5 + $0x18] sm:$0xf]
        %v635 = vld [vmem:[%s5 + $0x1c] sm:$0xf]
        %v644 = vunpack.c.l.b16 %v628
        %v645 = vunpack.c.l.b16 %v629
        %v646 = vunpack.c.l.b16 %v630
        %v647 = vunpack.c.l.b16 %v631
        %v648 = vunpack.c.l.b16 %v632
        %v649 = vunpack.c.l.b16 %v633
        %v650 = vunpack.c.l.b16 %v634
        %v651 = vunpack.c.l.b16 %v635
        %v652 = vpack.c.b16 %v645, %v644
        %v653 = vpack.c.b16 %v647, %v646
        %v654 = vpack.c.b16 %v649, %v648
        %v655 = vpack.c.b16 %v651, %v650
        %660 = vmatpush.bf16.msra.mxu0 0
        %661 = vmatpush.bf16.msra.mxu0 0
        %662 = vmatpush.bf16.msra.mxu0 0
        %663 = vmatpush.bf16.msra.mxu0 0
        %664 = vmatpush.bf16.msra.mxu0 %v655
        %665 = vmatpush.bf16.msra.mxu0 %v654
        %666 = vmatpush.bf16.msra.mxu0 %v653
        %667 = vmatpush.bf16.msra.mxu0 %v652
        %668 = vmatmul.bf16.gmra.mxu0 %v613
        %v669 = vpop.f32.mrf.mxu0
        %v670 = vadd.f32 0.0, %v669
        %v671 = vpop.f32.mrf.mxu0
        %672 = vdwg.mxu0
        %v673 = vpack.c.bf16 %v670, %v670
        %v674 = vld [vmem:[%s7] sm:$0xf]
        %v675 = vld [vmem:[%s7 + $0x4] sm:$0xf]
        %v676 = vld [vmem:[%s7 + $0x8] sm:$0xf]
        %v677 = vld [vmem:[%s7 + $0xc] sm:$0xf]
        %v678 = vld [vmem:[%s7 + $0x10] sm:$0xf]
        %v679 = vld [vmem:[%s7 + $0x14] sm:$0xf]
        %v680 = vld [vmem:[%s7 + $0x18] sm:$0xf]
        %v681 = vld [vmem:[%s7 + $0x1c] sm:$0xf]
        %v682 = vld [vmem:[%s7 + $0x20] sm:$0xf]
        %v683 = vld [vmem:[%s7 + $0x24] sm:$0xf]
        %v684 = vld [vmem:[%s7 + $0x28] sm:$0xf]
        %v685 = vld [vmem:[%s7 + $0x2c] sm:$0xf]
        %v686 = vld [vmem:[%s7 + $0x30] sm:$0xf]
        %v687 = vld [vmem:[%s7 + $0x34] sm:$0xf]
        %v688 = vld [vmem:[%s7 + $0x38] sm:$0xf]
        %v689 = vld [vmem:[%s7 + $0x3c] sm:$0xf]
        %v690 = vld [vmem:[%s8] sm:$0x1]
        %v692 = vperm.slane %v690, 0
        %v710 = vunpack.c.l.b16 %v674
        %v711 = vunpack.c.l.b16 %v675
        %v712 = vunpack.c.l.b16 %v676
        %v713 = vunpack.c.l.b16 %v677
        %v714 = vunpack.c.l.b16 %v678
        %v715 = vunpack.c.l.b16 %v679
        %v716 = vunpack.c.l.b16 %v680
        %v717 = vunpack.c.l.b16 %v681
        %v718 = vunpack.c.l.b16 %v682
        %v719 = vunpack.c.l.b16 %v683
        %v720 = vunpack.c.l.b16 %v684
        %v721 = vunpack.c.l.b16 %v685
        %v722 = vunpack.c.l.b16 %v686
        %v723 = vunpack.c.l.b16 %v687
        %v724 = vunpack.c.l.b16 %v688
        %v725 = vunpack.c.l.b16 %v689
        %v726 = vpack.c.b16 %v711, %v710
        %v727 = vpack.c.b16 %v713, %v712
        %v728 = vpack.c.b16 %v715, %v714
        %v729 = vpack.c.b16 %v717, %v716
        %v730 = vpack.c.b16 %v719, %v718
        %v731 = vpack.c.b16 %v721, %v720
        %v732 = vpack.c.b16 %v723, %v722
        %v733 = vpack.c.b16 %v725, %v724
        %742 = vmatpush.bf16.msra.mxu0 %v733
        %743 = vmatpush.bf16.msra.mxu0 %v732
        %744 = vmatpush.bf16.msra.mxu0 %v731
        %745 = vmatpush.bf16.msra.mxu0 %v730
        %746 = vmatpush.bf16.msra.mxu0 %v729
        %747 = vmatpush.bf16.msra.mxu0 %v728
        %748 = vmatpush.bf16.msra.mxu0 %v727
        %749 = vmatpush.bf16.msra.mxu0 %v726
        %750 = vmatmul.bf16.gmra.mxu0 %v673
        %v751 = vpop.f32.mrf.mxu0
        %v752 = vadd.f32 %v692, %v751
        %v753 = vpop.f32.mrf.mxu0
        %754 = vdwg.mxu0
        %v755 = vmax.f32 %v752, 0.0
        %v756 = vand.u32 2147483647, %v752
        %v757 = vsub.f32 0.0, %v756
        %v758 = vmul.f32 %v757, 1.442695
        %v759 = vpow.pop %v758
        %v760 = vadd.f32 %v759, 1.0
        %v761 = vlog2.pop %v760
        %v762 = vmul.f32 %v761, 0.6931472
        %v763 = vmul.f32 -0.5, %v759
        %v764 = vadd.f32 %v763, 1.0
        %v765 = vmul.f32 %v764, %v759
        %v766 = vand.u32 2147483647, %v759
        %vm767 = vcmp.lt.f32.partialorder %v766, 0.0004427343
        %v768 = vsel %vm767, %v765, %v762
        %v769 = vadd.f32 %v755, %v768
        %770 = vst.msk [vmem:[#allocation4] sm:$0xff] %vm530, %v769
        %v771 = vlaneseq
        %v772 = vshrl.u32 %v771, 7
        %v773 = vadd.s32 %v772, 8
        %v774 = vadd.s32 %v772, 16
        %v775 = vadd.s32 %v772, 24
        %v776 = vlaneseq
        %v777 = vand.u32 %v776, 127
        %vm778 = vcmp.eq.s32.totalorder %v772, %v777
        %vm779 = vcmp.eq.s32.totalorder %v773, %v777
        %vm780 = vcmp.eq.s32.totalorder %v774, %v777
        %vm781 = vcmp.eq.s32.totalorder %v775, %v777
        %v782 = vsel %vm778, 1, 0
        %v783 = vsel %vm779, 1, 0
        %v784 = vsel %vm780, 1, 0
        %v785 = vsel %vm781, 1, 0
        %v786 = vcvt.s32.f32 %v782
        %v787 = vcvt.s32.f32 %v783
        %v788 = vcvt.s32.f32 %v784
        %v789 = vcvt.s32.f32 %v785
        %v791 = vsel %vm464, %v786, 0
        %v794 = vsel %vm464, %v787, 0
        %v797 = vsel %vm464, %v788, 0
        %v800 = vsel %vm464, %v789, 0
        %v803 = vsel %vm464, %v625, 0
        %805 = vmatpush.xpose.msra.mxu0 0.0
        %806 = vmatpush.xpose.msra.mxu0 0.0
        %807 = vmatpush.xpose.msra.mxu0 0.0
        %808 = vmatpush.xpose.msra.mxu0 0.0
        %809 = vmatpush.xpose.msra.mxu0 0.0
        %810 = vmatpush.xpose.msra.mxu0 0.0
        %811 = vmatpush.xpose.msra.mxu0 0.0
        %812 = vmatpush.xpose.msra.mxu0 0.0
        %813 = vmatpush.xpose.msra.mxu0 0.0
        %814 = vmatpush.xpose.msra.mxu0 0.0
        %815 = vmatpush.xpose.msra.mxu0 0.0
        %816 = vmatpush.xpose.msra.mxu0 0.0
        %817 = vmatpush.xpose.msra.mxu0 0.0
        %818 = vmatpush.xpose.msra.mxu0 0.0
        %819 = vmatpush.xpose.msra.mxu0 0.0
        %820 = vmatpush.xpose.msra.mxu0 %v803
        %821 = vmatmul.f32.gmra.mxu0 %v791
        %v822 = vpop.f32.mrf.mxu0
        %v823 = vadd.f32 0.0, %v822
        %824 = vmatmul.f32.gmra.mxu0 %v794
        %v825 = vpop.f32.mrf.mxu0
        %v826 = vadd.f32 0.0, %v825
        %827 = vmatmul.f32.gmra.mxu0 %v797
        %v828 = vpop.f32.mrf.mxu0
        %v829 = vadd.f32 0.0, %v828
        %830 = vmatmul.f32.gmra.mxu0 %v800
        %v831 = vpop.f32.mrf.mxu0
        %v832 = vadd.f32 0.0, %v831
        %833 = vdwg.mxu0
        %vm834 = vcmask 64512
        %835 = vst.msk [vmem:[#allocation7] sm:$0xff] %vm834, %v823
        %836 = vst.msk [vmem:[#allocation7 + $0x8] sm:$0xff] %vm834, %v826
        %837 = vst.msk [vmem:[#allocation7 + $0x10] sm:$0xff] %vm834, %v829
        %838 = vst.msk [vmem:[#allocation7 + $0x18] sm:$0xff] %vm834, %v832
        %v839 = vld [vmem:[#allocation4] sm:$0xff]
        %v840 = vld [vmem:[#allocation3] sm:$0xff]
        %v841 = vld [vmem:[#allocation5] sm:$0xff]
        %v842 = vmul.f32 %v839, %v840
        %v843 = vld [vmem:[%s9] sm:$0xff]
        %v844 = vld [vmem:[%s9 + $0x8] sm:$0xff]
        %v845 = vperm.slane %v839, 0
        %v846 = vmul.f32 %v843, %v845
        %v847 = vmul.f32 %v844, %v845
        %v848 = vmul.f32 %v846, 1.442695
        %v849 = vpow.pop %v848
        %v850 = vmul.f32 %v847, 1.442695
        %v851 = vpow.pop %v850
        %v852 = vperm.slane %v839, 1
        %v853 = vmul.f32 %v843, %v852
        %v854 = vmul.f32 %v844, %v852
        %v855 = vmul.f32 %v853, 1.442695
        %v856 = vpow.pop %v855
        %v857 = vmul.f32 %v854, 1.442695
        %v858 = vpow.pop %v857
        %v859 = vperm.slane %v839, 2
        %v860 = vmul.f32 %v843, %v859
        %v861 = vmul.f32 %v844, %v859
        %v862 = vmul.f32 %v860, 1.442695
        %v863 = vpow.pop %v862
        %v864 = vmul.f32 %v861, 1.442695
        %v865 = vpow.pop %v864
        %v866 = vperm.slane %v839, 3
        %v867 = vmul.f32 %v843, %v866
        %v868 = vmul.f32 %v844, %v866
        %v869 = vmul.f32 %v867, 1.442695
        %v870 = vpow.pop %v869
        %v871 = vmul.f32 %v868, 1.442695
        %v872 = vpow.pop %v871
        %v873 = vperm.slane %v839, 4
        %v874 = vmul.f32 %v843, %v873
        %v875 = vmul.f32 %v844, %v873
        %v876 = vmul.f32 %v874, 1.442695
        %v877 = vpow.pop %v876
        %v878 = vmul.f32 %v875, 1.442695
        %v879 = vpow.pop %v878
        %v880 = vperm.slane %v839, 5
        %v881 = vmul.f32 %v843, %v880
        %v882 = vmul.f32 %v844, %v880
        %v883 = vmul.f32 %v881, 1.442695
        %v884 = vpow.pop %v883
        %v885 = vmul.f32 %v882, 1.442695
        %v886 = vpow.pop %v885
        %v887 = vperm.slane %v839, 6
        %v888 = vmul.f32 %v843, %v887
        %v889 = vmul.f32 %v844, %v887
        %v890 = vmul.f32 %v888, 1.442695
        %v891 = vpow.pop %v890
        %v892 = vmul.f32 %v889, 1.442695
        %v893 = vpow.pop %v892
        %v894 = vperm.slane %v839, 7
        %v895 = vmul.f32 %v843, %v894
        %v896 = vmul.f32 %v844, %v894
        %v897 = vmul.f32 %v895, 1.442695
        %v898 = vpow.pop %v897
        %v899 = vmul.f32 %v896, 1.442695
        %v900 = vpow.pop %v899
        %v901 = vld [vmem:[#allocation7] sm:$0xff]
        %v902 = vld [vmem:[#allocation7 + $0x8] sm:$0xff]
        %v903 = vld [vmem:[#allocation7 + $0x10] sm:$0xff]
        %v904 = vld [vmem:[#allocation7 + $0x18] sm:$0xff]
        %v905 = vld [vmem:[#allocation8] sm:$0xff]
        %v906 = vld [vmem:[#allocation8 + $0x8] sm:$0xff]
        %v907 = vmul.f32 %v849, %v905
        %v908 = vmul.f32 %v851, %v906
        %910 = vset.pattern.permute.xlu0 0
        %911 = vperm.xlu0 %910, %v901
        %v912 = vpop.permute.xlu0 %911
        %915 = vset.pattern.permute.xlu0 0
        %916 = vperm.xlu0 %915, %v902
        %v917 = vpop.permute.xlu0 %916
        %v919 = vperm.slane %v842, 0
        %v920 = vmul.f32 %v912, %v919
        %v921 = vmul.f32 %v917, %v919
        %v922 = vadd.f32 %v907, %v920
        %v923 = vadd.f32 %v908, %v921
        %925 = vset.pattern.permute.xlu0 0
        %926 = vperm.xlu0 %925, %v903
        %v927 = vpop.permute.xlu0 %926
        %930 = vset.pattern.permute.xlu0 0
        %931 = vperm.xlu0 %930, %v904
        %v932 = vpop.permute.xlu0 %931
        %v934 = vmul.f32 %v927, %v922
        %v935 = vmul.f32 %v932, %v923
        %v936 = vsel %vm530, %v934, 0.0
        %v937 = vsel %vm530, %v935, 0.0
        %v938 = vadd.f32 %v936, %v937
        %v939 = vrot.slane %v938, 4
        %v940 = vadd.f32 %v938, %v939
        %v941 = vrot.slane %v940, 2
        %v942 = vadd.f32 %v940, %v941
        %v943 = vrot.slane %v942, 1
        %v944 = vadd.f32 %v942, %v943
        %v945 = vmul.f32 %v856, %v922
        %v946 = vmul.f32 %v858, %v923
        %947 = vset.pattern.permute.xlu0 1
        %948 = vperm.xlu0 %947, %v901
        %v949 = vpop.permute.xlu0 %948
        %951 = vset.pattern.permute.xlu0 1
        %952 = vperm.xlu0 %951, %v902
        %v953 = vpop.permute.xlu0 %952
        %v955 = vperm.slane %v842, 1
        %v956 = vmul.f32 %v949, %v955
        %v957 = vmul.f32 %v953, %v955
        %v958 = vadd.f32 %v945, %v956
        %v959 = vadd.f32 %v946, %v957
        %960 = vset.pattern.permute.xlu0 1
        %961 = vperm.xlu0 %960, %v903
        %v962 = vpop.permute.xlu0 %961
        %964 = vset.pattern.permute.xlu0 1
        %965 = vperm.xlu0 %964, %v904
        %v966 = vpop.permute.xlu0 %965
        %v968 = vmul.f32 %v962, %v958
        %v969 = vmul.f32 %v966, %v959
        %v970 = vsel %vm530, %v968, 0.0
        %v971 = vsel %vm530, %v969, 0.0
        %v972 = vadd.f32 %v970, %v971
        %v973 = vrot.slane %v972, 4
        %v974 = vadd.f32 %v972, %v973
        %v975 = vrot.slane %v974, 2
        %v976 = vadd.f32 %v974, %v975
        %v977 = vrot.slane %v976, 1
        %v978 = vadd.f32 %v976, %v977
        %v979 = vmul.f32 %v863, %v958
        %v980 = vmul.f32 %v865, %v959
        %981 = vset.pattern.permute.xlu0 2
        %982 = vperm.xlu0 %981, %v901
        %v983 = vpop.permute.xlu0 %982
        %985 = vset.pattern.permute.xlu0 2
        %986 = vperm.xlu0 %985, %v902
        %v987 = vpop.permute.xlu0 %986
        %v989 = vperm.slane %v842, 2
        %v990 = vmul.f32 %v983, %v989
        %v991 = vmul.f32 %v987, %v989
        %v992 = vadd.f32 %v979, %v990
        %v993 = vadd.f32 %v980, %v991
        %994 = vset.pattern.permute.xlu0 2
        %995 = vperm.xlu0 %994, %v903
        %v996 = vpop.permute.xlu0 %995
        %998 = vset.pattern.permute.xlu0 2
        %999 = vperm.xlu0 %998, %v904
        %v1000 = vpop.permute.xlu0 %999
        %v1002 = vmul.f32 %v996, %v992
        %v1003 = vmul.f32 %v1000, %v993
        %v1004 = vsel %vm530, %v1002, 0.0
        %v1005 = vsel %vm530, %v1003, 0.0
        %v1006 = vadd.f32 %v1004, %v1005
        %v1007 = vrot.slane %v1006, 4
        %v1008 = vadd.f32 %v1006, %v1007
        %v1009 = vrot.slane %v1008, 2
        %v1010 = vadd.f32 %v1008, %v1009
        %v1011 = vrot.slane %v1010, 1
        %v1012 = vadd.f32 %v1010, %v1011
        %v1013 = vmul.f32 %v870, %v992
        %v1014 = vmul.f32 %v872, %v993
        %1015 = vset.pattern.permute.xlu0 3
        %1016 = vperm.xlu0 %1015, %v901
        %v1017 = vpop.permute.xlu0 %1016
        %1019 = vset.pattern.permute.xlu0 3
        %1020 = vperm.xlu0 %1019, %v902
        %v1021 = vpop.permute.xlu0 %1020
        %v1023 = vperm.slane %v842, 3
        %v1024 = vmul.f32 %v1017, %v1023
        %v1025 = vmul.f32 %v1021, %v1023
        %v1026 = vadd.f32 %v1013, %v1024
        %v1027 = vadd.f32 %v1014, %v1025
        %1028 = vset.pattern.permute.xlu0 3
        %1029 = vperm.xlu0 %1028, %v903
        %v1030 = vpop.permute.xlu0 %1029
        %1032 = vset.pattern.permute.xlu0 3
        %1033 = vperm.xlu0 %1032, %v904
        %v1034 = vpop.permute.xlu0 %1033
        %v1036 = vmul.f32 %v1030, %v1026
        %v1037 = vmul.f32 %v1034, %v1027
        %v1038 = vsel %vm530, %v1036, 0.0
        %v1039 = vsel %vm530, %v1037, 0.0
        %v1040 = vadd.f32 %v1038, %v1039
        %v1041 = vrot.slane %v1040, 4
        %v1042 = vadd.f32 %v1040, %v1041
        %v1043 = vrot.slane %v1042, 2
        %v1044 = vadd.f32 %v1042, %v1043
        %v1045 = vrot.slane %v1044, 1
        %v1046 = vadd.f32 %v1044, %v1045
        %v1047 = vmul.f32 %v877, %v1026
        %v1048 = vmul.f32 %v879, %v1027
        %1049 = vset.pattern.permute.xlu0 4
        %1050 = vperm.xlu0 %1049, %v901
        %v1051 = vpop.permute.xlu0 %1050
        %1053 = vset.pattern.permute.xlu0 4
        %1054 = vperm.xlu0 %1053, %v902
        %v1055 = vpop.permute.xlu0 %1054
        %v1057 = vperm.slane %v842, 4
        %v1058 = vmul.f32 %v1051, %v1057
        %v1059 = vmul.f32 %v1055, %v1057
        %v1060 = vadd.f32 %v1047, %v1058
        %v1061 = vadd.f32 %v1048, %v1059
        %1062 = vset.pattern.permute.xlu0 4
        %1063 = vperm.xlu0 %1062, %v903
        %v1064 = vpop.permute.xlu0 %1063
        %1066 = vset.pattern.permute.xlu0 4
        %1067 = vperm.xlu0 %1066, %v904
        %v1068 = vpop.permute.xlu0 %1067
        %v1070 = vmul.f32 %v1064, %v1060
        %v1071 = vmul.f32 %v1068, %v1061
        %v1072 = vsel %vm530, %v1070, 0.0
        %v1073 = vsel %vm530, %v1071, 0.0
        %v1074 = vadd.f32 %v1072, %v1073
        %v1075 = vrot.slane %v1074, 4
        %v1076 = vadd.f32 %v1074, %v1075
        %v1077 = vrot.slane %v1076, 2
        %v1078 = vadd.f32 %v1076, %v1077
        %v1079 = vrot.slane %v1078, 1
        %v1080 = vadd.f32 %v1078, %v1079
        %v1081 = vmul.f32 %v884, %v1060
        %v1082 = vmul.f32 %v886, %v1061
        %1083 = vset.pattern.permute.xlu0 5
        %1084 = vperm.xlu0 %1083, %v901
        %v1085 = vpop.permute.xlu0 %1084
        %1087 = vset.pattern.permute.xlu0 5
        %1088 = vperm.xlu0 %1087, %v902
        %v1089 = vpop.permute.xlu0 %1088
        %v1091 = vperm.slane %v842, 5
        %v1092 = vmul.f32 %v1085, %v1091
        %v1093 = vmul.f32 %v1089, %v1091
        %v1094 = vadd.f32 %v1081, %v1092
        %v1095 = vadd.f32 %v1082, %v1093
        %1096 = vset.pattern.permute.xlu0 5
        %1097 = vperm.xlu0 %1096, %v903
        %v1098 = vpop.permute.xlu0 %1097
        %1100 = vset.pattern.permute.xlu0 5
        %1101 = vperm.xlu0 %1100, %v904
        %v1102 = vpop.permute.xlu0 %1101
        %v1104 = vmul.f32 %v1098, %v1094
        %v1105 = vmul.f32 %v1102, %v1095
        %v1106 = vsel %vm530, %v1104, 0.0
        %v1107 = vsel %vm530, %v1105, 0.0
        %v1108 = vadd.f32 %v1106, %v1107
        %v1109 = vrot.slane %v1108, 4
        %v1110 = vadd.f32 %v1108, %v1109
        %v1111 = vrot.slane %v1110, 2
        %v1112 = vadd.f32 %v1110, %v1111
        %v1113 = vrot.slane %v1112, 1
        %v1114 = vadd.f32 %v1112, %v1113
        %v1115 = vmul.f32 %v891, %v1094
        %v1116 = vmul.f32 %v893, %v1095
        %1117 = vset.pattern.permute.xlu0 6
        %1118 = vperm.xlu0 %1117, %v901
        %v1119 = vpop.permute.xlu0 %1118
        %1121 = vset.pattern.permute.xlu0 6
        %1122 = vperm.xlu0 %1121, %v902
        %v1123 = vpop.permute.xlu0 %1122
        %v1125 = vperm.slane %v842, 6
        %v1126 = vmul.f32 %v1119, %v1125
        %v1127 = vmul.f32 %v1123, %v1125
        %v1128 = vadd.f32 %v1115, %v1126
        %v1129 = vadd.f32 %v1116, %v1127
        %1130 = vset.pattern.permute.xlu0 6
        %1131 = vperm.xlu0 %1130, %v903
        %v1132 = vpop.permute.xlu0 %1131
        %1134 = vset.pattern.permute.xlu0 6
        %1135 = vperm.xlu0 %1134, %v904
        %v1136 = vpop.permute.xlu0 %1135
        %v1138 = vmul.f32 %v1132, %v1128
        %v1139 = vmul.f32 %v1136, %v1129
        %v1140 = vsel %vm530, %v1138, 0.0
        %v1141 = vsel %vm530, %v1139, 0.0
        %v1142 = vadd.f32 %v1140, %v1141
        %v1143 = vrot.slane %v1142, 4
        %v1144 = vadd.f32 %v1142, %v1143
        %v1145 = vrot.slane %v1144, 2
        %v1146 = vadd.f32 %v1144, %v1145
        %v1147 = vrot.slane %v1146, 1
        %v1148 = vadd.f32 %v1146, %v1147
        %v1149 = vmul.f32 %v898, %v1128
        %v1150 = vmul.f32 %v900, %v1129
        %1151 = vset.pattern.permute.xlu0 7
        %1152 = vperm.xlu0 %1151, %v901
        %v1153 = vpop.permute.xlu0 %1152
        %1155 = vset.pattern.permute.xlu0 7
        %1156 = vperm.xlu0 %1155, %v902
        %v1157 = vpop.permute.xlu0 %1156
        %v1159 = vperm.slane %v842, 7
        %v1160 = vmul.f32 %v1153, %v1159
        %v1161 = vmul.f32 %v1157, %v1159
        %v1162 = vadd.f32 %v1149, %v1160
        %v1163 = vadd.f32 %v1150, %v1161
        %1164 = vset.pattern.permute.xlu0 7
        %1165 = vperm.xlu0 %1164, %v903
        %v1166 = vpop.permute.xlu0 %1165
        %1168 = vset.pattern.permute.xlu0 7
        %1169 = vperm.xlu0 %1168, %v904
        %v1170 = vpop.permute.xlu0 %1169
        %v1172 = vmul.f32 %v1166, %v1162
        %v1173 = vmul.f32 %v1170, %v1163
        %v1174 = vsel %vm530, %v1172, 0.0
        %v1175 = vsel %vm530, %v1173, 0.0
        %v1176 = vadd.f32 %v1174, %v1175
        %v1177 = vrot.slane %v1176, 4
        %v1178 = vadd.f32 %v1176, %v1177
        %v1179 = vrot.slane %v1178, 2
        %v1180 = vadd.f32 %v1178, %v1179
        %v1181 = vrot.slane %v1180, 1
        %v1182 = vadd.f32 %v1180, %v1181
        %1183 = vst.msk [vmem:[#allocation8] sm:$0xff] %vm530, %v1162
        %1184 = vst.msk [vmem:[#allocation8 + $0x8] sm:$0xff] %vm530, %v1163
        %vm1185 = vcmask 1040384
        %v1186 = vsel %vm1185, %v944, %v978
        %vm1187 = vcmask 1041408
        %v1188 = vsel %vm1187, %v1186, %v1012
        %vm1189 = vcmask 1042432
        %v1190 = vsel %vm1189, %v1188, %v1046
        %vm1191 = vcmask 1043456
        %v1192 = vsel %vm1191, %v1190, %v1080
        %vm1193 = vcmask 1044480
        %v1194 = vsel %vm1193, %v1192, %v1114
        %vm1195 = vcmask 1045504
        %v1196 = vsel %vm1195, %v1194, %v1148
        %vm1197 = vcmask 1046528
        %v1198 = vsel %vm1197, %v1196, %v1182
        %v1199 = vld [vmem:[%s10] sm:$0x1]
        %v1201 = vperm.slane %v1199, 0
        %v1203 = vmul.f32 %v1201, %v840
        %v1204 = vadd.f32 %v1198, %v1203
        %v1205 = vmul.f32 %v1204, %v841
        %1206 = vst.msk [vmem:[#allocation6] sm:$0xff] %vm530, %v1205
        %v1207 = vld [vmem:[#allocation6] sm:$0xff]
        %v1208 = vpack.c.bf16 %v1207, %v1207
        %v1209 = vld [vmem:[%s11] sm:$0xf]
        %v1210 = vld [vmem:[%s11 + $0x4] sm:$0xf]
        %v1211 = vld [vmem:[%s11 + $0x8] sm:$0xf]
        %v1212 = vld [vmem:[%s11 + $0xc] sm:$0xf]
        %v1213 = vld [vmem:[%s11 + $0x10] sm:$0xf]
        %v1214 = vld [vmem:[%s11 + $0x14] sm:$0xf]
        %v1215 = vld [vmem:[%s11 + $0x18] sm:$0xf]
        %v1216 = vld [vmem:[%s11 + $0x1c] sm:$0xf]
        %v1225 = vunpack.c.l.b16 %v1209
        %v1226 = vunpack.c.l.b16 %v1210
        %v1227 = vunpack.c.l.b16 %v1211
        %v1228 = vunpack.c.l.b16 %v1212
        %v1229 = vunpack.c.l.b16 %v1213
        %v1230 = vunpack.c.l.b16 %v1214
        %v1231 = vunpack.c.l.b16 %v1215
        %v1232 = vunpack.c.l.b16 %v1216
        %v1233 = vpack.c.b16 %v1226, %v1225
        %v1234 = vpack.c.b16 %v1228, %v1227
        %v1235 = vpack.c.b16 %v1230, %v1229
        %v1236 = vpack.c.b16 %v1232, %v1231
        %v1242 = vsel %vm530, %v1208, 0
        %1244 = vmatpush.bf16.msra.mxu0 0
        %1245 = vmatpush.bf16.msra.mxu0 0
        %1246 = vmatpush.bf16.msra.mxu0 0
        %1247 = vmatpush.bf16.msra.mxu0 0
        %1248 = vmatpush.bf16.msra.mxu0 %v1236
        %1249 = vmatpush.bf16.msra.mxu0 %v1235
        %1250 = vmatpush.bf16.msra.mxu0 %v1234
        %1251 = vmatpush.bf16.msra.mxu0 %v1233
        %1252 = vmatmul.bf16.gmra.mxu0 %v1242
        %v1253 = vpop.f32.mrf.mxu0
        %v1254 = vadd.f32 0.0, %v1253
        %v1255 = vpop.f32.mrf.mxu0
        %1256 = vdwg.mxu0
        %1257 = vst.msk [vmem:[%s428] sm:$0xff] %vm464, %v1254
        %s1258 = sand.u32 %s307, 1
        %s1259 = scalar_lea.sflag [#allocation10], %s1258
        %s1260 = sand.u32 %s307, 1
        %s1261 = smul.addr %s1260, 8
        %s1262 = scalar_lea.vmem [#allocation9], %s1261
        // Predicated region
        $region73: #{tpu_custom_call.1} parent=67 // pred_check
          %p1263 = pneg %p317
        $region74: #{tpu_custom_call.1} parent=67 // pred_check_branch
          %1265 = sbr.rel (%p1263) target = $region76
        $region75: #{tpu_custom_call.1} parent=67 // pred_region
          %1267 = vsyncadd %s1259, 0
          %s1268 = smul.addr %s30, 3
          %s1269 = sadd.s32 %s31, %s1268
          %s1270 = smul.addr %s1269, 8
          %s1271 = scalar_lea.hbm %s12, %s1270
          %s1273 = sshll.u32 %s1262, 4
          %s1274 = int_to_ptr.vmem [resolvable:$true] %s1273
          %s1275 = sshll.u32 %s1271, 4
          %s1276 = int_to_ptr.hbm [resolvable:$true] %s1275
          %1278 = dma.vmem_to_hbm [thread:$0]  %s1274, 128, %s1276, %s1259
        $region76: #{tpu_custom_call.1} parent=67 // pred_fallthru
          _
      $region68: #{tpu_custom_call.1} parent=5 // pred_fallthru
        _
      %p1279 = scmp.le.s32.totalorder 2, %s21
      // Predicated region
      $region77: #{tpu_custom_call.1} parent=5 // pred_check
        %p1280 = pneg %p1279
      $region78: #{tpu_custom_call.1} parent=5 // pred_check_branch
        %1282 = sbr.rel (%p1280) target = $region80
      $region79: #{tpu_custom_call.1} parent=5 // pred_region
        %s1283 = ssub.s32 %s21, 2
        // Predicated region
        $region81: #{tpu_custom_call.1} parent=79 // pred_check
          %p1284 = pneg %p323
        $region82: #{tpu_custom_call.1} parent=79 // pred_check_branch
          %1286 = sbr.rel (%p1284) target = $region84
        $region83: #{tpu_custom_call.1} parent=79 // pred_region
          %s1287 = sand.u32 %s308, 1
          %s1288 = scalar_lea.sflag [#allocation10], %s1287
          %s1289 = sand.u32 %s308, 1
          %s1290 = smul.addr %s1289, 8
          %s1291 = scalar_lea.vmem [#allocation9], %s1290
          %1293 = dma.done %s1288, 128
        $region84: #{tpu_custom_call.1} parent=79 // pred_fallthru
          _
      $region80: #{tpu_custom_call.1} parent=5 // pred_fallthru
        _
    $region6: #{tpu_custom_call.1} parent=1 // loop_footer
      %s25 = sadd.s32 1, %s21
    $region7: #{tpu_custom_call.1} parent=1 // loop_footer_branch
      %20 = sbr.rel target = $region3
    $region8: #{tpu_custom_call.1} parent=1 // loop_exit
      _
    %1294 = vsyncpa [#allocation10], 1
    %s1295 = scalar_lea.sflag [#allocation10], 1
    %1296 = vsyncpa %s1295, 1

// kernel: tpu_custom_call.1
$region0: #{tpu_custom_call.1}
  #allocation0 [shape = 'u32[]', space=smem, size = 0x4, offset = 0x4, fixed_abs, tag = 'smem constant byte address 0x4 - core index']
  #allocation1 [shape = 'u32[72,128]{1,0:T(1,128)}', space=vmem, size = 0x9000, scoped, tag = 'internal scratch']
  #allocation2 [shape = 'f32[16,64]{1,0:T(8,128)}', space=vmem, size = 0x2000, scoped, tag = 'scratch operand']
  #allocation3 [shape = 'f32[8,64]{1,0:T(8,128)}', space=vmem, size = 0x1000, scoped, tag = 'scratch operand']
  #allocation4 [shape = 'f32[8,64]{1,0:T(8,128)}', space=vmem, size = 0x1000, scoped, tag = 'scratch operand']
  #allocation5 [shape = 'f32[8,64]{1,0:T(8,128)}', space=vmem, size = 0x1000, scoped, tag = 'scratch operand']
  #allocation6 [shape = 'f32[8,64]{1,0:T(8,128)}', space=vmem, size = 0x1000, scoped, tag = 'scratch operand']
  #allocation7 [shape = 'f32[1,32,8]{2,1,0:T(8,128)}', space=vmem, size = 0x4000, scoped, tag = 'scratch operand']
  #allocation8 [shape = 'f32[16,64]{1,0:T(8,128)}', space=vmem, size = 0x2000, scoped, tag = 'scratch operand']
  %s0 = inlined_call_operand.vmem [shape: f32[2,24,32], index: 0, kind: input, shape index: {}]
  %s1 = inlined_call_operand.vmem [shape: bf16[32,64], index: 1, kind: input, shape index: {}]
  %s2 = inlined_call_operand.vmem [shape: bf16[32,64], index: 2, kind: input, shape index: {}]
  %s3 = inlined_call_operand.vmem [shape: f32[4,64], index: 3, kind: input, shape index: {}]
  %s4 = inlined_call_operand.vmem [shape: f32[1,64], index: 4, kind: input, shape index: {}]
  %s5 = inlined_call_operand.vmem [shape: bf16[64,128], index: 5, kind: input, shape index: {}]
  %s6 = inlined_call_operand.vmem [shape: bf16[64,32], index: 6, kind: input, shape index: {}]
  %s7 = inlined_call_operand.vmem [shape: bf16[128,64], index: 7, kind: input, shape index: {}]
  %s8 = inlined_call_operand.vmem [shape: f32[1,64], index: 8, kind: input, shape index: {}]
  %s9 = inlined_call_operand.vmem [shape: f32[16,64], index: 9, kind: input, shape index: {}]
  %s10 = inlined_call_operand.vmem [shape: f32[1,64], index: 10, kind: input, shape index: {}]
  %s11 = inlined_call_operand.vmem [shape: bf16[64,32], index: 11, kind: input, shape index: {}]
  %s12 = inlined_call_operand.hbm [shape: f32[2,24,32], index: 12, kind: output, shape index: {}]
  %s13 = sld [smem:[#allocation0]]
  $region85: #{tpu_custom_call.1} parent=0
    _
  %s15 = ssub.s32 1, %s13
  %s16 = scalar_select 0, %s15, %s13
  $region1: #{tpu_custom_call.1} parent=0
    #allocation9 [shape = 'u8[8192]{0}', space=vmem, size = 0x2000, scoped, tag = 'output window, operand 0']
    #allocation10 [shape = 's32[2]{0}', space=sflag, size = 0x8, scoped, tag = 'scoped memory for tpu_custom_call.1']
    %17 = vsyncpa [#allocation10], 0
    %s18 = scalar_lea.sflag [#allocation10], 1
    %19 = vsyncpa %s18, 0
    loop: start=0, step=1, limit=8
    $region2: #{tpu_custom_call.1} parent=1 // loop_pre_header
      _
    $region3: #{tpu_custom_call.1} parent=1 // loop_header
      %s21 = sphi 0, %s25
      %p22 = scmp.ge.s32.totalorder %s21, 8
      %s28 = sphi 0, %s40
      %s29 = sphi 0, %s36
      %s30 = sphi 0, %s28
      %s31 = sphi 0, %s29
      %s32 = sphi 0, %s30
      %s33 = sphi 0, %s31
      %s45 = sphi 0, %s47
      %s48 = sphi 0, %s45
      %s49 = sphi 0, %s48
      %s65 = sphi 0, %s49
      %s69 = sphi 0, %s69
      %s71 = sphi 0, %s69
      %s72 = sphi 0, %s71
      %s86 = sphi 0, %s72
      %s90 = sphi 0, %s90
      %s92 = sphi 0, %s90
      %s93 = sphi 0, %s92
      %s107 = sphi 0, %s93
      %s111 = sphi 0, %s111
      %s113 = sphi 0, %s111
      %s114 = sphi 0, %s113
      %s128 = sphi 0, %s114
      %s132 = sphi 0, %s132
      %s134 = sphi 0, %s132
      %s135 = sphi 0, %s134
      %s149 = sphi 0, %s135
      %s153 = sphi 0, %s153
      %s155 = sphi 0, %s153
      %s156 = sphi 0, %s155
      %s170 = sphi 0, %s156
      %s174 = sphi 0, %s174
      %s176 = sphi 0, %s174
      %s177 = sphi 0, %s176
      %s191 = sphi 0, %s177
      %s195 = sphi 0, %s195
      %s197 = sphi 0, %s195
      %s198 = sphi 0, %s197
      %s212 = sphi 0, %s198
      %s216 = sphi 0, %s216
      %s218 = sphi 0, %s216
      %s219 = sphi 0, %s218
      %s233 = sphi 0, %s219
      %s237 = sphi 0, %s237
      %s239 = sphi 0, %s237
      %s240 = sphi 0, %s239
      %s254 = sphi 0, %s240
      %s258 = sphi 0, %s258
      %s260 = sphi 0, %s258
      %s261 = sphi 0, %s260
      %s275 = sphi 0, %s261
      %s279 = sphi 0, %s279
      %s281 = sphi 0, %s279
      %s282 = sphi 0, %s281
      %s296 = sphi 0, %s282
      %s304 = sphi 0, %s306
      %s307 = sphi 0, %s304
      %s308 = sphi 0, %s307
      %s324 = sphi 0, %s308
    $region4: #{tpu_custom_call.1} parent=1 // loop_header_branch
      %24 = sbr.rel (%p22) target = $region8
    $region5: #{tpu_custom_call.1} parent=1 // loop_body
      %s26 = ssub.s32 %s21, 1
      %s27 = ssub.s32 %s21, 2
      %s34 = sadd.s32 1, %s29
      %p35 = scmp.ge.s32.totalorder %s34, 3
      %s36 = scalar_select %p35, 0, %s34
      %s37 = sadd.s32 1, %s28
      %s38 = scalar_select %p35, %s37, %s28
      %p39 = scmp.ge.s32.totalorder %s38, 2
      %s40 = scalar_select %p39, 0, %s38
      %s41 = ssub.s32 %s28, %s40
      %s42 = ssub.s32 %s29, %s36
      %s43 = sor.u32 %s41, %s42
      %p44 = scmp.eq.s32.totalorder %s43, 0
      %s46 = sadd.s32 %s45, 1
      %s47 = scalar_select %p44, %s45, %s46
      %p50 = pneg %p44
      %p51 = scmp.eq.s32.totalorder %s21, 5
      %p52 = por %p50, %p51
      %p53 = scmp.ne.s32.totalorder %s45, %s48
      %p54 = scmp.eq.s32.totalorder %s21, 0
      %p55 = por %p53, %p54
      %p56 = scmp.ne.s32.totalorder %s45, %s48
      %p57 = scmp.eq.s32.totalorder %s26, 5
      %p58 = por %p56, %p57
      %p59 = scmp.ne.s32.totalorder %s48, %s49
      %p60 = scmp.eq.s32.totalorder %s26, 0
      %p61 = por %p59, %p60
      %p62 = scmp.ne.s32.totalorder %s48, %s49
      %p63 = scmp.eq.s32.totalorder %s27, 5
      %p64 = por %p62, %p63
      %p66 = scmp.ne.s32.totalorder %s49, %s65
      %p67 = scmp.eq.s32.totalorder %s27, 0
      %p68 = por %p66, %p67
      %s70 = sadd.s32 %s69, 1
      %p73 = scmp.eq.s32.totalorder %s21, 5
      %p74 = scmp.ne.s32.totalorder %s69, %s71
      %p75 = scmp.eq.s32.totalorder %s21, 0
      %p76 = por %p74, %p75
      %p77 = scmp.ne.s32.totalorder %s69, %s71
      %p78 = scmp.eq.s32.totalorder %s26, 5
      %p79 = por %p77, %p78
      %p80 = scmp.ne.s32.totalorder %s71, %s72
      %p81 = scmp.eq.s32.totalorder %s26, 0
      %p82 = por %p80, %p81
      %p83 = scmp.ne.s32.totalorder %s71, %s72
      %p84 = scmp.eq.s32.totalorder %s27, 5
      %p85 = por %p83, %p84
      %p87 = scmp.ne.s32.totalorder %s72, %s86
      %p88 = scmp.eq.s32.totalorder %s27, 0
      %p89 = por %p87, %p88
      %s91 = sadd.s32 %s90, 1
      %p94 = scmp.eq.s32.totalorder %s21, 5
      %p95 = scmp.ne.s32.totalorder %s90, %s92
      %p96 = scmp.eq.s32.totalorder %s21, 0
      %p97 = por %p95, %p96
      %p98 = scmp.ne.s32.totalorder %s90, %s92
      %p99 = scmp.eq.s32.totalorder %s26, 5
      %p100 = por %p98, %p99
      %p101 = scmp.ne.s32.totalorder %s92, %s93
      %p102 = scmp.eq.s32.totalorder %s26, 0
      %p103 = por %p101, %p102
      %p104 = scmp.ne.s32.totalorder %s92, %s93
      %p105 = scmp.eq.s32.totalorder %s27, 5
      %p106 = por %p104, %p105
      %p108 = scmp.ne.s32.totalorder %s93, %s107
      %p109 = scmp.eq.s32.totalorder %s27, 0
      %p110 = por %p108, %p109
      %s112 = sadd.s32 %s111, 1
      %p115 = scmp.eq.s32.totalorder %s21, 5
      %p116 = scmp.ne.s32.totalorder %s111, %s113
      %p117 = scmp.eq.s32.totalorder %s21, 0
      %p118 = por %p116, %p117
      %p119 = scmp.ne.s32.totalorder %s111, %s113
      %p120 = scmp.eq.s32.totalorder %s26, 5
      %p121 = por %p119, %p120
      %p122 = scmp.ne.s32.totalorder %s113, %s114
      %p123 = scmp.eq.s32.totalorder %s26, 0
      %p124 = por %p122, %p123
      %p125 = scmp.ne.s32.totalorder %s113, %s114
      %p126 = scmp.eq.s32.totalorder %s27, 5
      %p127 = por %p125, %p126
      %p129 = scmp.ne.s32.totalorder %s114, %s128
      %p130 = scmp.eq.s32.totalorder %s27, 0
      %p131 = por %p129, %p130
      %s133 = sadd.s32 %s132, 1
      %p136 = scmp.eq.s32.totalorder %s21, 5
      %p137 = scmp.ne.s32.totalorder %s132, %s134
      %p138 = scmp.eq.s32.totalorder %s21, 0
      %p139 = por %p137, %p138
      %p140 = scmp.ne.s32.totalorder %s132, %s134
      %p141 = scmp.eq.s32.totalorder %s26, 5
      %p142 = por %p140, %p141
      %p143 = scmp.ne.s32.totalorder %s134, %s135
      %p144 = scmp.eq.s32.totalorder %s26, 0
      %p145 = por %p143, %p144
      %p146 = scmp.ne.s32.totalorder %s134, %s135
      %p147 = scmp.eq.s32.totalorder %s27, 5
      %p148 = por %p146, %p147
      %p150 = scmp.ne.s32.totalorder %s135, %s149
      %p151 = scmp.eq.s32.totalorder %s27, 0
      %p152 = por %p150, %p151
      %s154 = sadd.s32 %s153, 1
      %p157 = scmp.eq.s32.totalorder %s21, 5
      %p158 = scmp.ne.s32.totalorder %s153, %s155
      %p159 = scmp.eq.s32.totalorder %s21, 0
      %p160 = por %p158, %p159
      %p161 = scmp.ne.s32.totalorder %s153, %s155
      %p162 = scmp.eq.s32.totalorder %s26, 5
      %p163 = por %p161, %p162
      %p164 = scmp.ne.s32.totalorder %s155, %s156
      %p165 = scmp.eq.s32.totalorder %s26, 0
      %p166 = por %p164, %p165
      %p167 = scmp.ne.s32.totalorder %s155, %s156
      %p168 = scmp.eq.s32.totalorder %s27, 5
      %p169 = por %p167, %p168
      %p171 = scmp.ne.s32.totalorder %s156, %s170
      %p172 = scmp.eq.s32.totalorder %s27, 0
      %p173 = por %p171, %p172
      %s175 = sadd.s32 %s174, 1
      %p178 = scmp.eq.s32.totalorder %s21, 5
      %p179 = scmp.ne.s32.totalorder %s174, %s176
      %p180 = scmp.eq.s32.totalorder %s21, 0
      %p181 = por %p179, %p180
      %p182 = scmp.ne.s32.totalorder %s174, %s176
      %p183 = scmp.eq.s32.totalorder %s26, 5
      %p184 = por %p182, %p183
      %p185 = scmp.ne.s32.totalorder %s176, %s177
      %p186 = scmp.eq.s32.totalorder %s26, 0
      %p187 = por %p185, %p186
      %p188 = scmp.ne.s32.totalorder %s176, %s177
      %p189 = scmp.eq.s32.totalorder %s27, 5
      %p190 = por %p188, %p189
      %p192 = scmp.ne.s32.totalorder %s177, %s191
      %p193 = scmp.eq.s32.totalorder %s27, 0
      %p194 = por %p192, %p193
      %s196 = sadd.s32 %s195, 1
      %p199 = scmp.eq.s32.totalorder %s21, 5
      %p200 = scmp.ne.s32.totalorder %s195, %s197
      %p201 = scmp.eq.s32.totalorder %s21, 0
      %p202 = por %p200, %p201
      %p203 = scmp.ne.s32.totalorder %s195, %s197
      %p204 = scmp.eq.s32.totalorder %s26, 5
      %p205 = por %p203, %p204
      %p206 = scmp.ne.s32.totalorder %s197, %s198
      %p207 = scmp.eq.s32.totalorder %s26, 0
      %p208 = por %p206, %p207
      %p209 = scmp.ne.s32.totalorder %s197, %s198
      %p210 = scmp.eq.s32.totalorder %s27, 5
      %p211 = por %p209, %p210
      %p213 = scmp.ne.s32.totalorder %s198, %s212
      %p214 = scmp.eq.s32.totalorder %s27, 0
      %p215 = por %p213, %p214
      %s217 = sadd.s32 %s216, 1
      %p220 = scmp.eq.s32.totalorder %s21, 5
      %p221 = scmp.ne.s32.totalorder %s216, %s218
      %p222 = scmp.eq.s32.totalorder %s21, 0
      %p223 = por %p221, %p222
      %p224 = scmp.ne.s32.totalorder %s216, %s218
      %p225 = scmp.eq.s32.totalorder %s26, 5
      %p226 = por %p224, %p225
      %p227 = scmp.ne.s32.totalorder %s218, %s219
      %p228 = scmp.eq.s32.totalorder %s26, 0
      %p229 = por %p227, %p228
      %p230 = scmp.ne.s32.totalorder %s218, %s219
      %p231 = scmp.eq.s32.totalorder %s27, 5
      %p232 = por %p230, %p231
      %p234 = scmp.ne.s32.totalorder %s219, %s233
      %p235 = scmp.eq.s32.totalorder %s27, 0
      %p236 = por %p234, %p235
      %s238 = sadd.s32 %s237, 1
      %p241 = scmp.eq.s32.totalorder %s21, 5
      %p242 = scmp.ne.s32.totalorder %s237, %s239
      %p243 = scmp.eq.s32.totalorder %s21, 0
      %p244 = por %p242, %p243
      %p245 = scmp.ne.s32.totalorder %s237, %s239
      %p246 = scmp.eq.s32.totalorder %s26, 5
      %p247 = por %p245, %p246
      %p248 = scmp.ne.s32.totalorder %s239, %s240
      %p249 = scmp.eq.s32.totalorder %s26, 0
      %p250 = por %p248, %p249
      %p251 = scmp.ne.s32.totalorder %s239, %s240
      %p252 = scmp.eq.s32.totalorder %s27, 5
      %p253 = por %p251, %p252
      %p255 = scmp.ne.s32.totalorder %s240, %s254
      %p256 = scmp.eq.s32.totalorder %s27, 0
      %p257 = por %p255, %p256
      %s259 = sadd.s32 %s258, 1
      %p262 = scmp.eq.s32.totalorder %s21, 5
      %p263 = scmp.ne.s32.totalorder %s258, %s260
      %p264 = scmp.eq.s32.totalorder %s21, 0
      %p265 = por %p263, %p264
      %p266 = scmp.ne.s32.totalorder %s258, %s260
      %p267 = scmp.eq.s32.totalorder %s26, 5
      %p268 = por %p266, %p267
      %p269 = scmp.ne.s32.totalorder %s260, %s261
      %p270 = scmp.eq.s32.totalorder %s26, 0
      %p271 = por %p269, %p270
      %p272 = scmp.ne.s32.totalorder %s260, %s261
      %p273 = scmp.eq.s32.totalorder %s27, 5
      %p274 = por %p272, %p273
      %p276 = scmp.ne.s32.totalorder %s261, %s275
      %p277 = scmp.eq.s32.totalorder %s27, 0
      %p278 = por %p276, %p277
      %s280 = sadd.s32 %s279, 1
      %p283 = scmp.eq.s32.totalorder %s21, 5
      %p284 = scmp.ne.s32.totalorder %s279, %s281
      %p285 = scmp.eq.s32.totalorder %s21, 0
      %p286 = por %p284, %p285
      %p287 = scmp.ne.s32.totalorder %s279, %s281
      %p288 = scmp.eq.s32.totalorder %s26, 5
      %p289 = por %p287, %p288
      %p290 = scmp.ne.s32.totalorder %s281, %s282
      %p291 = scmp.eq.s32.totalorder %s26, 0
      %p292 = por %p290, %p291
      %p293 = scmp.ne.s32.totalorder %s281, %s282
      %p294 = scmp.eq.s32.totalorder %s27, 5
      %p295 = por %p293, %p294
      %p297 = scmp.ne.s32.totalorder %s282, %s296
      %p298 = scmp.eq.s32.totalorder %s27, 0
      %p299 = por %p297, %p298
      %s300 = ssub.s32 %s28, %s40
      %s301 = ssub.s32 %s29, %s36
      %s302 = sor.u32 %s300, %s301
      %p303 = scmp.eq.s32.totalorder %s302, 0
      %s305 = sadd.s32 %s304, 1
      %s306 = scalar_select %p303, %s304, %s305
      %p309 = pneg %p303
      %p310 = scmp.eq.s32.totalorder %s21, 5
      %p311 = por %p309, %p310
      %p312 = scmp.ne.s32.totalorder %s304, %s307
      %p313 = scmp.eq.s32.totalorder %s21, 0
      %p314 = por %p312, %p313
      %p315 = scmp.ne.s32.totalorder %s304, %s307
      %p316 = scmp.eq.s32.totalorder %s26, 5
      %p317 = por %p315, %p316
      %p318 = scmp.ne.s32.totalorder %s307, %s308
      %p319 = scmp.eq.s32.totalorder %s26, 0
      %p320 = por %p318, %p319
      %p321 = scmp.ne.s32.totalorder %s307, %s308
      %p322 = scmp.eq.s32.totalorder %s27, 5
      %p323 = por %p321, %p322
      %p325 = scmp.ne.s32.totalorder %s308, %s324
      %p326 = scmp.eq.s32.totalorder %s27, 0
      %p327 = por %p325, %p326
      %p328 = scmp.le.s32.totalorder 1, %s21
      %p329 = scmp.lt.s32.totalorder %s21, 7
      %p330 = pnand %p328, %p329
      %p331 = pneg %p330
      // Predicated region
      $region9: #{tpu_custom_call.1} parent=5 // pred_check
        _
      $region10: #{tpu_custom_call.1} parent=5 // pred_check_branch
        %333 = sbr.rel (%p330) target = $region12
      $region11: #{tpu_custom_call.1} parent=5 // pred_region
        %s334 = ssub.s32 %s21, 1
        // Predicated region
        $region13: #{tpu_custom_call.1} parent=11 // pred_check
          %p335 = pneg %p82
        $region14: #{tpu_custom_call.1} parent=11 // pred_check_branch
          %337 = sbr.rel (%p335) target = $region16
        $region15: #{tpu_custom_call.1} parent=11 // pred_region
          _
        $region16: #{tpu_custom_call.1} parent=11 // pred_fallthru
          _
        // Predicated region
        $region17: #{tpu_custom_call.1} parent=11 // pred_check
          %p338 = pneg %p103
        $region18: #{tpu_custom_call.1} parent=11 // pred_check_branch
          %340 = sbr.rel (%p338) target = $region20
        $region19: #{tpu_custom_call.1} parent=11 // pred_region
          _
        $region20: #{tpu_custom_call.1} parent=11 // pred_fallthru
          _
        // Predicated region
        $region21: #{tpu_custom_call.1} parent=11 // pred_check
          %p341 = pneg %p124
        $region22: #{tpu_custom_call.1} parent=11 // pred_check_branch
          %343 = sbr.rel (%p341) target = $region24
        $region23: #{tpu_custom_call.1} parent=11 // pred_region
          _
        $region24: #{tpu_custom_call.1} parent=11 // pred_fallthru
          _
        // Predicated region
        $region25: #{tpu_custom_call.1} parent=11 // pred_check
          %p344 = pneg %p145
        $region26: #{tpu_custom_call.1} parent=11 // pred_check_branch
          %346 = sbr.rel (%p344) target = $region28
        $region27: #{tpu_custom_call.1} parent=11 // pred_region
          _
        $region28: #{tpu_custom_call.1} parent=11 // pred_fallthru
          _
        // Predicated region
        $region29: #{tpu_custom_call.1} parent=11 // pred_check
          %p347 = pneg %p166
        $region30: #{tpu_custom_call.1} parent=11 // pred_check_branch
          %349 = sbr.rel (%p347) target = $region32
        $region31: #{tpu_custom_call.1} parent=11 // pred_region
          _
        $region32: #{tpu_custom_call.1} parent=11 // pred_fallthru
          _
        // Predicated region
        $region33: #{tpu_custom_call.1} parent=11 // pred_check
          %p350 = pneg %p187
        $region34: #{tpu_custom_call.1} parent=11 // pred_check_branch
          %352 = sbr.rel (%p350) target = $region36
        $region35: #{tpu_custom_call.1} parent=11 // pred_region
          _
        $region36: #{tpu_custom_call.1} parent=11 // pred_fallthru
          _
        // Predicated region
        $region37: #{tpu_custom_call.1} parent=11 // pred_check
          %p353 = pneg %p208
        $region38: #{tpu_custom_call.1} parent=11 // pred_check_branch
          %355 = sbr.rel (%p353) target = $region40
        $region39: #{tpu_custom_call.1} parent=11 // pred_region
          _
        $region40: #{tpu_custom_call.1} parent=11 // pred_fallthru
          _
        // Predicated region
        $region41: #{tpu_custom_call.1} parent=11 // pred_check
          %p356 = pneg %p229
        $region42: #{tpu_custom_call.1} parent=11 // pred_check_branch
          %358 = sbr.rel (%p356) target = $region44
        $region43: #{tpu_custom_call.1} parent=11 // pred_region
          _
        $region44: #{tpu_custom_call.1} parent=11 // pred_fallthru
          _
        // Predicated region
        $region45: #{tpu_custom_call.1} parent=11 // pred_check
          %p359 = pneg %p250
        $region46: #{tpu_custom_call.1} parent=11 // pred_check_branch
          %361 = sbr.rel (%p359) target = $region48
        $region47: #{tpu_custom_call.1} parent=11 // pred_region
          _
        $region48: #{tpu_custom_call.1} parent=11 // pred_fallthru
          _
        // Predicated region
        $region49: #{tpu_custom_call.1} parent=11 // pred_check
          %p362 = pneg %p271
        $region50: #{tpu_custom_call.1} parent=11 // pred_check_branch
          %364 = sbr.rel (%p362) target = $region52
        $region51: #{tpu_custom_call.1} parent=11 // pred_region
          _
        $region52: #{tpu_custom_call.1} parent=11 // pred_fallthru
          _
        // Predicated region
        $region53: #{tpu_custom_call.1} parent=11 // pred_check
          %p365 = pneg %p292
        $region54: #{tpu_custom_call.1} parent=11 // pred_check_branch
          %367 = sbr.rel (%p365) target = $region56
        $region55: #{tpu_custom_call.1} parent=11 // pred_region
          _
        $region56: #{tpu_custom_call.1} parent=11 // pred_fallthru
          _
      $region12: #{tpu_custom_call.1} parent=5 // pred_fallthru
        _
      %p368 = scmp.lt.s32.totalorder %s21, 6
      // Predicated region
      $region57: #{tpu_custom_call.1} parent=5 // pred_check
        %p369 = pneg %p368
      $region58: #{tpu_custom_call.1} parent=5 // pred_check_branch
        %371 = sbr.rel (%p369) target = $region60
      $region59: #{tpu_custom_call.1} parent=5 // pred_region
        // Predicated region
        $region61: #{tpu_custom_call.1} parent=59 // pred_check
          %p372 = pneg %p55
        $region62: #{tpu_custom_call.1} parent=59 // pred_check_branch
          %374 = sbr.rel (%p372) target = $region64
        $region63: #{tpu_custom_call.1} parent=59 // pred_region
          %p375 = scmp.lt.s32.totalorder %s28, 1
          %s376 = scalar_select %p375, %s28, 1
          %p377 = scmp.lt.s32.totalorder %s29, 2
          %s378 = scalar_select %p377, %s29, 2
          %s379 = smul.addr %s376, 3
          %s380 = sadd.s32 %s378, %s379
          %s381 = smul.addr %s380, 8
          %s382 = scalar_lea.vmem %s0, %s381
        $region64: #{tpu_custom_call.1} parent=59 // pred_fallthru
          _
      $region60: #{tpu_custom_call.1} parent=5 // pred_fallthru
        _
      %p383 = scmp.le.s32.totalorder 1, %s21
      %p384 = scmp.lt.s32.totalorder %s21, 7
      %p385 = pnand %p383, %p384
      %p386 = pneg %p385
      // Predicated region
      $region65: #{tpu_custom_call.1} parent=5 // pred_check
        _
      $region66: #{tpu_custom_call.1} parent=5 // pred_check_branch
        %388 = sbr.rel (%p385) target = $region68
      $region67: #{tpu_custom_call.1} parent=5 // pred_region
        %s389 = ssub.s32 %s21, 1
        %p390 = scmp.lt.s32.totalorder %s30, 1
        %s391 = scalar_select %p390, %s30, 1
        %p392 = scmp.lt.s32.totalorder %s31, 2
        %s393 = scalar_select %p392, %s31, 2
        %s394 = smul.addr %s391, 3
        %s395 = sadd.s32 %s393, %s394
        %s396 = smul.addr %s395, 8
        %s397 = scalar_lea.vmem %s0, %s396
        %p398 = pneg %p61
        %p399 = pneg %p58
        %p400 = pneg %p82
        %p401 = pneg %p79
        %p402 = pneg %p103
        %p403 = pneg %p100
        %p404 = pneg %p124
        %p405 = pneg %p121
        %p406 = pneg %p145
        %p407 = pneg %p142
        %p408 = pneg %p166
        %p409 = pneg %p163
        %p410 = pneg %p187
        %p411 = pneg %p184
        %p412 = pneg %p208
        %p413 = pneg %p205
        %p414 = pneg %p229
        %p415 = pneg %p226
        %p416 = pneg %p250
        %p417 = pneg %p247
        %p418 = pneg %p271
        %p419 = pneg %p268
        %p420 = pneg %p292
        %p421 = pneg %p289
        %p422 = pneg %p320
        %p423 = pneg %p317
        %s424 = sand.u32 %s307, 1
        %s425 = scalar_lea.sflag [#allocation10], %s424
        %s426 = sand.u32 %s307, 1
        %s427 = smul.addr %s426, 8
        %s428 = scalar_lea.vmem [#allocation9], %s427
        %p429 = scmp.lt.s32.totalorder %s30, 1
        %s430 = scalar_select %p429, %s30, 1
        %p431 = scmp.lt.s32.totalorder %s31, 2
        %s432 = scalar_select %p431, %s31, 2
        %s433 = smul.addr %s430, 3
        %s434 = sadd.s32 %s432, %s433
        %s435 = smul.addr %s434, 8
        %s436 = scalar_lea.vmem %s0, %s435
        %p438 = scmp.eq.s32.totalorder %s31, 0
        // Predicated region
        $region69: #{tpu_custom_call.1} parent=67 // pred_check
          %p439 = pneg %p438
        $region70: #{tpu_custom_call.1} parent=67 // pred_check_branch
          %441 = sbr.rel (%p439) target = $region72
        $region71: #{tpu_custom_call.1} parent=67 // pred_region
          %vm442 = vcmask 523264
          %443 = vst.msk [vmem:[#allocation8] sm:$0xff] %vm442, 0.0
          %444 = vst.msk [vmem:[#allocation8 + $0x8] sm:$0xff] %vm442, 0.0
          %445 = vst.msk [vmem:[#allocation2] sm:$0xff] %vm442, 0.0
        $region72: #{tpu_custom_call.1} parent=67 // pred_fallthru
          _
        %v446 = vld [vmem:[%s436] sm:$0xff]
        %v447 = vpack.c.bf16 %v446, %v446
        %v448 = vld [vmem:[%s1] sm:$0xf]
        %v449 = vld [vmem:[%s1 + $0x4] sm:$0xf]
        %v450 = vld [vmem:[%s1 + $0x8] sm:$0xf]
        %v451 = vld [vmem:[%s1 + $0xc] sm:$0xf]
        %v456 = vunpack.c.l.b16 %v448
        %v457 = vunpack.c.l.b16 %v449
        %v458 = vunpack.c.l.b16 %v450
        %v459 = vunpack.c.l.b16 %v451
        %v460 = vpack.c.b16 %v457, %v456
        %v461 = vpack.c.b16 %v459, %v458
        %vm464 = vcmask 261120
        %v466 = vsel %vm464, %v447, 0
        %468 = vmatpush.bf16.msra.mxu0 0
        %469 = vmatpush.bf16.msra.mxu0 0
        %470 = vmatpush.bf16.msra.mxu0 0
        %471 = vmatpush.bf16.msra.mxu0 0
        %472 = vmatpush.bf16.msra.mxu0 0
        %473 = vmatpush.bf16.msra.mxu0 0
        %474 = vmatpush.bf16.msra.mxu0 %v461
        %475 = vmatpush.bf16.msra.mxu0 %v460
        %476 = vmatmul.bf16.gmra.mxu0 %v466
        %v477 = vpop.f32.mrf.mxu0
        %v478 = vadd.f32 0.0, %v477
        %v479 = vpop.f32.mrf.mxu0
        %480 = vdwg.mxu0
        %v481 = vld [vmem:[%s2] sm:$0xf]
        %v482 = vld [vmem:[%s2 + $0x4] sm:$0xf]
        %v483 = vld [vmem:[%s2 + $0x8] sm:$0xf]
        %v484 = vld [vmem:[%s2 + $0xc] sm:$0xf]
        %v489 = vunpack.c.l.b16 %v481
        %v490 = vunpack.c.l.b16 %v482
        %v491 = vunpack.c.l.b16 %v483
        %v492 = vunpack.c.l.b16 %v484
        %v493 = vpack.c.b16 %v490, %v489
        %v494 = vpack.c.b16 %v492, %v491
        %497 = vmatpush.bf16.msra.mxu0 0
        %498 = vmatpush.bf16.msra.mxu0 0
        %499 = vmatpush.bf16.msra.mxu0 0
        %500 = vmatpush.bf16.msra.mxu0 0
        %501 = vmatpush.bf16.msra.mxu0 0
        %502 = vmatpush.bf16.msra.mxu0 0
        %503 = vmatpush.bf16.msra.mxu0 %v494
        %504 = vmatpush.bf16.msra.mxu0 %v493
        %505 = vmatmul.bf16.gmra.mxu0 %v466
        %v506 = vpop.f32.mrf.mxu0
        %v507 = vadd.f32 0.0, %v506
        %v508 = vpop.f32.mrf.mxu0
        %509 = vdwg.mxu0
        %v510 = vxor.u32 %v507, 2147483648
        %v511 = vmul.f32 %v510, 1.442695
        %v512 = vpow.pop %v511
        %v513 = vadd.f32 %v512, 1.0
        %v514 = vrcp.pop %v513
        %v515 = vmul.f32 %v513, %v514
        %v516 = vsub.f32 1.0, %v515
        %v517 = vmul.f32 %v514, %v516
        %v518 = vadd.f32 %v514, %v517
        %vm519 = vweird.f32 %v513
        %vm520 = vweird.f32 %v514
        %vm521 = vmor %vm519, %vm520
        %v522 = vsel %vm521, %v514, %v518
        %v523 = vand.u32 2147483647, %v513
        %vm524 = vcmp.eq.f32.partialorder %v523, 8.507059e+37
        %v525 = vand.u32 %v513, 2147483648
        %v526 = vor.u32 1.1754944e-38, %v525
        %v527 = vsel %vm524, %v526, %v522
        %v528 = vmul.f32 1.0, %v527
        %v529 = vmul.f32 %v507, %v528
        %vm530 = vcmask 523264
        %531 = vst.msk [vmem:[#allocation5] sm:$0xff] %vm530, %v529
        %532 = vst.msk [vmem:[#allocation2 + $0x8] sm:$0xff] %vm530, %v478
        %v533 = vld [vmem:[%s3 + $0x3] sm:$0x1]
        %v534 = vperm.slane %v533, 0
        %v535 = vmul.f32 %v478, %v534
        %v536 = vld [vmem:[#allocation2 + $0x5] sm:$0xff]
        %v537 = vld [vmem:[%s3] sm:$0x1]
        %v538 = vperm.slane %v537, 0
        %v539 = vmul.f32 %v536, %v538
        %v540 = vadd.f32 %v535, %v539
        %v541 = vld [vmem:[#allocation2 + $0x6] sm:$0xff]
        %v542 = vld [vmem:[%s3 + $0x1] sm:$0x1]
        %v543 = vperm.slane %v542, 0
        %v544 = vmul.f32 %v541, %v543
        %v545 = vadd.f32 %v540, %v544
        %v546 = vld [vmem:[#allocation2 + $0x7] sm:$0xff]
        %v547 = vld [vmem:[%s3 + $0x2] sm:$0x1]
        %v548 = vperm.slane %v547, 0
        %v549 = vmul.f32 %v546, %v548
        %v550 = vadd.f32 %v545, %v549
        %v551 = vld [vmem:[%s4] sm:$0x1]
        %v553 = vperm.slane %v551, 0
        %v555 = vadd.f32 %v550, %v553
        %v556 = vxor.u32 %v555, 2147483648
        %v557 = vmul.f32 %v556, 1.442695
        %v558 = vpow.pop %v557
        %v559 = vadd.f32 %v558, 1.0
        %v560 = vrcp.pop %v559
        %v561 = vmul.f32 %v559, %v560
        %v562 = vsub.f32 1.0, %v561
        %v563 = vmul.f32 %v560, %v562
        %v564 = vadd.f32 %v560, %v563
        %vm565 = vweird.f32 %v559
        %vm566 = vweird.f32 %v560
        %vm567 = vmor %vm565, %vm566
        %v568 = vsel %vm567, %v560, %v564
        %v569 = vand.u32 2147483647, %v559
        %vm570 = vcmp.eq.f32.partialorder %v569, 8.507059e+37
        %v571 = vand.u32 %v559, 2147483648
        %v572 = vor.u32 1.1754944e-38, %v571
        %v573 = vsel %vm570, %v572, %v568
        %v574 = vmul.f32 1.0, %v573
        %v575 = vmul.f32 %v555, %v574
        %576 = vst.msk [vmem:[#allocation3] sm:$0xff] %vm530, %v575
        %v577 = vld [vmem:[#allocation2 + $0x8] sm:$0xff]
        %578 = vst.msk [vmem:[#allocation2] sm:$0xff] %vm530, %v577
        %v579 = vpack.c.bf16 %v575, %v575
        %v580 = vld [vmem:[%s6] sm:$0xf]
        %v581 = vld [vmem:[%s6 + $0x4] sm:$0xf]
        %v582 = vld [vmem:[%s6 + $0x8] sm:$0xf]
        %v583 = vld [vmem:[%s6 + $0xc] sm:$0xf]
        %v584 = vld [vmem:[%s6 + $0x10] sm:$0xf]
        %v585 = vld [vmem:[%s6 + $0x14] sm:$0xf]
        %v586 = vld [vmem:[%s6 + $0x18] sm:$0xf]
        %v587 = vld [vmem:[%s6 + $0x1c] sm:$0xf]
        %v596 = vunpack.c.l.b16 %v580
        %v597 = vunpack.c.l.b16 %v581
        %v598 = vunpack.c.l.b16 %v582
        %v599 = vunpack.c.l.b16 %v583
        %v600 = vunpack.c.l.b16 %v584
        %v601 = vunpack.c.l.b16 %v585
        %v602 = vunpack.c.l.b16 %v586
        %v603 = vunpack.c.l.b16 %v587
        %v604 = vpack.c.b16 %v597, %v596
        %v605 = vpack.c.b16 %v599, %v598
        %v606 = vpack.c.b16 %v601, %v600
        %v607 = vpack.c.b16 %v603, %v602
        %v613 = vsel %vm530, %v579, 0
        %615 = vmatpush.bf16.msra.mxu0 0
        %616 = vmatpush.bf16.msra.mxu0 0
        %617 = vmatpush.bf16.msra.mxu0 0
        %618 = vmatpush.bf16.msra.mxu0 0
        %619 = vmatpush.bf16.msra.mxu0 %v607
        %620 = vmatpush.bf16.msra.mxu0 %v606
        %621 = vmatpush.bf16.msra.mxu0 %v605
        %622 = vmatpush.bf16.msra.mxu0 %v604
        %623 = vmatmul.bf16.gmra.mxu0 %v613
        %v624 = vpop.f32.mrf.mxu0
        %v625 = vadd.f32 0.0, %v624
        %v626 = vpop.f32.mrf.mxu0
        %627 = vdwg.mxu0
        %v628 = vld [vmem:[%s5] sm:$0xf]
        %v629 = vld [vmem:[%s5 + $0x4] sm:$0xf]
        %v630 = vld [vmem:[%s5 + $0x8] sm:$0xf]
        %v631 = vld [vmem:[%s5 + $0xc] sm:$0xf]
        %v632 = vld [vmem:[%s5 + $0x10] sm:$0xf]
        %v633 = vld [vmem:[%s5 + $0x14] sm:$0xf]
        %v634 = vld [vmem:[%s5 + $0x18] sm:$0xf]
        %v635 = vld [vmem:[%s5 + $0x1c] sm:$0xf]
        %v644 = vunpack.c.l.b16 %v628
        %v645 = vunpack.c.l.b16 %v629
        %v646 = vunpack.c.l.b16 %v630
        %v647 = vunpack.c.l.b16 %v631
        %v648 = vunpack.c.l.b16 %v632
        %v649 = vunpack.c.l.b16 %v633
        %v650 = vunpack.c.l.b16 %v634
        %v651 = vunpack.c.l.b16 %v635
        %v652 = vpack.c.b16 %v645, %v644
        %v653 = vpack.c.b16 %v647, %v646
        %v654 = vpack.c.b16 %v649, %v648
        %v655 = vpack.c.b16 %v651, %v650
        %660 = vmatpush.bf16.msra.mxu0 0
        %661 = vmatpush.bf16.msra.mxu0 0
        %662 = vmatpush.bf16.msra.mxu0 0
        %663 = vmatpush.bf16.msra.mxu0 0
        %664 = vmatpush.bf16.msra.mxu0 %v655
        %665 = vmatpush.bf16.msra.mxu0 %v654
        %666 = vmatpush.bf16.msra.mxu0 %v653
        %667 = vmatpush.bf16.msra.mxu0 %v652
        %668 = vmatmul.bf16.gmra.mxu0 %v613
        %v669 = vpop.f32.mrf.mxu0
        %v670 = vadd.f32 0.0, %v669
        %v671 = vpop.f32.mrf.mxu0
        %672 = vdwg.mxu0
        %v673 = vpack.c.bf16 %v670, %v670
        %v674 = vld [vmem:[%s7] sm:$0xf]
        %v675 = vld [vmem:[%s7 + $0x4] sm:$0xf]
        %v676 = vld [vmem:[%s7 + $0x8] sm:$0xf]
        %v677 = vld [vmem:[%s7 + $0xc] sm:$0xf]
        %v678 = vld [vmem:[%s7 + $0x10] sm:$0xf]
        %v679 = vld [vmem:[%s7 + $0x14] sm:$0xf]
        %v680 = vld [vmem:[%s7 + $0x18] sm:$0xf]
        %v681 = vld [vmem:[%s7 + $0x1c] sm:$0xf]
        %v682 = vld [vmem:[%s7 + $0x20] sm:$0xf]
        %v683 = vld [vmem:[%s7 + $0x24] sm:$0xf]
        %v684 = vld [vmem:[%s7 + $0x28] sm:$0xf]
        %v685 = vld [vmem:[%s7 + $0x2c] sm:$0xf]
        %v686 = vld [vmem:[%s7 + $0x30] sm:$0xf]
        %v687 = vld [vmem:[%s7 + $0x34] sm:$0xf]
        %v688 = vld [vmem:[%s7 + $0x38] sm:$0xf]
        %v689 = vld [vmem:[%s7 + $0x3c] sm:$0xf]
        %v690 = vld [vmem:[%s8] sm:$0x1]
        %v692 = vperm.slane %v690, 0
        %v710 = vunpack.c.l.b16 %v674
        %v711 = vunpack.c.l.b16 %v675
        %v712 = vunpack.c.l.b16 %v676
        %v713 = vunpack.c.l.b16 %v677
        %v714 = vunpack.c.l.b16 %v678
        %v715 = vunpack.c.l.b16 %v679
        %v716 = vunpack.c.l.b16 %v680
        %v717 = vunpack.c.l.b16 %v681
        %v718 = vunpack.c.l.b16 %v682
        %v719 = vunpack.c.l.b16 %v683
        %v720 = vunpack.c.l.b16 %v684
        %v721 = vunpack.c.l.b16 %v685
        %v722 = vunpack.c.l.b16 %v686
        %v723 = vunpack.c.l.b16 %v687
        %v724 = vunpack.c.l.b16 %v688
        %v725 = vunpack.c.l.b16 %v689
        %v726 = vpack.c.b16 %v711, %v710
        %v727 = vpack.c.b16 %v713, %v712
        %v728 = vpack.c.b16 %v715, %v714
        %v729 = vpack.c.b16 %v717, %v716
        %v730 = vpack.c.b16 %v719, %v718
        %v731 = vpack.c.b16 %v721, %v720
        %v732 = vpack.c.b16 %v723, %v722
        %v733 = vpack.c.b16 %v725, %v724
        %742 = vmatpush.bf16.msra.mxu0 %v733
        %743 = vmatpush.bf16.msra.mxu0 %v732
        %744 = vmatpush.bf16.msra.mxu0 %v731
        %745 = vmatpush.bf16.msra.mxu0 %v730
        %746 = vmatpush.bf16.msra.mxu0 %v729
        %747 = vmatpush.bf16.msra.mxu0 %v728
        %748 = vmatpush.bf16.msra.mxu0 %v727
        %749 = vmatpush.bf16.msra.mxu0 %v726
        %750 = vmatmul.bf16.gmra.mxu0 %v673
        %v751 = vpop.f32.mrf.mxu0
        %v752 = vadd.f32 %v692, %v751
        %v753 = vpop.f32.mrf.mxu0
        %754 = vdwg.mxu0
        %v755 = vmax.f32 %v752, 0.0
        %v756 = vand.u32 2147483647, %v752
        %v757 = vsub.f32 0.0, %v756
        %v758 = vmul.f32 %v757, 1.442695
        %v759 = vpow.pop %v758
        %v760 = vadd.f32 %v759, 1.0
        %v761 = vlog2.pop %v760
        %v762 = vmul.f32 %v761, 0.6931472
        %v763 = vmul.f32 -0.5, %v759
        %v764 = vadd.f32 %v763, 1.0
        %v765 = vmul.f32 %v764, %v759
        %v766 = vand.u32 2147483647, %v759
        %vm767 = vcmp.lt.f32.partialorder %v766, 0.0004427343
        %v768 = vsel %vm767, %v765, %v762
        %v769 = vadd.f32 %v755, %v768
        %770 = vst.msk [vmem:[#allocation4] sm:$0xff] %vm530, %v769
        %v771 = vlaneseq
        %v772 = vshrl.u32 %v771, 7
        %v773 = vadd.s32 %v772, 8
        %v774 = vadd.s32 %v772, 16
        %v775 = vadd.s32 %v772, 24
        %v776 = vlaneseq
        %v777 = vand.u32 %v776, 127
        %vm778 = vcmp.eq.s32.totalorder %v772, %v777
        %vm779 = vcmp.eq.s32.totalorder %v773, %v777
        %vm780 = vcmp.eq.s32.totalorder %v774, %v777
        %vm781 = vcmp.eq.s32.totalorder %v775, %v777
        %v782 = vsel %vm778, 1, 0
        %v783 = vsel %vm779, 1, 0
        %v784 = vsel %vm780, 1, 0
        %v785 = vsel %vm781, 1, 0
        %v786 = vcvt.s32.f32 %v782
        %v787 = vcvt.s32.f32 %v783
        %v788 = vcvt.s32.f32 %v784
        %v789 = vcvt.s32.f32 %v785
        %v791 = vsel %vm464, %v786, 0
        %v794 = vsel %vm464, %v787, 0
        %v797 = vsel %vm464, %v788, 0
        %v800 = vsel %vm464, %v789, 0
        %v803 = vsel %vm464, %v625, 0
        %805 = vmatpush.xpose.msra.mxu0 0.0
        %806 = vmatpush.xpose.msra.mxu0 0.0
        %807 = vmatpush.xpose.msra.mxu0 0.0
        %808 = vmatpush.xpose.msra.mxu0 0.0
        %809 = vmatpush.xpose.msra.mxu0 0.0
        %810 = vmatpush.xpose.msra.mxu0 0.0
        %811 = vmatpush.xpose.msra.mxu0 0.0
        %812 = vmatpush.xpose.msra.mxu0 0.0
        %813 = vmatpush.xpose.msra.mxu0 0.0
        %814 = vmatpush.xpose.msra.mxu0 0.0
        %815 = vmatpush.xpose.msra.mxu0 0.0
        %816 = vmatpush.xpose.msra.mxu0 0.0
        %817 = vmatpush.xpose.msra.mxu0 0.0
        %818 = vmatpush.xpose.msra.mxu0 0.0
        %819 = vmatpush.xpose.msra.mxu0 0.0
        %820 = vmatpush.xpose.msra.mxu0 %v803
        %821 = vmatmul.f32.gmra.mxu0 %v791
        %v822 = vpop.f32.mrf.mxu0
        %v823 = vadd.f32 0.0, %v822
        %824 = vmatmul.f32.gmra.mxu0 %v794
        %v825 = vpop.f32.mrf.mxu0
        %v826 = vadd.f32 0.0, %v825
        %827 = vmatmul.f32.gmra.mxu0 %v797
        %v828 = vpop.f32.mrf.mxu0
        %v829 = vadd.f32 0.0, %v828
        %830 = vmatmul.f32.gmra.mxu0 %v800
        %v831 = vpop.f32.mrf.mxu0
        %v832 = vadd.f32 0.0, %v831
        %833 = vdwg.mxu0
        %vm834 = vcmask 64512
        %835 = vst.msk [vmem:[#allocation7] sm:$0xff] %vm834, %v823
        %836 = vst.msk [vmem:[#allocation7 + $0x8] sm:$0xff] %vm834, %v826
        %837 = vst.msk [vmem:[#allocation7 + $0x10] sm:$0xff] %vm834, %v829
        %838 = vst.msk [vmem:[#allocation7 + $0x18] sm:$0xff] %vm834, %v832
        %v839 = vld [vmem:[#allocation4] sm:$0xff]
        %v840 = vld [vmem:[#allocation3] sm:$0xff]
        %v841 = vld [vmem:[#allocation5] sm:$0xff]
        %v842 = vmul.f32 %v839, %v840
        %v843 = vld [vmem:[%s9] sm:$0xff]
        %v844 = vld [vmem:[%s9 + $0x8] sm:$0xff]
        %v845 = vperm.slane %v839, 0
        %v846 = vmul.f32 %v843, %v845
        %v847 = vmul.f32 %v844, %v845
        %v848 = vmul.f32 %v846, 1.442695
        %v849 = vpow.pop %v848
        %v850 = vmul.f32 %v847, 1.442695
        %v851 = vpow.pop %v850
        %v852 = vperm.slane %v839, 1
        %v853 = vmul.f32 %v843, %v852
        %v854 = vmul.f32 %v844, %v852
        %v855 = vmul.f32 %v853, 1.442695
        %v856 = vpow.pop %v855
        %v857 = vmul.f32 %v854, 1.442695
        %v858 = vpow.pop %v857
        %v859 = vperm.slane %v839, 2
        %v860 = vmul.f32 %v843, %v859
        %v861 = vmul.f32 %v844, %v859
        %v862 = vmul.f32 %v860, 1.442695
        %v863 = vpow.pop %v862
        %v864 = vmul.f32 %v861, 1.442695
        %v865 = vpow.pop %v864
        %v866 = vperm.slane %v839, 3
        %v867 = vmul.f32 %v843, %v866
        %v868 = vmul.f32 %v844, %v866
        %v869 = vmul.f32 %v867, 1.442695
        %v870 = vpow.pop %v869
        %v871 = vmul.f32 %v868, 1.442695
        %v872 = vpow.pop %v871
        %v873 = vperm.slane %v839, 4
        %v874 = vmul.f32 %v843, %v873
        %v875 = vmul.f32 %v844, %v873
        %v876 = vmul.f32 %v874, 1.442695
        %v877 = vpow.pop %v876
        %v878 = vmul.f32 %v875, 1.442695
        %v879 = vpow.pop %v878
        %v880 = vperm.slane %v839, 5
        %v881 = vmul.f32 %v843, %v880
        %v882 = vmul.f32 %v844, %v880
        %v883 = vmul.f32 %v881, 1.442695
        %v884 = vpow.pop %v883
        %v885 = vmul.f32 %v882, 1.442695
        %v886 = vpow.pop %v885
        %v887 = vperm.slane %v839, 6
        %v888 = vmul.f32 %v843, %v887
        %v889 = vmul.f32 %v844, %v887
        %v890 = vmul.f32 %v888, 1.442695
        %v891 = vpow.pop %v890
        %v892 = vmul.f32 %v889, 1.442695
        %v893 = vpow.pop %v892
        %v894 = vperm.slane %v839, 7
        %v895 = vmul.f32 %v843, %v894
        %v896 = vmul.f32 %v844, %v894
        %v897 = vmul.f32 %v895, 1.442695
        %v898 = vpow.pop %v897
        %v899 = vmul.f32 %v896, 1.442695
        %v900 = vpow.pop %v899
        %v901 = vld [vmem:[#allocation7] sm:$0xff]
        %v902 = vld [vmem:[#allocation7 + $0x8] sm:$0xff]
        %v903 = vld [vmem:[#allocation7 + $0x10] sm:$0xff]
        %v904 = vld [vmem:[#allocation7 + $0x18] sm:$0xff]
        %v905 = vld [vmem:[#allocation8] sm:$0xff]
        %v906 = vld [vmem:[#allocation8 + $0x8] sm:$0xff]
        %v907 = vmul.f32 %v849, %v905
        %v908 = vmul.f32 %v851, %v906
        %910 = vset.pattern.permute.xlu0 0
        %911 = vperm.xlu0 %910, %v901
        %v912 = vpop.permute.xlu0 %911
        %915 = vset.pattern.permute.xlu0 0
        %916 = vperm.xlu0 %915, %v902
        %v917 = vpop.permute.xlu0 %916
        %v919 = vperm.slane %v842, 0
        %v920 = vmul.f32 %v912, %v919
        %v921 = vmul.f32 %v917, %v919
        %v922 = vadd.f32 %v907, %v920
        %v923 = vadd.f32 %v908, %v921
        %925 = vset.pattern.permute.xlu0 0
        %926 = vperm.xlu0 %925, %v903
        %v927 = vpop.permute.xlu0 %926
        %930 = vset.pattern.permute.xlu0 0
        %931 = vperm.xlu0 %930, %v904
        %v932 = vpop.permute.xlu0 %931
        %v934 = vmul.f32 %v927, %v922
        %v935 = vmul.f32 %v932, %v923
        %v936 = vsel %vm530, %v934, 0.0
        %v937 = vsel %vm530, %v935, 0.0
        %v938 = vadd.f32 %v936, %v937
        %v939 = vrot.slane %v938, 4
        %v940 = vadd.f32 %v938, %v939
        %v941 = vrot.slane %v940, 2
        %v942 = vadd.f32 %v940, %v941
        %v943 = vrot.slane %v942, 1
        %v944 = vadd.f32 %v942, %v943
        %v945 = vmul.f32 %v856, %v922
        %v946 = vmul.f32 %v858, %v923
        %947 = vset.pattern.permute.xlu0 1
        %948 = vperm.xlu0 %947, %v901
        %v949 = vpop.permute.xlu0 %948
        %951 = vset.pattern.permute.xlu0 1
        %952 = vperm.xlu0 %951, %v902
        %v953 = vpop.permute.xlu0 %952
        %v955 = vperm.slane %v842, 1
        %v956 = vmul.f32 %v949, %v955
        %v957 = vmul.f32 %v953, %v955
        %v958 = vadd.f32 %v945, %v956
        %v959 = vadd.f32 %v946, %v957
        %960 = vset.pattern.permute.xlu0 1
        %961 = vperm.xlu0 %960, %v903
        %v962 = vpop.permute.xlu0 %961
        %964 = vset.pattern.permute.xlu0 1
        %965 = vperm.xlu0 %964, %v904
        %v966 = vpop.permute.xlu0 %965
        %v968 = vmul.f32 %v962, %v958
        %v969 = vmul.f32 %v966, %v959
        %v970 = vsel %vm530, %v968, 0.0
        %v971 = vsel %vm530, %v969, 0.0
        %v972 = vadd.f32 %v970, %v971
        %v973 = vrot.slane %v972, 4
        %v974 = vadd.f32 %v972, %v973
        %v975 = vrot.slane %v974, 2
        %v976 = vadd.f32 %v974, %v975
        %v977 = vrot.slane %v976, 1
        %v978 = vadd.f32 %v976, %v977
        %v979 = vmul.f32 %v863, %v958
        %v980 = vmul.f32 %v865, %v959
        %981 = vset.pattern.permute.xlu0 2
        %982 = vperm.xlu0 %981, %v901
        %v983 = vpop.permute.xlu0 %982
        %985 = vset.pattern.permute.xlu0 2
        %986 = vperm.xlu0 %985, %v902
        %v987 = vpop.permute.xlu0 %986
        %v989 = vperm.slane %v842, 2
        %v990 = vmul.f32 %v983, %v989
        %v991 = vmul.f32 %v987, %v989
        %v992 = vadd.f32 %v979, %v990
        %v993 = vadd.f32 %v980, %v991
        %994 = vset.pattern.permute.xlu0 2
        %995 = vperm.xlu0 %994, %v903
        %v996 = vpop.permute.xlu0 %995
        %998 = vset.pattern.permute.xlu0 2
        %999 = vperm.xlu0 %998, %v904
        %v1000 = vpop.permute.xlu0 %999
        %v1002 = vmul.f32 %v996, %v992
        %v1003 = vmul.f32 %v1000, %v993
        %v1004 = vsel %vm530, %v1002, 0.0
        %v1005 = vsel %vm530, %v1003, 0.0
        %v1006 = vadd.f32 %v1004, %v1005
        %v1007 = vrot.slane %v1006, 4
        %v1008 = vadd.f32 %v1006, %v1007
        %v1009 = vrot.slane %v1008, 2
        %v1010 = vadd.f32 %v1008, %v1009
        %v1011 = vrot.slane %v1010, 1
        %v1012 = vadd.f32 %v1010, %v1011
        %v1013 = vmul.f32 %v870, %v992
        %v1014 = vmul.f32 %v872, %v993
        %1015 = vset.pattern.permute.xlu0 3
        %1016 = vperm.xlu0 %1015, %v901
        %v1017 = vpop.permute.xlu0 %1016
        %1019 = vset.pattern.permute.xlu0 3
        %1020 = vperm.xlu0 %1019, %v902
        %v1021 = vpop.permute.xlu0 %1020
        %v1023 = vperm.slane %v842, 3
        %v1024 = vmul.f32 %v1017, %v1023
        %v1025 = vmul.f32 %v1021, %v1023
        %v1026 = vadd.f32 %v1013, %v1024
        %v1027 = vadd.f32 %v1014, %v1025
        %1028 = vset.pattern.permute.xlu0 3
        %1029 = vperm.xlu0 %1028, %v903
        %v1030 = vpop.permute.xlu0 %1029
        %1032 = vset.pattern.permute.xlu0 3
        %1033 = vperm.xlu0 %1032, %v904
        %v1034 = vpop.permute.xlu0 %1033
        %v1036 = vmul.f32 %v1030, %v1026
        %v1037 = vmul.f32 %v1034, %v1027
        %v1038 = vsel %vm530, %v1036, 0.0
        %v1039 = vsel %vm530, %v1037, 0.0
        %v1040 = vadd.f32 %v1038, %v1039
        %v1041 = vrot.slane %v1040, 4
        %v1042 = vadd.f32 %v1040, %v1041
        %v1043 = vrot.slane %v1042, 2
        %v1044 = vadd.f32 %v1042, %v1043
        %v1045 = vrot.slane %v1044, 1
        %v1046 = vadd.f32 %v1044, %v1045
        %v1047 = vmul.f32 %v877, %v1026
        %v1048 = vmul.f32 %v879, %v1027
        %1049 = vset.pattern.permute.xlu0 4
        %1050 = vperm.xlu0 %1049, %v901
        %v1051 = vpop.permute.xlu0 %1050
        %1053 = vset.pattern.permute.xlu0 4
        %1054 = vperm.xlu0 %1053, %v902
        %v1055 = vpop.permute.xlu0 %1054
        %v1057 = vperm.slane %v842, 4
        %v1058 = vmul.f32 %v1051, %v1057
        %v1059 = vmul.f32 %v1055, %v1057
        %v1060 = vadd.f32 %v1047, %v1058
        %v1061 = vadd.f32 %v1048, %v1059
        %1062 = vset.pattern.permute.xlu0 4
        %1063 = vperm.xlu0 %1062, %v903
        %v1064 = vpop.permute.xlu0 %1063
        %1066 = vset.pattern.permute.xlu0 4
        %1067 = vperm.xlu0 %1066, %v904
        %v1068 = vpop.permute.xlu0 %1067
        %v1070 = vmul.f32 %v1064, %v1060
        %v1071 = vmul.f32 %v1068, %v1061
        %v1072 = vsel %vm530, %v1070, 0.0
        %v1073 = vsel %vm530, %v1071, 0.0
        %v1074 = vadd.f32 %v1072, %v1073
        %v1075 = vrot.slane %v1074, 4
        %v1076 = vadd.f32 %v1074, %v1075
        %v1077 = vrot.slane %v1076, 2
        %v1078 = vadd.f32 %v1076, %v1077
        %v1079 = vrot.slane %v1078, 1
        %v1080 = vadd.f32 %v1078, %v1079
        %v1081 = vmul.f32 %v884, %v1060
        %v1082 = vmul.f32 %v886, %v1061
        %1083 = vset.pattern.permute.xlu0 5
        %1084 = vperm.xlu0 %1083, %v901
        %v1085 = vpop.permute.xlu0 %1084
        %1087 = vset.pattern.permute.xlu0 5
        %1088 = vperm.xlu0 %1087, %v902
        %v1089 = vpop.permute.xlu0 %1088
        %v1091 = vperm.slane %v842, 5
        %v1092 = vmul.f32 %v1085, %v1091
        %v1093 = vmul.f32 %v1089, %v1091
        %v1094 = vadd.f32 %v1081, %v1092
        %v1095 = vadd.f32 %v1082, %v1093
        %1096 = vset.pattern.permute.xlu0 5
        %1097 = vperm.xlu0 %1096, %v903
        %v1098 = vpop.permute.xlu0 %1097
        %1100 = vset.pattern.permute.xlu0 5
        %1101 = vperm.xlu0 %1100, %v904
        %v1102 = vpop.permute.xlu0 %1101
        %v1104 = vmul.f32 %v1098, %v1094
        %v1105 = vmul.f32 %v1102, %v1095
        %v1106 = vsel %vm530, %v1104, 0.0
        %v1107 = vsel %vm530, %v1105, 0.0
        %v1108 = vadd.f32 %v1106, %v1107
        %v1109 = vrot.slane %v1108, 4
        %v1110 = vadd.f32 %v1108, %v1109
        %v1111 = vrot.slane %v1110, 2
        %v1112 = vadd.f32 %v1110, %v1111
        %v1113 = vrot.slane %v1112, 1
        %v1114 = vadd.f32 %v1112, %v1113
        %v1115 = vmul.f32 %v891, %v1094
        %v1116 = vmul.f32 %v893, %v1095
        %1117 = vset.pattern.permute.xlu0 6
        %1118 = vperm.xlu0 %1117, %v901
        %v1119 = vpop.permute.xlu0 %1118
        %1121 = vset.pattern.permute.xlu0 6
        %1122 = vperm.xlu0 %1121, %v902
        %v1123 = vpop.permute.xlu0 %1122
        %v1125 = vperm.slane %v842, 6
        %v1126 = vmul.f32 %v1119, %v1125
        %v1127 = vmul.f32 %v1123, %v1125
        %v1128 = vadd.f32 %v1115, %v1126
        %v1129 = vadd.f32 %v1116, %v1127
        %1130 = vset.pattern.permute.xlu0 6
        %1131 = vperm.xlu0 %1130, %v903
        %v1132 = vpop.permute.xlu0 %1131
        %1134 = vset.pattern.permute.xlu0 6
        %1135 = vperm.xlu0 %1134, %v904
        %v1136 = vpop.permute.xlu0 %1135
        %v1138 = vmul.f32 %v1132, %v1128
        %v1139 = vmul.f32 %v1136, %v1129
        %v1140 = vsel %vm530, %v1138, 0.0
        %v1141 = vsel %vm530, %v1139, 0.0
        %v1142 = vadd.f32 %v1140, %v1141
        %v1143 = vrot.slane %v1142, 4
        %v1144 = vadd.f32 %v1142, %v1143
        %v1145 = vrot.slane %v1144, 2
        %v1146 = vadd.f32 %v1144, %v1145
        %v1147 = vrot.slane %v1146, 1
        %v1148 = vadd.f32 %v1146, %v1147
        %v1149 = vmul.f32 %v898, %v1128
        %v1150 = vmul.f32 %v900, %v1129
        %1151 = vset.pattern.permute.xlu0 7
        %1152 = vperm.xlu0 %1151, %v901
        %v1153 = vpop.permute.xlu0 %1152
        %1155 = vset.pattern.permute.xlu0 7
        %1156 = vperm.xlu0 %1155, %v902
        %v1157 = vpop.permute.xlu0 %1156
        %v1159 = vperm.slane %v842, 7
        %v1160 = vmul.f32 %v1153, %v1159
        %v1161 = vmul.f32 %v1157, %v1159
        %v1162 = vadd.f32 %v1149, %v1160
        %v1163 = vadd.f32 %v1150, %v1161
        %1164 = vset.pattern.permute.xlu0 7
        %1165 = vperm.xlu0 %1164, %v903
        %v1166 = vpop.permute.xlu0 %1165
        %1168 = vset.pattern.permute.xlu0 7
        %1169 = vperm.xlu0 %1168, %v904
        %v1170 = vpop.permute.xlu0 %1169
        %v1172 = vmul.f32 %v1166, %v1162
        %v1173 = vmul.f32 %v1170, %v1163
        %v1174 = vsel %vm530, %v1172, 0.0
        %v1175 = vsel %vm530, %v1173, 0.0
        %v1176 = vadd.f32 %v1174, %v1175
        %v1177 = vrot.slane %v1176, 4
        %v1178 = vadd.f32 %v1176, %v1177
        %v1179 = vrot.slane %v1178, 2
        %v1180 = vadd.f32 %v1178, %v1179
        %v1181 = vrot.slane %v1180, 1
        %v1182 = vadd.f32 %v1180, %v1181
        %1183 = vst.msk [vmem:[#allocation8] sm:$0xff] %vm530, %v1162
        %1184 = vst.msk [vmem:[#allocation8 + $0x8] sm:$0xff] %vm530, %v1163
        %vm1185 = vcmask 1040384
        %v1186 = vsel %vm1185, %v944, %v978
        %vm1187 = vcmask 1041408
        %v1188 = vsel %vm1187, %v1186, %v1012
        %vm1189 = vcmask 1042432
        %v1190 = vsel %vm1189, %v1188, %v1046
        %vm1191 = vcmask 1043456
        %v1192 = vsel %vm1191, %v1190, %v1080
        %vm1193 = vcmask 1044480
        %v1194 = vsel %vm1193, %v1192, %v1114
        %vm1195 = vcmask 1045504
        %v1196 = vsel %vm1195, %v1194, %v1148
        %vm1197 = vcmask 1046528
        %v1198 = vsel %vm1197, %v1196, %v1182
        %v1199 = vld [vmem:[%s10] sm:$0x1]
        %v1201 = vperm.slane %v1199, 0
        %v1203 = vmul.f32 %v1201, %v840
        %v1204 = vadd.f32 %v1198, %v1203
        %v1205 = vmul.f32 %v1204, %v841
        %1206 = vst.msk [vmem:[#allocation6] sm:$0xff] %vm530, %v1205
        %v1207 = vld [vmem:[#allocation6] sm:$0xff]
        %v1208 = vpack.c.bf16 %v1207, %v1207
        %v1209 = vld [vmem:[%s11] sm:$0xf]
        %v1210 = vld [vmem:[%s11 + $0x4] sm:$0xf]
        %v1211 = vld [vmem:[%s11 + $0x8] sm:$0xf]
        %v1212 = vld [vmem:[%s11 + $0xc] sm:$0xf]
        %v1213 = vld [vmem:[%s11 + $0x10] sm:$0xf]
        %v1214 = vld [vmem:[%s11 + $0x14] sm:$0xf]
        %v1215 = vld [vmem:[%s11 + $0x18] sm:$0xf]
        %v1216 = vld [vmem:[%s11 + $0x1c] sm:$0xf]
        %v1225 = vunpack.c.l.b16 %v1209
        %v1226 = vunpack.c.l.b16 %v1210
        %v1227 = vunpack.c.l.b16 %v1211
        %v1228 = vunpack.c.l.b16 %v1212
        %v1229 = vunpack.c.l.b16 %v1213
        %v1230 = vunpack.c.l.b16 %v1214
        %v1231 = vunpack.c.l.b16 %v1215
        %v1232 = vunpack.c.l.b16 %v1216
        %v1233 = vpack.c.b16 %v1226, %v1225
        %v1234 = vpack.c.b16 %v1228, %v1227
        %v1235 = vpack.c.b16 %v1230, %v1229
        %v1236 = vpack.c.b16 %v1232, %v1231
        %v1242 = vsel %vm530, %v1208, 0
        %1244 = vmatpush.bf16.msra.mxu0 0
        %1245 = vmatpush.bf16.msra.mxu0 0
        %1246 = vmatpush.bf16.msra.mxu0 0
        %1247 = vmatpush.bf16.msra.mxu0 0
        %1248 = vmatpush.bf16.msra.mxu0 %v1236
        %1249 = vmatpush.bf16.msra.mxu0 %v1235
        %1250 = vmatpush.bf16.msra.mxu0 %v1234
        %1251 = vmatpush.bf16.msra.mxu0 %v1233
        %1252 = vmatmul.bf16.gmra.mxu0 %v1242
        %v1253 = vpop.f32.mrf.mxu0
        %v1254 = vadd.f32 0.0, %v1253
        %v1255 = vpop.f32.mrf.mxu0
        %1256 = vdwg.mxu0
        %1257 = vst.msk [vmem:[%s428] sm:$0xff] %vm464, %v1254
        %s1258 = sand.u32 %s307, 1
        %s1259 = scalar_lea.sflag [#allocation10], %s1258
        %s1260 = sand.u32 %s307, 1
        %s1261 = smul.addr %s1260, 8
        %s1262 = scalar_lea.vmem [#allocation9], %s1261
        // Predicated region
        $region73: #{tpu_custom_call.1} parent=67 // pred_check
          %p1263 = pneg %p317
        $region74: #{tpu_custom_call.1} parent=67 // pred_check_branch
          %1265 = sbr.rel (%p1263) target = $region76
        $region75: #{tpu_custom_call.1} parent=67 // pred_region
          %1267 = vsyncadd %s1259, 0
          %s1268 = smul.addr %s30, 3
          %s1269 = sadd.s32 %s31, %s1268
          %s1270 = smul.addr %s1269, 8
          %s1271 = scalar_lea.hbm %s12, %s1270
          %s1273 = sshll.u32 %s1262, 4
          %s1274 = int_to_ptr.vmem [resolvable:$true] %s1273
          %s1275 = sshll.u32 %s1271, 4
          %s1276 = int_to_ptr.hbm [resolvable:$true] %s1275
          %1278 = dma.vmem_to_hbm [thread:$0]  %s1274, 128, %s1276, %s1259
        $region76: #{tpu_custom_call.1} parent=67 // pred_fallthru
          _
      $region68: #{tpu_custom_call.1} parent=5 // pred_fallthru
        _
      %p1279 = scmp.le.s32.totalorder 2, %s21
      // Predicated region
      $region77: #{tpu_custom_call.1} parent=5 // pred_check
        %p1280 = pneg %p1279
      $region78: #{tpu_custom_call.1} parent=5 // pred_check_branch
        %1282 = sbr.rel (%p1280) target = $region80
      $region79: #{tpu_custom_call.1} parent=5 // pred_region
        %s1283 = ssub.s32 %s21, 2
        // Predicated region
        $region81: #{tpu_custom_call.1} parent=79 // pred_check
          %p1284 = pneg %p323
        $region82: #{tpu_custom_call.1} parent=79 // pred_check_branch
          %1286 = sbr.rel (%p1284) target = $region84
        $region83: #{tpu_custom_call.1} parent=79 // pred_region
          %s1287 = sand.u32 %s308, 1
          %s1288 = scalar_lea.sflag [#allocation10], %s1287
          %s1289 = sand.u32 %s308, 1
          %s1290 = smul.addr %s1289, 8
          %s1291 = scalar_lea.vmem [#allocation9], %s1290
          %1293 = dma.done %s1288, 128
        $region84: #{tpu_custom_call.1} parent=79 // pred_fallthru
          _
      $region80: #{tpu_custom_call.1} parent=5 // pred_fallthru
        _
    $region6: #{tpu_custom_call.1} parent=1 // loop_footer
      %s25 = sadd.s32 1, %s21
    $region7: #{tpu_custom_call.1} parent=1 // loop_footer_branch
      %20 = sbr.rel target = $region3
    $region8: #{tpu_custom_call.1} parent=1 // loop_exit
      _
    %1294 = vsyncpa [#allocation10], 1
    %s1295 = scalar_lea.sflag [#allocation10], 1
    %1296 = vsyncpa %s1295, 1

</llo_original>
